<compile_context>
chip_gen: v7x
topology: tpu7x:2x2x1
jax: 0.10.0
libtpu: 0.0.40
codegen_flags: <defaults>
</compile_context>

<pallas_src>
import math
import functools

import jax
import jax.numpy as jnp
from jax.experimental import pallas as pl
from jax.experimental.pallas import tpu as pltpu

VMEM_LIMIT = 64 * 1024 * 1024  # fits v7x (64 MiB/TC); plenty on v5e/v6e


# ----------------------------------------------------------------------------
# tiling helper
# ----------------------------------------------------------------------------

def _pick_tile(dim, target, align):
    """Largest tile <= target that is `align`-aligned and divides `dim`;
    falls back to the full dim (the 'block == full array' escape hatch)."""
    if dim <= target:
        return dim
    t = (target // align) * align
    while t >= align:
        if dim % t == 0:
            return t
        t -= align
    return dim


# ----------------------------------------------------------------------------
# Kernel 1: fused LayerNorm -> matmul (+ optional bias, optional tanh-GELU)
#   grid = (M//tm, N//tn); K kept whole (LN needs the row).  The normalized
#   block is cached in VMEM scratch and only recomputed when j == 0.
# ----------------------------------------------------------------------------

def _ln_matmul_kernel(*refs, activation, has_bias):
    if has_bias:
        x_ref, g_ref, beta_ref, w_ref, bias_ref, o_ref, xn_ref = refs
    else:
        x_ref, g_ref, beta_ref, w_ref, o_ref, xn_ref = refs
        bias_ref = None

    @pl.when(pl.program_id(1) == 0)
    def _():
        x = x_ref[...].astype(jnp.float32)                   # (tm, K)
        mu = jnp.mean(x, axis=-1, keepdims=True)
        xc = x - mu
        var = jnp.mean(xc * xc, axis=-1, keepdims=True)
        xn = xc * jax.lax.rsqrt(var + 1e-5)                   # PyTorch LN eps
        xn = xn * g_ref[...].astype(jnp.float32) + beta_ref[...].astype(jnp.float32)
        xn_ref[...] = xn.astype(xn_ref.dtype)                 # bf16 MXU operand

    acc = jnp.dot(xn_ref[...], w_ref[...], preferred_element_type=jnp.float32)
    if has_bias:
        acc = acc + bias_ref[...]
    if activation == "gelu_tanh":                              # nn.GELU('tanh')
        c = math.sqrt(2.0 / math.pi)
        acc = 0.5 * acc * (1.0 + jnp.tanh(c * (acc + 0.044715 * acc * acc * acc)))
    o_ref[...] = acc.astype(o_ref.dtype)


def ln_linear(x, gamma, beta, w, bias=None, activation=None, out_dtype=None,
              tm_target=512, tn_target=512):
    M, K = x.shape
    Kw, N = w.shape
    assert Kw == K
    out_dtype = out_dtype if out_dtype is not None else x.dtype

    tm = _pick_tile(M, tm_target, 8)
    tn = _pick_tile(N, tn_target, 128)
    grid = (M // tm, N // tn)
    has_bias = bias is not None

    in_specs = [
        pl.BlockSpec((tm, K), lambda i, j: (i, 0)),       # x re-used across j
        pl.BlockSpec((1, K), lambda i, j: (0, 0)),        # gamma
        pl.BlockSpec((1, K), lambda i, j: (0, 0)),        # beta
        pl.BlockSpec((K, tn), lambda i, j: (0, j)),       # weight
    ]
    args = [x, gamma.reshape(1, K), beta.reshape(1, K), w]
    if has_bias:
        in_specs.append(pl.BlockSpec((1, tn), lambda i, j: (0, j)))
        args.append(bias.reshape(1, N).astype(jnp.float32))

    kern = functools.partial(_ln_matmul_kernel, activation=activation,
                             has_bias=has_bias)
    return pl.pallas_call(
        kern,
        out_shape=jax.ShapeDtypeStruct((M, N), out_dtype),
        grid=grid,
        in_specs=in_specs,
        out_specs=pl.BlockSpec((tm, tn), lambda i, j: (i, j)),
        scratch_shapes=[pltpu.VMEM((tm, K), w.dtype)],     # cached LN rows
        compiler_params=pltpu.CompilerParams(
            dimension_semantics=("parallel", "arbitrary"),  # scratch carry on j
            vmem_limit_bytes=VMEM_LIMIT),
    )(*args)


# ----------------------------------------------------------------------------
# Kernel 2: tiled matmul with bias + fused residual add
#   grid = (M//tm, N//tn, K//tk); fp32 accumulator in VMEM scratch.
# ----------------------------------------------------------------------------

def _matmul_res_kernel(x_ref, w_ref, b_ref, r_ref, o_ref, acc_ref):
    k = pl.program_id(2)

    @pl.when(k == 0)
    def _():
        acc_ref[...] = jnp.zeros_like(acc_ref)

    acc_ref[...] += jnp.dot(x_ref[...], w_ref[...],
                            preferred_element_type=jnp.float32)

    @pl.when(k == pl.num_programs(2) - 1)
    def _():
        acc = acc_ref[...] + b_ref[...] + r_ref[...].astype(jnp.float32)
        o_ref[...] = acc.astype(o_ref.dtype)


def linear_residual(x, w, bias, res, out_dtype=None,
                    tm_target=512, tn_target=768, tk_target=3072):
    M, K = x.shape
    Kw, N = w.shape
    assert Kw == K and res.shape == (M, N)
    out_dtype = out_dtype if out_dtype is not None else x.dtype

    tm = _pick_tile(M, tm_target, 8)
    tn = _pick_tile(N, tn_target, 128)
    tk = _pick_tile(K, tk_target, 128)
    grid = (M // tm, N // tn, K // tk)

    return pl.pallas_call(
        _matmul_res_kernel,
        out_shape=jax.ShapeDtypeStruct((M, N), out_dtype),
        grid=grid,
        in_specs=[pl.BlockSpec((tm, tk), lambda i, j, k: (i, k)),
                  pl.BlockSpec((tk, tn), lambda i, j, k: (k, j)),
                  pl.BlockSpec((1, tn), lambda i, j, k: (0, j)),
                  pl.BlockSpec((tm, tn), lambda i, j, k: (i, j))],
        out_specs=pl.BlockSpec((tm, tn), lambda i, j, k: (i, j)),
        scratch_shapes=[pltpu.VMEM((tm, tn), jnp.float32)],
        compiler_params=pltpu.CompilerParams(
            dimension_semantics=("parallel", "parallel", "arbitrary"),
            vmem_limit_bytes=VMEM_LIMIT),
    )(x, w, bias.reshape(1, N).astype(jnp.float32), res)


# ----------------------------------------------------------------------------
# Kernel 3: flash-style causal multi-head attention
#   grid = (B, T//tq, T//tk); all heads of one (batch, q-block) per step;
#   online softmax with per-head m/l/acc scratch; KV blocks above the causal
#   diagonal are skipped.  Reads Q/K/V straight from the (B, T, 3C) qkv slab
#   (the slab is passed twice with different BlockSpecs), writes (B, T, C).
# ----------------------------------------------------------------------------

def _flash_attn_kernel(q_ref, kv_ref, o_ref, m_ref, l_ref, acc_ref,
                       *, n_head, tq, tk):
    qi = pl.program_id(1)
    ki = pl.program_id(2)
    C3 = q_ref.shape[-1]
    C = C3 // 3
    D = C // n_head

    @pl.when(ki == 0)
    def _():
        m_ref[...] = jnp.full_like(m_ref, -jnp.inf)
        l_ref[...] = jnp.zeros_like(l_ref)
        acc_ref[...] = jnp.zeros_like(acc_ref)

    # Skip KV blocks that lie entirely above the causal diagonal.
    @pl.when(ki * tk <= qi * tq + (tq - 1))
    def _():
        q = q_ref[0, :, :C]                 # (tq, C)  (scale folded into w_attn)
        k = kv_ref[0, :, C:2 * C]           # (tk, C)
        v = kv_ref[0, :, 2 * C:]            # (tk, C)

        # causal mask from a (tq,1) vs (1,tk) iota compare (no (T,T) iotas)
        row = qi * tq + jax.lax.broadcasted_iota(jnp.int32, (tq, 1), 0)
        col = ki * tk + jax.lax.broadcasted_iota(jnp.int32, (1, tk), 1)
        mask = col <= row                   # (tq, tk) via broadcast

        for h in range(n_head):
            sl = slice(h * D, (h + 1) * D)
            s = jax.lax.dot_general(q[:, sl], k[:, sl],
                                    (((1,), (1,)), ((), ())),
                                    preferred_element_type=jnp.float32)
            s = jnp.where(mask, s, -jnp.inf)
            m_prev = m_ref[h]
            m_new = jnp.maximum(m_prev, jnp.max(s, axis=-1, keepdims=True))
            alpha = jnp.exp(m_prev - m_new)
            p = jnp.exp(s - m_new)
            l_ref[h] = alpha * l_ref[h] + jnp.sum(p, axis=-1, keepdims=True)
            acc_ref[h] = alpha * acc_ref[h] + jnp.dot(
                p.astype(v.dtype), v[:, sl], preferred_element_type=jnp.float32)
            m_ref[h] = m_new

    @pl.when(ki == pl.num_programs(2) - 1)
    def _():
        # approx reciprocal is fine: outputs are bf16
        outs = [acc_ref[h] * pl.reciprocal(l_ref[h], approx=True)
                for h in range(n_head)]
        # single lane-dense (tq, C) store
        o_ref[0] = jnp.concatenate(outs, axis=-1).astype(o_ref.dtype)


def flash_causal_attention(qkv, n_head, tq_target=256, tk_target=256):
    B, T, C3 = qkv.shape
    C = C3 // 3
    D = C // n_head
    tq = _pick_tile(T, tq_target, 8)
    tk = _pick_tile(T, tk_target, 8)
    grid = (B, T // tq, T // tk)

    kern = functools.partial(_flash_attn_kernel, n_head=n_head, tq=tq, tk=tk)
    return pl.pallas_call(
        kern,
        out_shape=jax.ShapeDtypeStruct((B, T, C), qkv.dtype),
        grid=grid,
        in_specs=[pl.BlockSpec((1, tq, C3), lambda b, qi, ki: (b, qi, 0)),
                  pl.BlockSpec((1, tk, C3), lambda b, qi, ki: (b, ki, 0))],
        out_specs=pl.BlockSpec((1, tq, C), lambda b, qi, ki: (b, qi, 0)),
        scratch_shapes=[pltpu.VMEM((n_head, tq, 1), jnp.float32),   # m
                        pltpu.VMEM((n_head, tq, 1), jnp.float32),   # l
                        pltpu.VMEM((n_head, tq, D), jnp.float32)],  # acc
        compiler_params=pltpu.CompilerParams(
            dimension_semantics=("parallel", "parallel", "arbitrary"),
            vmem_limit_bytes=VMEM_LIMIT),
    )(qkv, qkv)


# ----------------------------------------------------------------------------
# Parameters (deterministic synthetic init, mirrors GPT._init_weights)
#   matmul weights / embeddings in bf16, LN params & biases in f32.
#   wte is kept (V, C) for the gather; the tied lm_head weight is stored once,
#   pre-transposed and zero-padded to (C, Vpad) so the lm_head N axis tiles.
#   The 1/sqrt(D) attention scale is folded into the q-columns of w_attn.
# ----------------------------------------------------------------------------

def init_params(key, cfg):
    C, L, V, P, H = (cfg["n_embd"], cfg["n_layer"], cfg["vocab_size"],
                     cfg["block_size"], cfg["n_head"])
    Vpad = ((V + 127) // 128) * 128
    std = 0.02
    proj_std = 0.02 * (2 * L) ** -0.5            # NANOGPT_SCALE_INIT
    attn_scale = 1.0 / math.sqrt(C // H)

    keys = iter(jax.random.split(key, 2 + 4 * L))

    wte_f32 = std * jax.random.normal(next(keys), (V, C), jnp.float32)
    lm_w = jnp.zeros((C, Vpad), jnp.float32).at[:, :V].set(wte_f32.T)

    params = {
        "wte": wte_f32.astype(jnp.bfloat16),                    # (V, C) gather
        "lm_w": lm_w.astype(jnp.bfloat16),                      # (C, Vpad) tied
        "wpe": (std * jax.random.normal(next(keys), (P, C),
                                        jnp.float32)).astype(jnp.bfloat16),
        "ln_f_g": jnp.ones((C,), jnp.float32),
        "ln_f_b": jnp.zeros((C,), jnp.float32),
        "vocab_pad": Vpad,
        "blocks": [],
    }
    for _ in range(L):
        w_attn = std * jax.random.normal(next(keys), (C, 3 * C), jnp.float32)
        w_attn = w_attn.at[:, :C].multiply(attn_scale)          # fold 1/sqrt(D)
        blk = {
            "ln1_g": jnp.ones((C,), jnp.float32),
            "ln1_b": jnp.zeros((C,), jnp.float32),
            "w_attn": w_attn.astype(jnp.bfloat16),
            "b_attn": jnp.zeros((3 * C,), jnp.float32),
            "w_attn_proj": (proj_std * jax.random.normal(next(keys), (C, C),
                                                         jnp.float32)).astype(jnp.bfloat16),
            "b_attn_proj": jnp.zeros((C,), jnp.float32),
            "ln2_g": jnp.ones((C,), jnp.float32),
            "ln2_b": jnp.zeros((C,), jnp.float32),
            "w_fc": (std * jax.random.normal(next(keys), (C, 4 * C),
                                             jnp.float32)).astype(jnp.bfloat16),
            "b_fc": jnp.zeros((4 * C,), jnp.float32),
            "w_mlp_proj": (proj_std * jax.random.normal(next(keys), (4 * C, C),
                                                        jnp.float32)).astype(jnp.bfloat16),
            "b_mlp_proj": jnp.zeros((C,), jnp.float32),
        }
        params["blocks"].append(blk)
    return params


# ----------------------------------------------------------------------------
# Forward pass
# ----------------------------------------------------------------------------

def gpt_forward(params, idx, cfg, target=None):
    B, T = idx.shape
    C, H, V = cfg["n_embd"], cfg["n_head"], cfg["vocab_size"]
    Vpad = params["vocab_pad"]
    assert T <= cfg["block_size"]

    tok_emb = jnp.take(params["wte"], idx, axis=0)            # (B, T, C) gather
    pos_emb = params["wpe"][:T]                               # (T, C)
    x = (tok_emb + pos_emb[None, :, :]).reshape(B * T, C)     # bf16 residual

    for blk in params["blocks"]:
        # ---- attention: ln1+qkv fused, flash attention, proj+residual fused ----
        qkv = ln_linear(x, blk["ln1_g"], blk["ln1_b"],
                        blk["w_attn"], blk["b_attn"])          # (B*T, 3C)
        y = flash_causal_attention(qkv.reshape(B, T, 3 * C), H)  # (B, T, C)
        x = linear_residual(y.reshape(B * T, C),
                            blk["w_attn_proj"], blk["b_attn_proj"], x)

        # ---- MLP: ln2+fc+GELU fused, proj+residual fused ----
        h = ln_linear(x, blk["ln2_g"], blk["ln2_b"],
                      blk["w_fc"], blk["b_fc"], activation="gelu_tanh")
        x = linear_residual(h, blk["w_mlp_proj"], blk["b_mlp_proj"], x)

    # final LN fused with the tied lm_head (pre-transposed (C, Vpad), no bias)
    logits_pad = ln_linear(x, params["ln_f_g"], params["ln_f_b"],
                           params["lm_w"], bias=None, out_dtype=jnp.float32,
                           tm_target=1024, tn_target=512)
    logits = logits_pad[:, :V].reshape(B, T, V)

    loss = None
    if target is not None:
        # plain-JAX cross entropy (ignore_index = -1), mirrors F.cross_entropy
        lf = logits.reshape(-1, V).astype(jnp.float32)
        tf = target.reshape(-1)
        lse = jax.nn.logsumexp(lf, axis=-1)
        picked = jnp.take_along_axis(lf, jnp.maximum(tf, 0)[:, None], axis=-1)[:, 0]
        nll = lse - picked
        mask = (tf != -1).astype(jnp.float32)
        loss = jnp.sum(nll * mask) / jnp.maximum(jnp.sum(mask), 1.0)
    return logits, loss


# ----------------------------------------------------------------------------
# Main
# ----------------------------------------------------------------------------

if __name__ == "__main__":
    cfg = dict(block_size=32, vocab_size=256, n_layer=2, n_head=4, n_embd=64,
               dropout=0.0, bias=False)

    key = jax.random.PRNGKey(0)
    k_param, k_idx = jax.random.split(key)
    params = init_params(k_param, cfg)

    B, T = 2, 16
    idx = jax.random.randint(k_idx, (B, T), 0, cfg["vocab_size"], dtype=jnp.int32)

    logits, loss = jax.jit(lambda p, i: gpt_forward(p, i, cfg))(params, idx)
    logits = jax.block_until_ready(logits)
    assert logits.shape == (B, T, cfg["vocab_size"])
    assert jnp.all(jnp.isfinite(logits))
    print("KERNEL_OK")
</pallas_src>

<mosaic_0001>
module attributes {stable_mosaic.version = 11 : i64} {
  func.func @_ln_matmul_kernel(%arg0: i32, %arg1: i32, %arg2: memref<32x64xbf16, #tpu.memory_space<vmem>>, %arg3: memref<1x64xf32, #tpu.memory_space<vmem>>, %arg4: memref<1x64xf32, #tpu.memory_space<vmem>>, %arg5: memref<64x192xbf16, #tpu.memory_space<vmem>>, %arg6: memref<1x192xf32, #tpu.memory_space<vmem>>, %arg7: memref<32x192xbf16, #tpu.memory_space<vmem>>, %arg8: memref<32x64xbf16, #tpu.memory_space<vmem>>) attributes {dimension_semantics = [#tpu.dimension_semantics<parallel>, #tpu.dimension_semantics<arbitrary>], iteration_bounds = array<i64: 1, 1>, scalar_prefetch = 0 : i64, scratch_operands = 1 : i64, tpu.core_type = #tpu.core_type<tc>, window_params = [{transform_indices = @transform_0, window_bounds = array<i64: 32, 64>}, {pipeline_mode = #tpu.pipeline_mode<synchronous>, transform_indices = @transform_1, window_bounds = array<i64: 1, 64>}, {pipeline_mode = #tpu.pipeline_mode<synchronous>, transform_indices = @transform_2, window_bounds = array<i64: 1, 64>}, {transform_indices = @transform_3, window_bounds = array<i64: 64, 192>}, {transform_indices = @transform_4, window_bounds = array<i64: 1, 192>}, {transform_indices = @transform_5, window_bounds = array<i64: 32, 192>}]} {
    %c0_i32 = arith.constant 0 : i32
    %0 = arith.cmpi eq, %arg1, %c0_i32 : i32
    %1 = arith.extui %0 : i1 to i32
    %c0_i32_0 = arith.constant 0 : i32
    %2 = arith.cmpi ne, %1, %c0_i32_0 : i32
    scf.if %2 {
      %c0_8 = arith.constant 0 : index
      %c0_9 = arith.constant 0 : index
      %11 = vector.load %arg2[%c0_8, %c0_9] : memref<32x64xbf16, #tpu.memory_space<vmem>>, vector<32x64xbf16>
      %12 = arith.extf %11 : vector<32x64xbf16> to vector<32x64xf32>
      %cst_10 = arith.constant dense<0.000000e+00> : vector<32xf32>
      %13 = vector.multi_reduction <add>, %12, %cst_10 [1] : vector<32x64xf32> to vector<32xf32>
      %14 = vector.shape_cast %13 : vector<32xf32> to vector<32x1xf32>
      %cst_11 = arith.constant 6.400000e+01 : f32
      %15 = vector.broadcast %cst_11 : f32 to vector<32x1xf32>
      %16 = arith.divf %14, %15 : vector<32x1xf32>
      %17 = vector.broadcast %16 : vector<32x1xf32> to vector<32x64xf32>
      %18 = arith.subf %12, %17 : vector<32x64xf32>
      %19 = arith.mulf %18, %18 : vector<32x64xf32>
      %cst_12 = arith.constant dense<0.000000e+00> : vector<32xf32>
      %20 = vector.multi_reduction <add>, %19, %cst_12 [1] : vector<32x64xf32> to vector<32xf32>
      %21 = vector.shape_cast %20 : vector<32xf32> to vector<32x1xf32>
      %cst_13 = arith.constant 6.400000e+01 : f32
      %22 = vector.broadcast %cst_13 : f32 to vector<32x1xf32>
      %23 = arith.divf %21, %22 : vector<32x1xf32>
      %cst_14 = arith.constant 9.99999974E-6 : f32
      %24 = vector.broadcast %cst_14 : f32 to vector<32x1xf32>
      %25 = arith.addf %23, %24 : vector<32x1xf32>
      %26 = math.rsqrt %25 : vector<32x1xf32>
      %27 = vector.broadcast %26 : vector<32x1xf32> to vector<32x64xf32>
      %28 = arith.mulf %18, %27 : vector<32x64xf32>
      %c0_15 = arith.constant 0 : index
      %c0_16 = arith.constant 0 : index
      %29 = vector.load %arg3[%c0_15, %c0_16] : memref<1x64xf32, #tpu.memory_space<vmem>>, vector<1x64xf32>
      %30 = vector.broadcast %29 : vector<1x64xf32> to vector<32x64xf32>
      %31 = arith.mulf %28, %30 : vector<32x64xf32>
      %c0_17 = arith.constant 0 : index
      %c0_18 = arith.constant 0 : index
      %32 = vector.load %arg4[%c0_17, %c0_18] : memref<1x64xf32, #tpu.memory_space<vmem>>, vector<1x64xf32>
      %33 = vector.broadcast %32 : vector<1x64xf32> to vector<32x64xf32>
      %34 = arith.addf %31, %33 : vector<32x64xf32>
      %35 = arith.truncf %34 : vector<32x64xf32> to vector<32x64xbf16>
      %c0_19 = arith.constant 0 : index
      %c0_20 = arith.constant 0 : index
      %36 = vector.load %arg8[%c0_19, %c0_20] : memref<32x64xbf16, #tpu.memory_space<vmem>>, vector<32x64xbf16>
      tpu.vector_store %arg8[%c0_19, %c0_20], %35 {strides = array<i32>} : memref<32x64xbf16, #tpu.memory_space<vmem>>, vector<32x64xbf16>,
    } else {
    }
    %c0 = arith.constant 0 : index
    %c0_1 = arith.constant 0 : index
    %3 = vector.load %arg8[%c0, %c0_1] : memref<32x64xbf16, #tpu.memory_space<vmem>>, vector<32x64xbf16>
    %c0_2 = arith.constant 0 : index
    %c0_3 = arith.constant 0 : index
    %4 = vector.load %arg5[%c0_2, %c0_3] : memref<64x192xbf16, #tpu.memory_space<vmem>>, vector<64x192xbf16>
    %cst = arith.constant dense<0.000000e+00> : vector<32x192xf32>
    %5 = tpu.matmul %3, %4, %cst {dimension_numbers = #tpu.dot_dimension_numbers<[1], [0], [0], [1], [0, 0, 1, 1], [], []>} : vector<32x64xbf16>, vector<64x192xbf16>, vector<32x192xf32> -> vector<32x192xf32>
    %c0_4 = arith.constant 0 : index
    %c0_5 = arith.constant 0 : index
    %6 = vector.load %arg6[%c0_4, %c0_5] : memref<1x192xf32, #tpu.memory_space<vmem>>, vector<1x192xf32>
    %7 = vector.broadcast %6 : vector<1x192xf32> to vector<32x192xf32>
    %8 = arith.addf %5, %7 : vector<32x192xf32>
    %9 = arith.truncf %8 : vector<32x192xf32> to vector<32x192xbf16>
    %c0_6 = arith.constant 0 : index
    %c0_7 = arith.constant 0 : index
    %10 = vector.load %arg7[%c0_6, %c0_7] : memref<32x192xbf16, #tpu.memory_space<vmem>>, vector<32x192xbf16>
    tpu.vector_store %arg7[%c0_6, %c0_7], %9 {strides = array<i32>} : memref<32x192xbf16, #tpu.memory_space<vmem>>, vector<32x192xbf16>,
    return
  }
  func.func @transform_0(%arg0: i32, %arg1: i32) -> (i32, i32) {
    %c0_i32 = arith.constant 0 : i32
    %c0_i32_0 = arith.constant 0 : i32
    return %arg0, %c0_i32 : i32, i32
  }
  func.func @transform_1(%arg0: i32, %arg1: i32) -> (i32, i32) {
    %c0_i32 = arith.constant 0 : i32
    %c0_i32_0 = arith.constant 0 : i32
    %c0_i32_1 = arith.constant 0 : i32
    return %c0_i32, %c0_i32_0 : i32, i32
  }
  func.func @transform_2(%arg0: i32, %arg1: i32) -> (i32, i32) {
    %c0_i32 = arith.constant 0 : i32
    %c0_i32_0 = arith.constant 0 : i32
    %c0_i32_1 = arith.constant 0 : i32
    return %c0_i32, %c0_i32_0 : i32, i32
  }
  func.func @transform_3(%arg0: i32, %arg1: i32) -> (i32, i32) {
    %c0_i32 = arith.constant 0 : i32
    %c0_i32_0 = arith.constant 0 : i32
    return %c0_i32, %arg1 : i32, i32
  }
  func.func @transform_4(%arg0: i32, %arg1: i32) -> (i32, i32) {
    %c0_i32 = arith.constant 0 : i32
    %c0_i32_0 = arith.constant 0 : i32
    return %c0_i32, %arg1 : i32, i32
  }
  func.func @transform_5(%arg0: i32, %arg1: i32) -> (i32, i32) {
    %c0_i32 = arith.constant 0 : i32
    return %arg0, %arg1 : i32, i32
  }
}

module attributes {stable_mosaic.version = 11 : i64} {
  func.func @_flash_attn_kernel(%arg0: i32, %arg1: i32, %arg2: i32, %arg3: memref<1x16x192xbf16, #tpu.memory_space<vmem>>, %arg4: memref<1x16x192xbf16, #tpu.memory_space<vmem>>, %arg5: memref<1x16x64xbf16, #tpu.memory_space<vmem>>, %arg6: memref<4x16x1xf32, #tpu.memory_space<vmem>>, %arg7: memref<4x16x1xf32, #tpu.memory_space<vmem>>, %arg8: memref<4x16x16xf32, #tpu.memory_space<vmem>>) attributes {dimension_semantics = [#tpu.dimension_semantics<parallel>, #tpu.dimension_semantics<parallel>, #tpu.dimension_semantics<arbitrary>], iteration_bounds = array<i64: 2, 1, 1>, scalar_prefetch = 0 : i64, scratch_operands = 3 : i64, tpu.core_type = #tpu.core_type<tc>, window_params = [{transform_indices = @transform_0, window_bounds = array<i64: 1, 16, 192>}, {transform_indices = @transform_1, window_bounds = array<i64: 1, 16, 192>}, {transform_indices = @transform_2, window_bounds = array<i64: 1, 16, 64>}]} {
    %c0_i32 = arith.constant 0 : i32
    %0 = arith.cmpi eq, %arg2, %c0_i32 : i32
    %1 = arith.extui %0 : i1 to i32
    %c0_i32_0 = arith.constant 0 : i32
    %2 = arith.cmpi ne, %1, %c0_i32_0 : i32
    scf.if %2 {
      %cst = arith.constant 0xFF800000 : f32
      %12 = vector.broadcast %cst : f32 to vector<4x16x1xf32>
      %c0 = arith.constant 0 : index
      %c0_5 = arith.constant 0 : index
      %c0_6 = arith.constant 0 : index
      %13 = vector.load %arg6[%c0, %c0_5, %c0_6] : memref<4x16x1xf32, #tpu.memory_space<vmem>>, vector<4x16x1xf32>
      tpu.vector_store %arg6[%c0, %c0_5, %c0_6], %12 {strides = array<i32>} : memref<4x16x1xf32, #tpu.memory_space<vmem>>, vector<4x16x1xf32>,
      %cst_7 = arith.constant 0.000000e+00 : f32
      %14 = vector.broadcast %cst_7 : f32 to vector<4x16x1xf32>
      %c0_8 = arith.constant 0 : index
      %c0_9 = arith.constant 0 : index
      %c0_10 = arith.constant 0 : index
      %15 = vector.load %arg7[%c0_8, %c0_9, %c0_10] : memref<4x16x1xf32, #tpu.memory_space<vmem>>, vector<4x16x1xf32>
      tpu.vector_store %arg7[%c0_8, %c0_9, %c0_10], %14 {strides = array<i32>} : memref<4x16x1xf32, #tpu.memory_space<vmem>>, vector<4x16x1xf32>,
      %cst_11 = arith.constant 0.000000e+00 : f32
      %16 = vector.broadcast %cst_11 : f32 to vector<4x16x16xf32>
      %c0_12 = arith.constant 0 : index
      %c0_13 = arith.constant 0 : index
      %c0_14 = arith.constant 0 : index
      %17 = vector.load %arg8[%c0_12, %c0_13, %c0_14] : memref<4x16x16xf32, #tpu.memory_space<vmem>>, vector<4x16x16xf32>
      tpu.vector_store %arg8[%c0_12, %c0_13, %c0_14], %16 {strides = array<i32>} : memref<4x16x16xf32, #tpu.memory_space<vmem>>, vector<4x16x16xf32>,
    } else {
    }
    %c16_i32 = arith.constant 16 : i32
    %3 = arith.muli %arg2, %c16_i32 : i32
    %c16_i32_1 = arith.constant 16 : i32
    %4 = arith.muli %arg1, %c16_i32_1 : i32
    %c15_i32 = arith.constant 15 : i32
    %5 = arith.addi %4, %c15_i32 : i32
    %6 = arith.cmpi sle, %3, %5 : i32
    %7 = arith.extui %6 : i1 to i32
    %c0_i32_2 = arith.constant 0 : i32
    %8 = arith.cmpi ne, %7, %c0_i32_2 : i32
    scf.if %8 {
      %c0 = arith.constant 0 : index
      %c0_5 = arith.constant 0 : index
      %c0_6 = arith.constant 0 : index
      %12 = vector.load %arg3[%c0, %c0_5, %c0_6] : memref<1x16x192xbf16, #tpu.memory_space<vmem>>, vector<1x16x64xbf16>
      %13 = vector.shape_cast %12 : vector<1x16x64xbf16> to vector<16x64xbf16>
      %c0_7 = arith.constant 0 : index
      %c0_8 = arith.constant 0 : index
      %c64 = arith.constant 64 : index
      %14 = vector.load %arg4[%c0_7, %c0_8, %c64] : memref<1x16x192xbf16, #tpu.memory_space<vmem>>, vector<1x16x64xbf16>
      %15 = vector.shape_cast %14 : vector<1x16x64xbf16> to vector<16x64xbf16>
      %c0_9 = arith.constant 0 : index
      %c0_10 = arith.constant 0 : index
      %c128 = arith.constant 128 : index
      %16 = vector.load %arg4[%c0_9, %c0_10, %c128] : memref<1x16x192xbf16, #tpu.memory_space<vmem>>, vector<1x16x64xbf16>
      %17 = vector.shape_cast %16 : vector<1x16x64xbf16> to vector<16x64xbf16>
      %c16_i32_11 = arith.constant 16 : i32
      %18 = arith.muli %arg1, %c16_i32_11 : i32
      %19 = tpu.iota {dimensions = array<i32: 0>} : vector<16x1xi32>
      %20 = vector.broadcast %18 : i32 to vector<16x1xi32>
      %21 = arith.addi %20, %19 : vector<16x1xi32>
      %c16_i32_12 = arith.constant 16 : i32
      %22 = arith.muli %arg2, %c16_i32_12 : i32
      %23 = tpu.iota {dimensions = array<i32: 1>} : vector<1x16xi32>
      %24 = vector.broadcast %22 : i32 to vector<1x16xi32>
      %25 = arith.addi %24, %23 : vector<1x16xi32>
      %26 = vector.broadcast %25 : vector<1x16xi32> to vector<16x16xi32>
      %27 = vector.broadcast %21 : vector<16x1xi32> to vector<16x16xi32>
      %28 = arith.cmpi sle, %26, %27 : vector<16x16xi32>
      %29 = vector.extract_strided_slice %13 {offsets = [0, 0], sizes = [16, 16], strides = [1, 1]} : vector<16x64xbf16> to vector<16x16xbf16>
      %30 = vector.extract_strided_slice %15 {offsets = [0, 0], sizes = [16, 16], strides = [1, 1]} : vector<16x64xbf16> to vector<16x16xbf16>
      %cst = arith.constant dense<0.000000e+00> : vector<16x16xf32>
      %31 = tpu.matmul %29, %30, %cst {dimension_numbers = #tpu.dot_dimension_numbers<[1], [1], [0], [0], [0, 0, 1, 0], [], []>} : vector<16x16xbf16>, vector<16x16xbf16>, vector<16x16xf32> -> vector<16x16xf32>
      %cst_13 = arith.constant 0xFF800000 : f32
      %32 = vector.broadcast %cst_13 : f32 to vector<16x16xf32>
      %33 = arith.select %28, %31, %32 : vector<16x16xi1>, vector<16x16xf32>
      %c0_14 = arith.constant 0 : index
      %c0_15 = arith.constant 0 : index
      %c0_16 = arith.constant 0 : index
      %34 = vector.load %arg6[%c0_14, %c0_15, %c0_16] : memref<4x16x1xf32, #tpu.memory_space<vmem>>, vector<1x16x1xf32>
      %35 = vector.shape_cast %34 : vector<1x16x1xf32> to vector<16x1xf32>
      %cst_17 = arith.constant dense<0xFF800000> : vector<16xf32>
      %36 = vector.multi_reduction <maximumf>, %33, %cst_17 [1] : vector<16x16xf32> to vector<16xf32>
      %37 = vector.shape_cast %36 : vector<16xf32> to vector<16x1xf32>
      %38 = arith.maximumf %35, %37 : vector<16x1xf32>
      %39 = arith.subf %35, %38 : vector<16x1xf32>
      %40 = math.exp %39 : vector<16x1xf32>
      %41 = vector.broadcast %38 : vector<16x1xf32> to vector<16x16xf32>
      %42 = arith.subf %33, %41 : vector<16x16xf32>
      %43 = math.exp %42 : vector<16x16xf32>
      %c0_18 = arith.constant 0 : index
      %c0_19 = arith.constant 0 : index
      %c0_20 = arith.constant 0 : index
      %44 = vector.load %arg7[%c0_18, %c0_19, %c0_20] : memref<4x16x1xf32, #tpu.memory_space<vmem>>, vector<1x16x1xf32>
      %45 = vector.shape_cast %44 : vector<1x16x1xf32> to vector<16x1xf32>
      %46 = arith.mulf %40, %45 : vector<16x1xf32>
      %cst_21 = arith.constant dense<0.000000e+00> : vector<16xf32>
      %47 = vector.multi_reduction <add>, %43, %cst_21 [1] : vector<16x16xf32> to vector<16xf32>
      %48 = vector.shape_cast %47 : vector<16xf32> to vector<16x1xf32>
      %49 = arith.addf %46, %48 : vector<16x1xf32>
      %c0_22 = arith.constant 0 : index
      %c0_23 = arith.constant 0 : index
      %c0_24 = arith.constant 0 : index
      %50 = vector.load %arg7[%c0_22, %c0_23, %c0_24] : memref<4x16x1xf32, #tpu.memory_space<vmem>>, vector<1x16x1xf32>
      %51 = vector.shape_cast %50 : vector<1x16x1xf32> to vector<16x1xf32>
      %52 = vector.shape_cast %49 : vector<16x1xf32> to vector<1x16x1xf32>
      tpu.vector_store %arg7[%c0_22, %c0_23, %c0_24], %52 {strides = array<i32>} : memref<4x16x1xf32, #tpu.memory_space<vmem>>, vector<1x16x1xf32>,
      %c0_25 = arith.constant 0 : index
      %c0_26 = arith.constant 0 : index
      %c0_27 = arith.constant 0 : index
      %53 = vector.load %arg8[%c0_25, %c0_26, %c0_27] : memref<4x16x16xf32, #tpu.memory_space<vmem>>, vector<1x16x16xf32>
      %54 = vector.shape_cast %53 : vector<1x16x16xf32> to vector<16x16xf32>
      %55 = vector.broadcast %40 : vector<16x1xf32> to vector<16x16xf32>
      %56 = arith.mulf %55, %54 : vector<16x16xf32>
      %57 = arith.truncf %43 : vector<16x16xf32> to vector<16x16xbf16>
      %58 = vector.extract_strided_slice %17 {offsets = [0, 0], sizes = [16, 16], strides = [1, 1]} : vector<16x64xbf16> to vector<16x16xbf16>
      %cst_28 = arith.constant dense<0.000000e+00> : vector<16x16xf32>
      %59 = tpu.matmul %57, %58, %cst_28 {dimension_numbers = #tpu.dot_dimension_numbers<[1], [0], [0], [1], [0, 0, 1, 1], [], []>} : vector<16x16xbf16>, vector<16x16xbf16>, vector<16x16xf32> -> vector<16x16xf32>
      %60 = arith.addf %56, %59 : vector<16x16xf32>
      %c0_29 = arith.constant 0 : index
      %c0_30 = arith.constant 0 : index
      %c0_31 = arith.constant 0 : index
      %61 = vector.load %arg8[%c0_29, %c0_30, %c0_31] : memref<4x16x16xf32, #tpu.memory_space<vmem>>, vector<1x16x16xf32>
      %62 = vector.shape_cast %61 : vector<1x16x16xf32> to vector<16x16xf32>
      %63 = vector.shape_cast %60 : vector<16x16xf32> to vector<1x16x16xf32>
      tpu.vector_store %arg8[%c0_29, %c0_30, %c0_31], %63 {strides = array<i32>} : memref<4x16x16xf32, #tpu.memory_space<vmem>>, vector<1x16x16xf32>,
      %c0_32 = arith.constant 0 : index
      %c0_33 = arith.constant 0 : index
      %c0_34 = arith.constant 0 : index
      %64 = vector.load %arg6[%c0_32, %c0_33, %c0_34] : memref<4x16x1xf32, #tpu.memory_space<vmem>>, vector<1x16x1xf32>
      %65 = vector.shape_cast %64 : vector<1x16x1xf32> to vector<16x1xf32>
      %66 = vector.shape_cast %38 : vector<16x1xf32> to vector<1x16x1xf32>
      tpu.vector_store %arg6[%c0_32, %c0_33, %c0_34], %66 {strides = array<i32>} : memref<4x16x1xf32, #tpu.memory_space<vmem>>, vector<1x16x1xf32>,
      %67 = vector.extract_strided_slice %13 {offsets = [0, 16], sizes = [16, 16], strides = [1, 1]} : vector<16x64xbf16> to vector<16x16xbf16>
      %68 = vector.extract_strided_slice %15 {offsets = [0, 16], sizes = [16, 16], strides = [1, 1]} : vector<16x64xbf16> to vector<16x16xbf16>
      %cst_35 = arith.constant dense<0.000000e+00> : vector<16x16xf32>
      %69 = tpu.matmul %67, %68, %cst_35 {dimension_numbers = #tpu.dot_dimension_numbers<[1], [1], [0], [0], [0, 0, 1, 0], [], []>} : vector<16x16xbf16>, vector<16x16xbf16>, vector<16x16xf32> -> vector<16x16xf32>
      %cst_36 = arith.constant 0xFF800000 : f32
      %70 = vector.broadcast %cst_36 : f32 to vector<16x16xf32>
      %71 = arith.select %28, %69, %70 : vector<16x16xi1>, vector<16x16xf32>
      %c1 = arith.constant 1 : index
      %c0_37 = arith.constant 0 : index
      %c0_38 = arith.constant 0 : index
      %72 = vector.load %arg6[%c1, %c0_37, %c0_38] : memref<4x16x1xf32, #tpu.memory_space<vmem>>, vector<1x16x1xf32>
      %73 = vector.shape_cast %72 : vector<1x16x1xf32> to vector<16x1xf32>
      %cst_39 = arith.constant dense<0xFF800000> : vector<16xf32>
      %74 = vector.multi_reduction <maximumf>, %71, %cst_39 [1] : vector<16x16xf32> to vector<16xf32>
      %75 = vector.shape_cast %74 : vector<16xf32> to vector<16x1xf32>
      %76 = arith.maximumf %73, %75 : vector<16x1xf32>
      %77 = arith.subf %73, %76 : vector<16x1xf32>
      %78 = math.exp %77 : vector<16x1xf32>
      %79 = vector.broadcast %76 : vector<16x1xf32> to vector<16x16xf32>
      %80 = arith.subf %71, %79 : vector<16x16xf32>
      %81 = math.exp %80 : vector<16x16xf32>
      %c1_40 = arith.constant 1 : index
      %c0_41 = arith.constant 0 : index
      %c0_42 = arith.constant 0 : index
      %82 = vector.load %arg7[%c1_40, %c0_41, %c0_42] : memref<4x16x1xf32, #tpu.memory_space<vmem>>, vector<1x16x1xf32>
      %83 = vector.shape_cast %82 : vector<1x16x1xf32> to vector<16x1xf32>
      %84 = arith.mulf %78, %83 : vector<16x1xf32>
      %cst_43 = arith.constant dense<0.000000e+00> : vector<16xf32>
      %85 = vector.multi_reduction <add>, %81, %cst_43 [1] : vector<16x16xf32> to vector<16xf32>
      %86 = vector.shape_cast %85 : vector<16xf32> to vector<16x1xf32>
      %87 = arith.addf %84, %86 : vector<16x1xf32>
      %c1_44 = arith.constant 1 : index
      %c0_45 = arith.constant 0 : index
      %c0_46 = arith.constant 0 : index
      %88 = vector.load %arg7[%c1_44, %c0_45, %c0_46] : memref<4x16x1xf32, #tpu.memory_space<vmem>>, vector<1x16x1xf32>
      %89 = vector.shape_cast %88 : vector<1x16x1xf32> to vector<16x1xf32>
      %90 = vector.shape_cast %87 : vector<16x1xf32> to vector<1x16x1xf32>
      tpu.vector_store %arg7[%c1_44, %c0_45, %c0_46], %90 {strides = array<i32>} : memref<4x16x1xf32, #tpu.memory_space<vmem>>, vector<1x16x1xf32>,
      %c1_47 = arith.constant 1 : index
      %c0_48 = arith.constant 0 : index
      %c0_49 = arith.constant 0 : index
      %91 = vector.load %arg8[%c1_47, %c0_48, %c0_49] : memref<4x16x16xf32, #tpu.memory_space<vmem>>, vector<1x16x16xf32>
      %92 = vector.shape_cast %91 : vector<1x16x16xf32> to vector<16x16xf32>
      %93 = vector.broadcast %78 : vector<16x1xf32> to vector<16x16xf32>
      %94 = arith.mulf %93, %92 : vector<16x16xf32>
      %95 = arith.truncf %81 : vector<16x16xf32> to vector<16x16xbf16>
      %96 = vector.extract_strided_slice %17 {offsets = [0, 16], sizes = [16, 16], strides = [1, 1]} : vector<16x64xbf16> to vector<16x16xbf16>
      %cst_50 = arith.constant dense<0.000000e+00> : vector<16x16xf32>
      %97 = tpu.matmul %95, %96, %cst_50 {dimension_numbers = #tpu.dot_dimension_numbers<[1], [0], [0], [1], [0, 0, 1, 1], [], []>} : vector<16x16xbf16>, vector<16x16xbf16>, vector<16x16xf32> -> vector<16x16xf32>
      %98 = arith.addf %94, %97 : vector<16x16xf32>
      %c1_51 = arith.constant 1 : index
      %c0_52 = arith.constant 0 : index
      %c0_53 = arith.constant 0 : index
      %99 = vector.load %arg8[%c1_51, %c0_52, %c0_53] : memref<4x16x16xf32, #tpu.memory_space<vmem>>, vector<1x16x16xf32>
      %100 = vector.shape_cast %99 : vector<1x16x16xf32> to vector<16x16xf32>
      %101 = vector.shape_cast %98 : vector<16x16xf32> to vector<1x16x16xf32>
      tpu.vector_store %arg8[%c1_51, %c0_52, %c0_53], %101 {strides = array<i32>} : memref<4x16x16xf32, #tpu.memory_space<vmem>>, vector<1x16x16xf32>,
      %c1_54 = arith.constant 1 : index
      %c0_55 = arith.constant 0 : index
      %c0_56 = arith.constant 0 : index
      %102 = vector.load %arg6[%c1_54, %c0_55, %c0_56] : memref<4x16x1xf32, #tpu.memory_space<vmem>>, vector<1x16x1xf32>
      %103 = vector.shape_cast %102 : vector<1x16x1xf32> to vector<16x1xf32>
      %104 = vector.shape_cast %76 : vector<16x1xf32> to vector<1x16x1xf32>
      tpu.vector_store %arg6[%c1_54, %c0_55, %c0_56], %104 {strides = array<i32>} : memref<4x16x1xf32, #tpu.memory_space<vmem>>, vector<1x16x1xf32>,
      %105 = vector.extract_strided_slice %13 {offsets = [0, 32], sizes = [16, 16], strides = [1, 1]} : vector<16x64xbf16> to vector<16x16xbf16>
      %106 = vector.extract_strided_slice %15 {offsets = [0, 32], sizes = [16, 16], strides = [1, 1]} : vector<16x64xbf16> to vector<16x16xbf16>
      %cst_57 = arith.constant dense<0.000000e+00> : vector<16x16xf32>
      %107 = tpu.matmul %105, %106, %cst_57 {dimension_numbers = #tpu.dot_dimension_numbers<[1], [1], [0], [0], [0, 0, 1, 0], [], []>} : vector<16x16xbf16>, vector<16x16xbf16>, vector<16x16xf32> -> vector<16x16xf32>
      %cst_58 = arith.constant 0xFF800000 : f32
      %108 = vector.broadcast %cst_58 : f32 to vector<16x16xf32>
      %109 = arith.select %28, %107, %108 : vector<16x16xi1>, vector<16x16xf32>
      %c2 = arith.constant 2 : index
      %c0_59 = arith.constant 0 : index
      %c0_60 = arith.constant 0 : index
      %110 = vector.load %arg6[%c2, %c0_59, %c0_60] : memref<4x16x1xf32, #tpu.memory_space<vmem>>, vector<1x16x1xf32>
      %111 = vector.shape_cast %110 : vector<1x16x1xf32> to vector<16x1xf32>
      %cst_61 = arith.constant dense<0xFF800000> : vector<16xf32>
      %112 = vector.multi_reduction <maximumf>, %109, %cst_61 [1] : vector<16x16xf32> to vector<16xf32>
      %113 = vector.shape_cast %112 : vector<16xf32> to vector<16x1xf32>
      %114 = arith.maximumf %111, %113 : vector<16x1xf32>
      %115 = arith.subf %111, %114 : vector<16x1xf32>
      %116 = math.exp %115 : vector<16x1xf32>
      %117 = vector.broadcast %114 : vector<16x1xf32> to vector<16x16xf32>
      %118 = arith.subf %109, %117 : vector<16x16xf32>
      %119 = math.exp %118 : vector<16x16xf32>
      %c2_62 = arith.constant 2 : index
      %c0_63 = arith.constant 0 : index
      %c0_64 = arith.constant 0 : index
      %120 = vector.load %arg7[%c2_62, %c0_63, %c0_64] : memref<4x16x1xf32, #tpu.memory_space<vmem>>, vector<1x16x1xf32>
      %121 = vector.shape_cast %120 : vector<1x16x1xf32> to vector<16x1xf32>
      %122 = arith.mulf %116, %121 : vector<16x1xf32>
      %cst_65 = arith.constant dense<0.000000e+00> : vector<16xf32>
      %123 = vector.multi_reduction <add>, %119, %cst_65 [1] : vector<16x16xf32> to vector<16xf32>
      %124 = vector.shape_cast %123 : vector<16xf32> to vector<16x1xf32>
      %125 = arith.addf %122, %124 : vector<16x1xf32>
      %c2_66 = arith.constant 2 : index
      %c0_67 = arith.constant 0 : index
      %c0_68 = arith.constant 0 : index
      %126 = vector.load %arg7[%c2_66, %c0_67, %c0_68] : memref<4x16x1xf32, #tpu.memory_space<vmem>>, vector<1x16x1xf32>
      %127 = vector.shape_cast %126 : vector<1x16x1xf32> to vector<16x1xf32>
      %128 = vector.shape_cast %125 : vector<16x1xf32> to vector<1x16x1xf32>
      tpu.vector_store %arg7[%c2_66, %c0_67, %c0_68], %128 {strides = array<i32>} : memref<4x16x1xf32, #tpu.memory_space<vmem>>, vector<1x16x1xf32>,
      %c2_69 = arith.constant 2 : index
      %c0_70 = arith.constant 0 : index
      %c0_71 = arith.constant 0 : index
      %129 = vector.load %arg8[%c2_69, %c0_70, %c0_71] : memref<4x16x16xf32, #tpu.memory_space<vmem>>, vector<1x16x16xf32>
      %130 = vector.shape_cast %129 : vector<1x16x16xf32> to vector<16x16xf32>
      %131 = vector.broadcast %116 : vector<16x1xf32> to vector<16x16xf32>
      %132 = arith.mulf %131, %130 : vector<16x16xf32>
      %133 = arith.truncf %119 : vector<16x16xf32> to vector<16x16xbf16>
      %134 = vector.extract_strided_slice %17 {offsets = [0, 32], sizes = [16, 16], strides = [1, 1]} : vector<16x64xbf16> to vector<16x16xbf16>
      %cst_72 = arith.constant dense<0.000000e+00> : vector<16x16xf32>
      %135 = tpu.matmul %133, %134, %cst_72 {dimension_numbers = #tpu.dot_dimension_numbers<[1], [0], [0], [1], [0, 0, 1, 1], [], []>} : vector<16x16xbf16>, vector<16x16xbf16>, vector<16x16xf32> -> vector<16x16xf32>
      %136 = arith.addf %132, %135 : vector<16x16xf32>
      %c2_73 = arith.constant 2 : index
      %c0_74 = arith.constant 0 : index
      %c0_75 = arith.constant 0 : index
      %137 = vector.load %arg8[%c2_73, %c0_74, %c0_75] : memref<4x16x16xf32, #tpu.memory_space<vmem>>, vector<1x16x16xf32>
      %138 = vector.shape_cast %137 : vector<1x16x16xf32> to vector<16x16xf32>
      %139 = vector.shape_cast %136 : vector<16x16xf32> to vector<1x16x16xf32>
      tpu.vector_store %arg8[%c2_73, %c0_74, %c0_75], %139 {strides = array<i32>} : memref<4x16x16xf32, #tpu.memory_space<vmem>>, vector<1x16x16xf32>,
      %c2_76 = arith.constant 2 : index
      %c0_77 = arith.constant 0 : index
      %c0_78 = arith.constant 0 : index
      %140 = vector.load %arg6[%c2_76, %c0_77, %c0_78] : memref<4x16x1xf32, #tpu.memory_space<vmem>>, vector<1x16x1xf32>
      %141 = vector.shape_cast %140 : vector<1x16x1xf32> to vector<16x1xf32>
      %142 = vector.shape_cast %114 : vector<16x1xf32> to vector<1x16x1xf32>
      tpu.vector_store %arg6[%c2_76, %c0_77, %c0_78], %142 {strides = array<i32>} : memref<4x16x1xf32, #tpu.memory_space<vmem>>, vector<1x16x1xf32>,
      %143 = vector.extract_strided_slice %13 {offsets = [0, 48], sizes = [16, 16], strides = [1, 1]} : vector<16x64xbf16> to vector<16x16xbf16>
      %144 = vector.extract_strided_slice %15 {offsets = [0, 48], sizes = [16, 16], strides = [1, 1]} : vector<16x64xbf16> to vector<16x16xbf16>
      %cst_79 = arith.constant dense<0.000000e+00> : vector<16x16xf32>
      %145 = tpu.matmul %143, %144, %cst_79 {dimension_numbers = #tpu.dot_dimension_numbers<[1], [1], [0], [0], [0, 0, 1, 0], [], []>} : vector<16x16xbf16>, vector<16x16xbf16>, vector<16x16xf32> -> vector<16x16xf32>
      %cst_80 = arith.constant 0xFF800000 : f32
      %146 = vector.broadcast %cst_80 : f32 to vector<16x16xf32>
      %147 = arith.select %28, %145, %146 : vector<16x16xi1>, vector<16x16xf32>
      %c3 = arith.constant 3 : index
      %c0_81 = arith.constant 0 : index
      %c0_82 = arith.constant 0 : index
      %148 = vector.load %arg6[%c3, %c0_81, %c0_82] : memref<4x16x1xf32, #tpu.memory_space<vmem>>, vector<1x16x1xf32>
      %149 = vector.shape_cast %148 : vector<1x16x1xf32> to vector<16x1xf32>
      %cst_83 = arith.constant dense<0xFF800000> : vector<16xf32>
      %150 = vector.multi_reduction <maximumf>, %147, %cst_83 [1] : vector<16x16xf32> to vector<16xf32>
      %151 = vector.shape_cast %150 : vector<16xf32> to vector<16x1xf32>
      %152 = arith.maximumf %149, %151 : vector<16x1xf32>
      %153 = arith.subf %149, %152 : vector<16x1xf32>
      %154 = math.exp %153 : vector<16x1xf32>
      %155 = vector.broadcast %152 : vector<16x1xf32> to vector<16x16xf32>
      %156 = arith.subf %147, %155 : vector<16x16xf32>
      %157 = math.exp %156 : vector<16x16xf32>
      %c3_84 = arith.constant 3 : index
      %c0_85 = arith.constant 0 : index
      %c0_86 = arith.constant 0 : index
      %158 = vector.load %arg7[%c3_84, %c0_85, %c0_86] : memref<4x16x1xf32, #tpu.memory_space<vmem>>, vector<1x16x1xf32>
      %159 = vector.shape_cast %158 : vector<1x16x1xf32> to vector<16x1xf32>
      %160 = arith.mulf %154, %159 : vector<16x1xf32>
      %cst_87 = arith.constant dense<0.000000e+00> : vector<16xf32>
      %161 = vector.multi_reduction <add>, %157, %cst_87 [1] : vector<16x16xf32> to vector<16xf32>
      %162 = vector.shape_cast %161 : vector<16xf32> to vector<16x1xf32>
      %163 = arith.addf %160, %162 : vector<16x1xf32>
      %c3_88 = arith.constant 3 : index
      %c0_89 = arith.constant 0 : index
      %c0_90 = arith.constant 0 : index
      %164 = vector.load %arg7[%c3_88, %c0_89, %c0_90] : memref<4x16x1xf32, #tpu.memory_space<vmem>>, vector<1x16x1xf32>
      %165 = vector.shape_cast %164 : vector<1x16x1xf32> to vector<16x1xf32>
      %166 = vector.shape_cast %163 : vector<16x1xf32> to vector<1x16x1xf32>
      tpu.vector_store %arg7[%c3_88, %c0_89, %c0_90], %166 {strides = array<i32>} : memref<4x16x1xf32, #tpu.memory_space<vmem>>, vector<1x16x1xf32>,
      %c3_91 = arith.constant 3 : index
      %c0_92 = arith.constant 0 : index
      %c0_93 = arith.constant 0 : index
      %167 = vector.load %arg8[%c3_91, %c0_92, %c0_93] : memref<4x16x16xf32, #tpu.memory_space<vmem>>, vector<1x16x16xf32>
      %168 = vector.shape_cast %167 : vector<1x16x16xf32> to vector<16x16xf32>
      %169 = vector.broadcast %154 : vector<16x1xf32> to vector<16x16xf32>
      %170 = arith.mulf %169, %168 : vector<16x16xf32>
      %171 = arith.truncf %157 : vector<16x16xf32> to vector<16x16xbf16>
      %172 = vector.extract_strided_slice %17 {offsets = [0, 48], sizes = [16, 16], strides = [1, 1]} : vector<16x64xbf16> to vector<16x16xbf16>
      %cst_94 = arith.constant dense<0.000000e+00> : vector<16x16xf32>
      %173 = tpu.matmul %171, %172, %cst_94 {dimension_numbers = #tpu.dot_dimension_numbers<[1], [0], [0], [1], [0, 0, 1, 1], [], []>} : vector<16x16xbf16>, vector<16x16xbf16>, vector<16x16xf32> -> vector<16x16xf32>
      %174 = arith.addf %170, %173 : vector<16x16xf32>
      %c3_95 = arith.constant 3 : index
      %c0_96 = arith.constant 0 : index
      %c0_97 = arith.constant 0 : index
      %175 = vector.load %arg8[%c3_95, %c0_96, %c0_97] : memref<4x16x16xf32, #tpu.memory_space<vmem>>, vector<1x16x16xf32>
      %176 = vector.shape_cast %175 : vector<1x16x16xf32> to vector<16x16xf32>
      %177 = vector.shape_cast %174 : vector<16x16xf32> to vector<1x16x16xf32>
      tpu.vector_store %arg8[%c3_95, %c0_96, %c0_97], %177 {strides = array<i32>} : memref<4x16x16xf32, #tpu.memory_space<vmem>>, vector<1x16x16xf32>,
      %c3_98 = arith.constant 3 : index
      %c0_99 = arith.constant 0 : index
      %c0_100 = arith.constant 0 : index
      %178 = vector.load %arg6[%c3_98, %c0_99, %c0_100] : memref<4x16x1xf32, #tpu.memory_space<vmem>>, vector<1x16x1xf32>
      %179 = vector.shape_cast %178 : vector<1x16x1xf32> to vector<16x1xf32>
      %180 = vector.shape_cast %152 : vector<16x1xf32> to vector<1x16x1xf32>
      tpu.vector_store %arg6[%c3_98, %c0_99, %c0_100], %180 {strides = array<i32>} : memref<4x16x1xf32, #tpu.memory_space<vmem>>, vector<1x16x1xf32>,
    } else {
    }
    %c0_i32_3 = arith.constant 0 : i32
    %9 = arith.cmpi eq, %arg2, %c0_i32_3 : i32
    %10 = arith.extui %9 : i1 to i32
    %c0_i32_4 = arith.constant 0 : i32
    %11 = arith.cmpi ne, %10, %c0_i32_4 : i32
    scf.if %11 {
      %c0 = arith.constant 0 : index
      %c0_5 = arith.constant 0 : index
      %c0_6 = arith.constant 0 : index
      %12 = vector.load %arg8[%c0, %c0_5, %c0_6] : memref<4x16x16xf32, #tpu.memory_space<vmem>>, vector<1x16x16xf32>
      %13 = vector.shape_cast %12 : vector<1x16x16xf32> to vector<16x16xf32>
      %c0_7 = arith.constant 0 : index
      %c0_8 = arith.constant 0 : index
      %c0_9 = arith.constant 0 : index
      %14 = vector.load %arg7[%c0_7, %c0_8, %c0_9] : memref<4x16x1xf32, #tpu.memory_space<vmem>>, vector<1x16x1xf32>
      %15 = vector.shape_cast %14 : vector<1x16x1xf32> to vector<16x1xf32>
      %16 = tpu.reciprocal %15 {approx = true} : vector<16x1xf32> -> vector<16x1xf32>
      %17 = vector.broadcast %16 : vector<16x1xf32> to vector<16x16xf32>
      %18 = arith.mulf %13, %17 : vector<16x16xf32>
      %c1 = arith.constant 1 : index
      %c0_10 = arith.constant 0 : index
      %c0_11 = arith.constant 0 : index
      %19 = vector.load %arg8[%c1, %c0_10, %c0_11] : memref<4x16x16xf32, #tpu.memory_space<vmem>>, vector<1x16x16xf32>
      %20 = vector.shape_cast %19 : vector<1x16x16xf32> to vector<16x16xf32>
      %c1_12 = arith.constant 1 : index
      %c0_13 = arith.constant 0 : index
      %c0_14 = arith.constant 0 : index
      %21 = vector.load %arg7[%c1_12, %c0_13, %c0_14] : memref<4x16x1xf32, #tpu.memory_space<vmem>>, vector<1x16x1xf32>
      %22 = vector.shape_cast %21 : vector<1x16x1xf32> to vector<16x1xf32>
      %23 = tpu.reciprocal %22 {approx = true} : vector<16x1xf32> -> vector<16x1xf32>
      %24 = vector.broadcast %23 : vector<16x1xf32> to vector<16x16xf32>
      %25 = arith.mulf %20, %24 : vector<16x16xf32>
      %c2 = arith.constant 2 : index
      %c0_15 = arith.constant 0 : index
      %c0_16 = arith.constant 0 : index
      %26 = vector.load %arg8[%c2, %c0_15, %c0_16] : memref<4x16x16xf32, #tpu.memory_space<vmem>>, vector<1x16x16xf32>
      %27 = vector.shape_cast %26 : vector<1x16x16xf32> to vector<16x16xf32>
      %c2_17 = arith.constant 2 : index
      %c0_18 = arith.constant 0 : index
      %c0_19 = arith.constant 0 : index
      %28 = vector.load %arg7[%c2_17, %c0_18, %c0_19] : memref<4x16x1xf32, #tpu.memory_space<vmem>>, vector<1x16x1xf32>
      %29 = vector.shape_cast %28 : vector<1x16x1xf32> to vector<16x1xf32>
      %30 = tpu.reciprocal %29 {approx = true} : vector<16x1xf32> -> vector<16x1xf32>
      %31 = vector.broadcast %30 : vector<16x1xf32> to vector<16x16xf32>
      %32 = arith.mulf %27, %31 : vector<16x16xf32>
      %c3 = arith.constant 3 : index
      %c0_20 = arith.constant 0 : index
      %c0_21 = arith.constant 0 : index
      %33 = vector.load %arg8[%c3, %c0_20, %c0_21] : memref<4x16x16xf32, #tpu.memory_space<vmem>>, vector<1x16x16xf32>
      %34 = vector.shape_cast %33 : vector<1x16x16xf32> to vector<16x16xf32>
      %c3_22 = arith.constant 3 : index
      %c0_23 = arith.constant 0 : index
      %c0_24 = arith.constant 0 : index
      %35 = vector.load %arg7[%c3_22, %c0_23, %c0_24] : memref<4x16x1xf32, #tpu.memory_space<vmem>>, vector<1x16x1xf32>
      %36 = vector.shape_cast %35 : vector<1x16x1xf32> to vector<16x1xf32>
      %37 = tpu.reciprocal %36 {approx = true} : vector<16x1xf32> -> vector<16x1xf32>
      %38 = vector.broadcast %37 : vector<16x1xf32> to vector<16x16xf32>
      %39 = arith.mulf %34, %38 : vector<16x16xf32>
      %40 = tpu.concatenate %18, %25, %32, %39 in 1 : vector<16x16xf32>, vector<16x16xf32>, vector<16x16xf32>, vector<16x16xf32> -> vector<16x64xf32>
      %41 = arith.truncf %40 : vector<16x64xf32> to vector<16x64xbf16>
      %c0_25 = arith.constant 0 : index
      %c0_26 = arith.constant 0 : index
      %c0_27 = arith.constant 0 : index
      %42 = vector.load %arg5[%c0_25, %c0_26, %c0_27] : memref<1x16x64xbf16, #tpu.memory_space<vmem>>, vector<1x16x64xbf16>
      %43 = vector.shape_cast %42 : vector<1x16x64xbf16> to vector<16x64xbf16>
      %44 = vector.shape_cast %41 : vector<16x64xbf16> to vector<1x16x64xbf16>
      tpu.vector_store %arg5[%c0_25, %c0_26, %c0_27], %44 {strides = array<i32>} : memref<1x16x64xbf16, #tpu.memory_space<vmem>>, vector<1x16x64xbf16>,
    } else {
    }
    return
  }
  func.func @transform_0(%arg0: i32, %arg1: i32, %arg2: i32) -> (i32, i32, i32) {
    %c0_i32 = arith.constant 0 : i32
    %c0_i32_0 = arith.constant 0 : i32
    return %arg0, %arg1, %c0_i32 : i32, i32, i32
  }
  func.func @transform_1(%arg0: i32, %arg1: i32, %arg2: i32) -> (i32, i32, i32) {
    %c0_i32 = arith.constant 0 : i32
    %c0_i32_0 = arith.constant 0 : i32
    return %arg0, %arg2, %c0_i32 : i32, i32, i32
  }
  func.func @transform_2(%arg0: i32, %arg1: i32, %arg2: i32) -> (i32, i32, i32) {
    %c0_i32 = arith.constant 0 : i32
    %c0_i32_0 = arith.constant 0 : i32
    return %arg0, %arg1, %c0_i32 : i32, i32, i32
  }
}

module attributes {stable_mosaic.version = 11 : i64} {
  func.func @_matmul_res_kernel(%arg0: i32, %arg1: i32, %arg2: i32, %arg3: memref<32x64xbf16, #tpu.memory_space<vmem>>, %arg4: memref<64x64xbf16, #tpu.memory_space<vmem>>, %arg5: memref<1x64xf32, #tpu.memory_space<vmem>>, %arg6: memref<32x64xbf16, #tpu.memory_space<vmem>>, %arg7: memref<32x64xbf16, #tpu.memory_space<vmem>>, %arg8: memref<32x64xf32, #tpu.memory_space<vmem>>) attributes {dimension_semantics = [#tpu.dimension_semantics<parallel>, #tpu.dimension_semantics<parallel>, #tpu.dimension_semantics<arbitrary>], iteration_bounds = array<i64: 1, 1, 1>, scalar_prefetch = 0 : i64, scratch_operands = 1 : i64, tpu.core_type = #tpu.core_type<tc>, window_params = [{transform_indices = @transform_0, window_bounds = array<i64: 32, 64>}, {transform_indices = @transform_1, window_bounds = array<i64: 64, 64>}, {transform_indices = @transform_2, window_bounds = array<i64: 1, 64>}, {transform_indices = @transform_3, window_bounds = array<i64: 32, 64>}, {transform_indices = @transform_4, window_bounds = array<i64: 32, 64>}]} {
    %c0_i32 = arith.constant 0 : i32
    %0 = arith.cmpi eq, %arg2, %c0_i32 : i32
    %1 = arith.extui %0 : i1 to i32
    %c0_i32_0 = arith.constant 0 : i32
    %2 = arith.cmpi ne, %1, %c0_i32_0 : i32
    scf.if %2 {
      %cst_10 = arith.constant 0.000000e+00 : f32
      %12 = vector.broadcast %cst_10 : f32 to vector<32x64xf32>
      %c0_11 = arith.constant 0 : index
      %c0_12 = arith.constant 0 : index
      %13 = vector.load %arg8[%c0_11, %c0_12] : memref<32x64xf32, #tpu.memory_space<vmem>>, vector<32x64xf32>
      tpu.vector_store %arg8[%c0_11, %c0_12], %12 {strides = array<i32>} : memref<32x64xf32, #tpu.memory_space<vmem>>, vector<32x64xf32>,
    } else {
    }
    %c0 = arith.constant 0 : index
    %c0_1 = arith.constant 0 : index
    %3 = vector.load %arg8[%c0, %c0_1] : memref<32x64xf32, #tpu.memory_space<vmem>>, vector<32x64xf32>
    %c0_2 = arith.constant 0 : index
    %c0_3 = arith.constant 0 : index
    %4 = vector.load %arg3[%c0_2, %c0_3] : memref<32x64xbf16, #tpu.memory_space<vmem>>, vector<32x64xbf16>
    %c0_4 = arith.constant 0 : index
    %c0_5 = arith.constant 0 : index
    %5 = vector.load %arg4[%c0_4, %c0_5] : memref<64x64xbf16, #tpu.memory_space<vmem>>, vector<64x64xbf16>
    %cst = arith.constant dense<0.000000e+00> : vector<32x64xf32>
    %6 = tpu.matmul %4, %5, %cst {dimension_numbers = #tpu.dot_dimension_numbers<[1], [0], [0], [1], [0, 0, 1, 1], [], []>} : vector<32x64xbf16>, vector<64x64xbf16>, vector<32x64xf32> -> vector<32x64xf32>
    %7 = arith.addf %3, %6 : vector<32x64xf32>
    %c0_6 = arith.constant 0 : index
    %c0_7 = arith.constant 0 : index
    %8 = vector.load %arg8[%c0_6, %c0_7] : memref<32x64xf32, #tpu.memory_space<vmem>>, vector<32x64xf32>
    tpu.vector_store %arg8[%c0_6, %c0_7], %7 {strides = array<i32>} : memref<32x64xf32, #tpu.memory_space<vmem>>, vector<32x64xf32>,
    %c0_i32_8 = arith.constant 0 : i32
    %9 = arith.cmpi eq, %arg2, %c0_i32_8 : i32
    %10 = arith.extui %9 : i1 to i32
    %c0_i32_9 = arith.constant 0 : i32
    %11 = arith.cmpi ne, %10, %c0_i32_9 : i32
    scf.if %11 {
      %c0_10 = arith.constant 0 : index
      %c0_11 = arith.constant 0 : index
      %12 = vector.load %arg8[%c0_10, %c0_11] : memref<32x64xf32, #tpu.memory_space<vmem>>, vector<32x64xf32>
      %c0_12 = arith.constant 0 : index
      %c0_13 = arith.constant 0 : index
      %13 = vector.load %arg5[%c0_12, %c0_13] : memref<1x64xf32, #tpu.memory_space<vmem>>, vector<1x64xf32>
      %14 = vector.broadcast %13 : vector<1x64xf32> to vector<32x64xf32>
      %15 = arith.addf %12, %14 : vector<32x64xf32>
      %c0_14 = arith.constant 0 : index
      %c0_15 = arith.constant 0 : index
      %16 = vector.load %arg6[%c0_14, %c0_15] : memref<32x64xbf16, #tpu.memory_space<vmem>>, vector<32x64xbf16>
      %17 = arith.extf %16 : vector<32x64xbf16> to vector<32x64xf32>
      %18 = arith.addf %15, %17 : vector<32x64xf32>
      %19 = arith.truncf %18 : vector<32x64xf32> to vector<32x64xbf16>
      %c0_16 = arith.constant 0 : index
      %c0_17 = arith.constant 0 : index
      %20 = vector.load %arg7[%c0_16, %c0_17] : memref<32x64xbf16, #tpu.memory_space<vmem>>, vector<32x64xbf16>
      tpu.vector_store %arg7[%c0_16, %c0_17], %19 {strides = array<i32>} : memref<32x64xbf16, #tpu.memory_space<vmem>>, vector<32x64xbf16>,
    } else {
    }
    return
  }
  func.func @transform_0(%arg0: i32, %arg1: i32, %arg2: i32) -> (i32, i32) {
    %c0_i32 = arith.constant 0 : i32
    return %arg0, %arg2 : i32, i32
  }
  func.func @transform_1(%arg0: i32, %arg1: i32, %arg2: i32) -> (i32, i32) {
    %c0_i32 = arith.constant 0 : i32
    return %arg2, %arg1 : i32, i32
  }
  func.func @transform_2(%arg0: i32, %arg1: i32, %arg2: i32) -> (i32, i32) {
    %c0_i32 = arith.constant 0 : i32
    %c0_i32_0 = arith.constant 0 : i32
    return %c0_i32, %arg1 : i32, i32
  }
  func.func @transform_3(%arg0: i32, %arg1: i32, %arg2: i32) -> (i32, i32) {
    %c0_i32 = arith.constant 0 : i32
    return %arg0, %arg1 : i32, i32
  }
  func.func @transform_4(%arg0: i32, %arg1: i32, %arg2: i32) -> (i32, i32) {
    %c0_i32 = arith.constant 0 : i32
    return %arg0, %arg1 : i32, i32
  }
}

module attributes {stable_mosaic.version = 11 : i64} {
  func.func @_ln_matmul_kernel(%arg0: i32, %arg1: i32, %arg2: memref<32x64xbf16, #tpu.memory_space<vmem>>, %arg3: memref<1x64xf32, #tpu.memory_space<vmem>>, %arg4: memref<1x64xf32, #tpu.memory_space<vmem>>, %arg5: memref<64x256xbf16, #tpu.memory_space<vmem>>, %arg6: memref<1x256xf32, #tpu.memory_space<vmem>>, %arg7: memref<32x256xbf16, #tpu.memory_space<vmem>>, %arg8: memref<32x64xbf16, #tpu.memory_space<vmem>>) attributes {dimension_semantics = [#tpu.dimension_semantics<parallel>, #tpu.dimension_semantics<arbitrary>], iteration_bounds = array<i64: 1, 1>, scalar_prefetch = 0 : i64, scratch_operands = 1 : i64, tpu.core_type = #tpu.core_type<tc>, window_params = [{transform_indices = @transform_0, window_bounds = array<i64: 32, 64>}, {pipeline_mode = #tpu.pipeline_mode<synchronous>, transform_indices = @transform_1, window_bounds = array<i64: 1, 64>}, {pipeline_mode = #tpu.pipeline_mode<synchronous>, transform_indices = @transform_2, window_bounds = array<i64: 1, 64>}, {transform_indices = @transform_3, window_bounds = array<i64: 64, 256>}, {transform_indices = @transform_4, window_bounds = array<i64: 1, 256>}, {transform_indices = @transform_5, window_bounds = array<i64: 32, 256>}]} {
    %c0_i32 = arith.constant 0 : i32
    %0 = arith.cmpi eq, %arg1, %c0_i32 : i32
    %1 = arith.extui %0 : i1 to i32
    %c0_i32_0 = arith.constant 0 : i32
    %2 = arith.cmpi ne, %1, %c0_i32_0 : i32
    scf.if %2 {
      %c0_12 = arith.constant 0 : index
      %c0_13 = arith.constant 0 : index
      %24 = vector.load %arg2[%c0_12, %c0_13] : memref<32x64xbf16, #tpu.memory_space<vmem>>, vector<32x64xbf16>
      %25 = arith.extf %24 : vector<32x64xbf16> to vector<32x64xf32>
      %cst_14 = arith.constant dense<0.000000e+00> : vector<32xf32>
      %26 = vector.multi_reduction <add>, %25, %cst_14 [1] : vector<32x64xf32> to vector<32xf32>
      %27 = vector.shape_cast %26 : vector<32xf32> to vector<32x1xf32>
      %cst_15 = arith.constant 6.400000e+01 : f32
      %28 = vector.broadcast %cst_15 : f32 to vector<32x1xf32>
      %29 = arith.divf %27, %28 : vector<32x1xf32>
      %30 = vector.broadcast %29 : vector<32x1xf32> to vector<32x64xf32>
      %31 = arith.subf %25, %30 : vector<32x64xf32>
      %32 = arith.mulf %31, %31 : vector<32x64xf32>
      %cst_16 = arith.constant dense<0.000000e+00> : vector<32xf32>
      %33 = vector.multi_reduction <add>, %32, %cst_16 [1] : vector<32x64xf32> to vector<32xf32>
      %34 = vector.shape_cast %33 : vector<32xf32> to vector<32x1xf32>
      %cst_17 = arith.constant 6.400000e+01 : f32
      %35 = vector.broadcast %cst_17 : f32 to vector<32x1xf32>
      %36 = arith.divf %34, %35 : vector<32x1xf32>
      %cst_18 = arith.constant 9.99999974E-6 : f32
      %37 = vector.broadcast %cst_18 : f32 to vector<32x1xf32>
      %38 = arith.addf %36, %37 : vector<32x1xf32>
      %39 = math.rsqrt %38 : vector<32x1xf32>
      %40 = vector.broadcast %39 : vector<32x1xf32> to vector<32x64xf32>
      %41 = arith.mulf %31, %40 : vector<32x64xf32>
      %c0_19 = arith.constant 0 : index
      %c0_20 = arith.constant 0 : index
      %42 = vector.load %arg3[%c0_19, %c0_20] : memref<1x64xf32, #tpu.memory_space<vmem>>, vector<1x64xf32>
      %43 = vector.broadcast %42 : vector<1x64xf32> to vector<32x64xf32>
      %44 = arith.mulf %41, %43 : vector<32x64xf32>
      %c0_21 = arith.constant 0 : index
      %c0_22 = arith.constant 0 : index
      %45 = vector.load %arg4[%c0_21, %c0_22] : memref<1x64xf32, #tpu.memory_space<vmem>>, vector<1x64xf32>
      %46 = vector.broadcast %45 : vector<1x64xf32> to vector<32x64xf32>
      %47 = arith.addf %44, %46 : vector<32x64xf32>
      %48 = arith.truncf %47 : vector<32x64xf32> to vector<32x64xbf16>
      %c0_23 = arith.constant 0 : index
      %c0_24 = arith.constant 0 : index
      %49 = vector.load %arg8[%c0_23, %c0_24] : memref<32x64xbf16, #tpu.memory_space<vmem>>, vector<32x64xbf16>
      tpu.vector_store %arg8[%c0_23, %c0_24], %48 {strides = array<i32>} : memref<32x64xbf16, #tpu.memory_space<vmem>>, vector<32x64xbf16>,
    } else {
    }
    %c0 = arith.constant 0 : index
    %c0_1 = arith.constant 0 : index
    %3 = vector.load %arg8[%c0, %c0_1] : memref<32x64xbf16, #tpu.memory_space<vmem>>, vector<32x64xbf16>
    %c0_2 = arith.constant 0 : index
    %c0_3 = arith.constant 0 : index
    %4 = vector.load %arg5[%c0_2, %c0_3] : memref<64x256xbf16, #tpu.memory_space<vmem>>, vector<64x256xbf16>
    %cst = arith.constant dense<0.000000e+00> : vector<32x256xf32>
    %5 = tpu.matmul %3, %4, %cst {dimension_numbers = #tpu.dot_dimension_numbers<[1], [0], [0], [1], [0, 0, 1, 1], [], []>} : vector<32x64xbf16>, vector<64x256xbf16>, vector<32x256xf32> -> vector<32x256xf32>
    %c0_4 = arith.constant 0 : index
    %c0_5 = arith.constant 0 : index
    %6 = vector.load %arg6[%c0_4, %c0_5] : memref<1x256xf32, #tpu.memory_space<vmem>>, vector<1x256xf32>
    %7 = vector.broadcast %6 : vector<1x256xf32> to vector<32x256xf32>
    %8 = arith.addf %5, %7 : vector<32x256xf32>
    %cst_6 = arith.constant 5.000000e-01 : f32
    %9 = vector.broadcast %cst_6 : f32 to vector<32x256xf32>
    %10 = arith.mulf %9, %8 : vector<32x256xf32>
    %cst_7 = arith.constant 4.471500e-02 : f32
    %11 = vector.broadcast %cst_7 : f32 to vector<32x256xf32>
    %12 = arith.mulf %11, %8 : vector<32x256xf32>
    %13 = arith.mulf %12, %8 : vector<32x256xf32>
    %14 = arith.mulf %13, %8 : vector<32x256xf32>
    %15 = arith.addf %8, %14 : vector<32x256xf32>
    %cst_8 = arith.constant 0.797884583 : f32
    %16 = vector.broadcast %cst_8 : f32 to vector<32x256xf32>
    %17 = arith.mulf %16, %15 : vector<32x256xf32>
    %18 = math.tanh %17 : vector<32x256xf32>
    %cst_9 = arith.constant 1.000000e+00 : f32
    %19 = vector.broadcast %cst_9 : f32 to vector<32x256xf32>
    %20 = arith.addf %19, %18 : vector<32x256xf32>
    %21 = arith.mulf %10, %20 : vector<32x256xf32>
    %22 = arith.truncf %21 : vector<32x256xf32> to vector<32x256xbf16>
    %c0_10 = arith.constant 0 : index
    %c0_11 = arith.constant 0 : index
    %23 = vector.load %arg7[%c0_10, %c0_11] : memref<32x256xbf16, #tpu.memory_space<vmem>>, vector<32x256xbf16>
    tpu.vector_store %arg7[%c0_10, %c0_11], %22 {strides = array<i32>} : memref<32x256xbf16, #tpu.memory_space<vmem>>, vector<32x256xbf16>,
    return
  }
  func.func @transform_0(%arg0: i32, %arg1: i32) -> (i32, i32) {
    %c0_i32 = arith.constant 0 : i32
    %c0_i32_0 = arith.constant 0 : i32
    return %arg0, %c0_i32 : i32, i32
  }
  func.func @transform_1(%arg0: i32, %arg1: i32) -> (i32, i32) {
    %c0_i32 = arith.constant 0 : i32
    %c0_i32_0 = arith.constant 0 : i32
    %c0_i32_1 = arith.constant 0 : i32
    return %c0_i32, %c0_i32_0 : i32, i32
  }
  func.func @transform_2(%arg0: i32, %arg1: i32) -> (i32, i32) {
    %c0_i32 = arith.constant 0 : i32
    %c0_i32_0 = arith.constant 0 : i32
    %c0_i32_1 = arith.constant 0 : i32
    return %c0_i32, %c0_i32_0 : i32, i32
  }
  func.func @transform_3(%arg0: i32, %arg1: i32) -> (i32, i32) {
    %c0_i32 = arith.constant 0 : i32
    %c0_i32_0 = arith.constant 0 : i32
    return %c0_i32, %arg1 : i32, i32
  }
  func.func @transform_4(%arg0: i32, %arg1: i32) -> (i32, i32) {
    %c0_i32 = arith.constant 0 : i32
    %c0_i32_0 = arith.constant 0 : i32
    return %c0_i32, %arg1 : i32, i32
  }
  func.func @transform_5(%arg0: i32, %arg1: i32) -> (i32, i32) {
    %c0_i32 = arith.constant 0 : i32
    return %arg0, %arg1 : i32, i32
  }
}

module attributes {stable_mosaic.version = 11 : i64} {
  func.func @_matmul_res_kernel(%arg0: i32, %arg1: i32, %arg2: i32, %arg3: memref<32x256xbf16, #tpu.memory_space<vmem>>, %arg4: memref<256x64xbf16, #tpu.memory_space<vmem>>, %arg5: memref<1x64xf32, #tpu.memory_space<vmem>>, %arg6: memref<32x64xbf16, #tpu.memory_space<vmem>>, %arg7: memref<32x64xbf16, #tpu.memory_space<vmem>>, %arg8: memref<32x64xf32, #tpu.memory_space<vmem>>) attributes {dimension_semantics = [#tpu.dimension_semantics<parallel>, #tpu.dimension_semantics<parallel>, #tpu.dimension_semantics<arbitrary>], iteration_bounds = array<i64: 1, 1, 1>, scalar_prefetch = 0 : i64, scratch_operands = 1 : i64, tpu.core_type = #tpu.core_type<tc>, window_params = [{transform_indices = @transform_0, window_bounds = array<i64: 32, 256>}, {transform_indices = @transform_1, window_bounds = array<i64: 256, 64>}, {transform_indices = @transform_2, window_bounds = array<i64: 1, 64>}, {transform_indices = @transform_3, window_bounds = array<i64: 32, 64>}, {transform_indices = @transform_4, window_bounds = array<i64: 32, 64>}]} {
    %c0_i32 = arith.constant 0 : i32
    %0 = arith.cmpi eq, %arg2, %c0_i32 : i32
    %1 = arith.extui %0 : i1 to i32
    %c0_i32_0 = arith.constant 0 : i32
    %2 = arith.cmpi ne, %1, %c0_i32_0 : i32
    scf.if %2 {
      %cst_10 = arith.constant 0.000000e+00 : f32
      %12 = vector.broadcast %cst_10 : f32 to vector<32x64xf32>
      %c0_11 = arith.constant 0 : index
      %c0_12 = arith.constant 0 : index
      %13 = vector.load %arg8[%c0_11, %c0_12] : memref<32x64xf32, #tpu.memory_space<vmem>>, vector<32x64xf32>
      tpu.vector_store %arg8[%c0_11, %c0_12], %12 {strides = array<i32>} : memref<32x64xf32, #tpu.memory_space<vmem>>, vector<32x64xf32>,
    } else {
    }
    %c0 = arith.constant 0 : index
    %c0_1 = arith.constant 0 : index
    %3 = vector.load %arg8[%c0, %c0_1] : memref<32x64xf32, #tpu.memory_space<vmem>>, vector<32x64xf32>
    %c0_2 = arith.constant 0 : index
    %c0_3 = arith.constant 0 : index
    %4 = vector.load %arg3[%c0_2, %c0_3] : memref<32x256xbf16, #tpu.memory_space<vmem>>, vector<32x256xbf16>
    %c0_4 = arith.constant 0 : index
    %c0_5 = arith.constant 0 : index
    %5 = vector.load %arg4[%c0_4, %c0_5] : memref<256x64xbf16, #tpu.memory_space<vmem>>, vector<256x64xbf16>
    %cst = arith.constant dense<0.000000e+00> : vector<32x64xf32>
    %6 = tpu.matmul %4, %5, %cst {dimension_numbers = #tpu.dot_dimension_numbers<[1], [0], [0], [1], [0, 0, 1, 1], [], []>} : vector<32x256xbf16>, vector<256x64xbf16>, vector<32x64xf32> -> vector<32x64xf32>
    %7 = arith.addf %3, %6 : vector<32x64xf32>
    %c0_6 = arith.constant 0 : index
    %c0_7 = arith.constant 0 : index
    %8 = vector.load %arg8[%c0_6, %c0_7] : memref<32x64xf32, #tpu.memory_space<vmem>>, vector<32x64xf32>
    tpu.vector_store %arg8[%c0_6, %c0_7], %7 {strides = array<i32>} : memref<32x64xf32, #tpu.memory_space<vmem>>, vector<32x64xf32>,
    %c0_i32_8 = arith.constant 0 : i32
    %9 = arith.cmpi eq, %arg2, %c0_i32_8 : i32
    %10 = arith.extui %9 : i1 to i32
    %c0_i32_9 = arith.constant 0 : i32
    %11 = arith.cmpi ne, %10, %c0_i32_9 : i32
    scf.if %11 {
      %c0_10 = arith.constant 0 : index
      %c0_11 = arith.constant 0 : index
      %12 = vector.load %arg8[%c0_10, %c0_11] : memref<32x64xf32, #tpu.memory_space<vmem>>, vector<32x64xf32>
      %c0_12 = arith.constant 0 : index
      %c0_13 = arith.constant 0 : index
      %13 = vector.load %arg5[%c0_12, %c0_13] : memref<1x64xf32, #tpu.memory_space<vmem>>, vector<1x64xf32>
      %14 = vector.broadcast %13 : vector<1x64xf32> to vector<32x64xf32>
      %15 = arith.addf %12, %14 : vector<32x64xf32>
      %c0_14 = arith.constant 0 : index
      %c0_15 = arith.constant 0 : index
      %16 = vector.load %arg6[%c0_14, %c0_15] : memref<32x64xbf16, #tpu.memory_space<vmem>>, vector<32x64xbf16>
      %17 = arith.extf %16 : vector<32x64xbf16> to vector<32x64xf32>
      %18 = arith.addf %15, %17 : vector<32x64xf32>
      %19 = arith.truncf %18 : vector<32x64xf32> to vector<32x64xbf16>
      %c0_16 = arith.constant 0 : index
      %c0_17 = arith.constant 0 : index
      %20 = vector.load %arg7[%c0_16, %c0_17] : memref<32x64xbf16, #tpu.memory_space<vmem>>, vector<32x64xbf16>
      tpu.vector_store %arg7[%c0_16, %c0_17], %19 {strides = array<i32>} : memref<32x64xbf16, #tpu.memory_space<vmem>>, vector<32x64xbf16>,
    } else {
    }
    return
  }
  func.func @transform_0(%arg0: i32, %arg1: i32, %arg2: i32) -> (i32, i32) {
    %c0_i32 = arith.constant 0 : i32
    return %arg0, %arg2 : i32, i32
  }
  func.func @transform_1(%arg0: i32, %arg1: i32, %arg2: i32) -> (i32, i32) {
    %c0_i32 = arith.constant 0 : i32
    return %arg2, %arg1 : i32, i32
  }
  func.func @transform_2(%arg0: i32, %arg1: i32, %arg2: i32) -> (i32, i32) {
    %c0_i32 = arith.constant 0 : i32
    %c0_i32_0 = arith.constant 0 : i32
    return %c0_i32, %arg1 : i32, i32
  }
  func.func @transform_3(%arg0: i32, %arg1: i32, %arg2: i32) -> (i32, i32) {
    %c0_i32 = arith.constant 0 : i32
    return %arg0, %arg1 : i32, i32
  }
  func.func @transform_4(%arg0: i32, %arg1: i32, %arg2: i32) -> (i32, i32) {
    %c0_i32 = arith.constant 0 : i32
    return %arg0, %arg1 : i32, i32
  }
}

module attributes {stable_mosaic.version = 11 : i64} {
  func.func @_ln_matmul_kernel(%arg0: i32, %arg1: i32, %arg2: memref<32x64xbf16, #tpu.memory_space<vmem>>, %arg3: memref<1x64xf32, #tpu.memory_space<vmem>>, %arg4: memref<1x64xf32, #tpu.memory_space<vmem>>, %arg5: memref<64x256xbf16, #tpu.memory_space<vmem>>, %arg6: memref<32x256xf32, #tpu.memory_space<vmem>>, %arg7: memref<32x64xbf16, #tpu.memory_space<vmem>>) attributes {dimension_semantics = [#tpu.dimension_semantics<parallel>, #tpu.dimension_semantics<arbitrary>], iteration_bounds = array<i64: 1, 1>, scalar_prefetch = 0 : i64, scratch_operands = 1 : i64, tpu.core_type = #tpu.core_type<tc>, window_params = [{transform_indices = @transform_0, window_bounds = array<i64: 32, 64>}, {pipeline_mode = #tpu.pipeline_mode<synchronous>, transform_indices = @transform_1, window_bounds = array<i64: 1, 64>}, {pipeline_mode = #tpu.pipeline_mode<synchronous>, transform_indices = @transform_2, window_bounds = array<i64: 1, 64>}, {transform_indices = @transform_3, window_bounds = array<i64: 64, 256>}, {transform_indices = @transform_4, window_bounds = array<i64: 32, 256>}]} {
    %c0_i32 = arith.constant 0 : i32
    %0 = arith.cmpi eq, %arg1, %c0_i32 : i32
    %1 = arith.extui %0 : i1 to i32
    %c0_i32_0 = arith.constant 0 : i32
    %2 = arith.cmpi ne, %1, %c0_i32_0 : i32
    scf.if %2 {
      %c0_6 = arith.constant 0 : index
      %c0_7 = arith.constant 0 : index
      %7 = vector.load %arg2[%c0_6, %c0_7] : memref<32x64xbf16, #tpu.memory_space<vmem>>, vector<32x64xbf16>
      %8 = arith.extf %7 : vector<32x64xbf16> to vector<32x64xf32>
      %cst_8 = arith.constant dense<0.000000e+00> : vector<32xf32>
      %9 = vector.multi_reduction <add>, %8, %cst_8 [1] : vector<32x64xf32> to vector<32xf32>
      %10 = vector.shape_cast %9 : vector<32xf32> to vector<32x1xf32>
      %cst_9 = arith.constant 6.400000e+01 : f32
      %11 = vector.broadcast %cst_9 : f32 to vector<32x1xf32>
      %12 = arith.divf %10, %11 : vector<32x1xf32>
      %13 = vector.broadcast %12 : vector<32x1xf32> to vector<32x64xf32>
      %14 = arith.subf %8, %13 : vector<32x64xf32>
      %15 = arith.mulf %14, %14 : vector<32x64xf32>
      %cst_10 = arith.constant dense<0.000000e+00> : vector<32xf32>
      %16 = vector.multi_reduction <add>, %15, %cst_10 [1] : vector<32x64xf32> to vector<32xf32>
      %17 = vector.shape_cast %16 : vector<32xf32> to vector<32x1xf32>
      %cst_11 = arith.constant 6.400000e+01 : f32
      %18 = vector.broadcast %cst_11 : f32 to vector<32x1xf32>
      %19 = arith.divf %17, %18 : vector<32x1xf32>
      %cst_12 = arith.constant 9.99999974E-6 : f32
      %20 = vector.broadcast %cst_12 : f32 to vector<32x1xf32>
      %21 = arith.addf %19, %20 : vector<32x1xf32>
      %22 = math.rsqrt %21 : vector<32x1xf32>
      %23 = vector.broadcast %22 : vector<32x1xf32> to vector<32x64xf32>
      %24 = arith.mulf %14, %23 : vector<32x64xf32>
      %c0_13 = arith.constant 0 : index
      %c0_14 = arith.constant 0 : index
      %25 = vector.load %arg3[%c0_13, %c0_14] : memref<1x64xf32, #tpu.memory_space<vmem>>, vector<1x64xf32>
      %26 = vector.broadcast %25 : vector<1x64xf32> to vector<32x64xf32>
      %27 = arith.mulf %24, %26 : vector<32x64xf32>
      %c0_15 = arith.constant 0 : index
      %c0_16 = arith.constant 0 : index
      %28 = vector.load %arg4[%c0_15, %c0_16] : memref<1x64xf32, #tpu.memory_space<vmem>>, vector<1x64xf32>
      %29 = vector.broadcast %28 : vector<1x64xf32> to vector<32x64xf32>
      %30 = arith.addf %27, %29 : vector<32x64xf32>
      %31 = arith.truncf %30 : vector<32x64xf32> to vector<32x64xbf16>
      %c0_17 = arith.constant 0 : index
      %c0_18 = arith.constant 0 : index
      %32 = vector.load %arg7[%c0_17, %c0_18] : memref<32x64xbf16, #tpu.memory_space<vmem>>, vector<32x64xbf16>
      tpu.vector_store %arg7[%c0_17, %c0_18], %31 {strides = array<i32>} : memref<32x64xbf16, #tpu.memory_space<vmem>>, vector<32x64xbf16>,
    } else {
    }
    %c0 = arith.constant 0 : index
    %c0_1 = arith.constant 0 : index
    %3 = vector.load %arg7[%c0, %c0_1] : memref<32x64xbf16, #tpu.memory_space<vmem>>, vector<32x64xbf16>
    %c0_2 = arith.constant 0 : index
    %c0_3 = arith.constant 0 : index
    %4 = vector.load %arg5[%c0_2, %c0_3] : memref<64x256xbf16, #tpu.memory_space<vmem>>, vector<64x256xbf16>
    %cst = arith.constant dense<0.000000e+00> : vector<32x256xf32>
    %5 = tpu.matmul %3, %4, %cst {dimension_numbers = #tpu.dot_dimension_numbers<[1], [0], [0], [1], [0, 0, 1, 1], [], []>} : vector<32x64xbf16>, vector<64x256xbf16>, vector<32x256xf32> -> vector<32x256xf32>
    %c0_4 = arith.constant 0 : index
    %c0_5 = arith.constant 0 : index
    %6 = vector.load %arg6[%c0_4, %c0_5] : memref<32x256xf32, #tpu.memory_space<vmem>>, vector<32x256xf32>
    tpu.vector_store %arg6[%c0_4, %c0_5], %5 {strides = array<i32>} : memref<32x256xf32, #tpu.memory_space<vmem>>, vector<32x256xf32>,
    return
  }
  func.func @transform_0(%arg0: i32, %arg1: i32) -> (i32, i32) {
    %c0_i32 = arith.constant 0 : i32
    %c0_i32_0 = arith.constant 0 : i32
    return %arg0, %c0_i32 : i32, i32
  }
  func.func @transform_1(%arg0: i32, %arg1: i32) -> (i32, i32) {
    %c0_i32 = arith.constant 0 : i32
    %c0_i32_0 = arith.constant 0 : i32
    %c0_i32_1 = arith.constant 0 : i32
    return %c0_i32, %c0_i32_0 : i32, i32
  }
  func.func @transform_2(%arg0: i32, %arg1: i32) -> (i32, i32) {
    %c0_i32 = arith.constant 0 : i32
    %c0_i32_0 = arith.constant 0 : i32
    %c0_i32_1 = arith.constant 0 : i32
    return %c0_i32, %c0_i32_0 : i32, i32
  }
  func.func @transform_3(%arg0: i32, %arg1: i32) -> (i32, i32) {
    %c0_i32 = arith.constant 0 : i32
    %c0_i32_0 = arith.constant 0 : i32
    return %c0_i32, %arg1 : i32, i32
  }
  func.func @transform_4(%arg0: i32, %arg1: i32) -> (i32, i32) {
    %c0_i32 = arith.constant 0 : i32
    return %arg0, %arg1 : i32, i32
  }
}

</mosaic_0001>

<llo_original>
// kernel: _lambda_.11
$region0: #{_lambda_.11}
  #allocation0 [shape = 'u32[]', space=smem, size = 0x4, offset = 0x4, fixed_abs, tag = 'smem constant byte address 0x4 - core index']
  #allocation1 [shape = 'u32[144,128]{1,0:T(1,128)}', space=vmem, size = 0x12000, scoped, tag = 'internal scratch']
  #allocation2 [shape = 'bf16[32,64]{1,0:T(16,128)(2,1)}', space=vmem, size = 0x2000, scoped, tag = 'scratch operand']
  %s0 = inlined_call_operand.hbm [shape: bf16[32,64], index: 0, kind: input, shape index: {}]
  %s1 = inlined_call_operand.hbm [shape: f32[1,64], index: 1, kind: input, shape index: {}]
  %s2 = inlined_call_operand.hbm [shape: f32[1,64], index: 2, kind: input, shape index: {}]
  %s3 = inlined_call_operand.hbm [shape: bf16[64,192], index: 3, kind: input, shape index: {}]
  %s4 = inlined_call_operand.hbm [shape: f32[1,192], index: 4, kind: input, shape index: {}]
  %s5 = inlined_call_operand.hbm [shape: bf16[32,192], index: 5, kind: output, shape index: {}]
  %s6 = sld [smem:[#allocation0]]
  $region54: #{_lambda_.11} parent=0
    _
  %s8 = ssub.s32 1, %s6
  %s9 = scalar_select 0, %s8, %s6
  $region1: #{_lambda_.11} parent=0
    #allocation3 [shape = 'u8[8192]{0}', space=vmem, size = 0x2000, scoped, tag = 'input window, operand 0, single buffered']
    #allocation4 [shape = 's32[1]{0}', space=sflag, size = 0x4, scoped, tag = 'scoped memory for _lambda_.11']
    #allocation5 [shape = 's32[1]{0}', space=sflag, size = 0x4, scoped, tag = 'scoped memory for _lambda_.11']
    #allocation6 [shape = 'u8[512]{0}', space=vmem, size = 0x400, scoped, tag = 'input window, operand 1, single buffered']
    #allocation7 [shape = 's32[1]{0}', space=sflag, size = 0x4, scoped, tag = 'scoped memory for _lambda_.11']
    #allocation8 [shape = 'u8[512]{0}', space=vmem, size = 0x400, scoped, tag = 'input window, operand 2, single buffered']
    #allocation9 [shape = 'u8[32768]{0}', space=vmem, size = 0x8000, scoped, tag = 'input window, operand 3, single buffered']
    #allocation10 [shape = 's32[1]{0}', space=sflag, size = 0x4, scoped, tag = 'scoped memory for _lambda_.11']
    #allocation11 [shape = 'u8[1024]{0}', space=vmem, size = 0x400, scoped, tag = 'input window, operand 4, single buffered']
    #allocation12 [shape = 'u8[16384]{0}', space=vmem, size = 0x4000, scoped, tag = 'output window, operand 0, single buffered']
    %10 = vsyncpa [#allocation4], 0
    %11 = vsyncpa [#allocation7], 0
    %12 = vsyncpa [#allocation10], 0
    %13 = vsyncpa [#allocation5], 0
    // Predicated region
    $region2: #{_lambda_.11} parent=1 // pred_check
      _
    $region3: #{_lambda_.11} parent=1 // pred_check_branch
      %15 = sbr.rel (0) target = $region5
    $region4: #{_lambda_.11} parent=1 // pred_region
      %s17 = ssub.s32 256, 256
      %18 = vsyncadd [#allocation4], %s17
      %s19 = sshll.u32 [#allocation3], 4
      %s20 = int_to_ptr.vmem [resolvable:$true] %s19
      %25 = dma.hbm_to_vmem [thread:$0]  %s0, 256, %s20, [#allocation4], 64, 64, 4
    $region5: #{_lambda_.11} parent=1 // pred_fallthru
      _
    // Predicated region
    $region6: #{_lambda_.11} parent=1 // pred_check
      _
    $region7: #{_lambda_.11} parent=1 // pred_check_branch
      %27 = sbr.rel (0) target = $region9
    $region8: #{_lambda_.11} parent=1 // pred_region
      %s29 = ssub.s32 16, 16
      %30 = vsyncadd [#allocation7], %s29
      %s32 = sshll.u32 [#allocation6], 4
      %s33 = int_to_ptr.vmem [resolvable:$true] %s32
      %35 = dma.hbm_to_vmem [thread:$0]  %s1, 16, %s33, [#allocation7]
    $region9: #{_lambda_.11} parent=1 // pred_fallthru
      _
    // Predicated region
    $region10: #{_lambda_.11} parent=1 // pred_check
      _
    $region11: #{_lambda_.11} parent=1 // pred_check_branch
      %37 = sbr.rel (0) target = $region13
    $region12: #{_lambda_.11} parent=1 // pred_region
      %s39 = ssub.s32 16, 16
      %40 = vsyncadd [#allocation7], %s39
      %s42 = sshll.u32 [#allocation8], 4
      %s43 = int_to_ptr.vmem [resolvable:$true] %s42
      %45 = dma.hbm_to_vmem [thread:$0]  %s2, 16, %s43, [#allocation7]
    $region13: #{_lambda_.11} parent=1 // pred_fallthru
      _
    // Predicated region
    $region14: #{_lambda_.11} parent=1 // pred_check
      _
    $region15: #{_lambda_.11} parent=1 // pred_check_branch
      %47 = sbr.rel (0) target = $region17
    $region16: #{_lambda_.11} parent=1 // pred_region
      %s49 = ssub.s32 1024, 1024
      %50 = vsyncadd [#allocation10], %s49
      %s51 = sshll.u32 [#allocation9], 4
      %s52 = int_to_ptr.vmem [resolvable:$true] %s51
      %57 = dma.hbm_to_vmem [thread:$0]  %s3, 1024, %s52, [#allocation10], 128, 128, 8
    $region17: #{_lambda_.11} parent=1 // pred_fallthru
      _
    // Predicated region
    $region18: #{_lambda_.11} parent=1 // pred_check
      _
    $region19: #{_lambda_.11} parent=1 // pred_check_branch
      %59 = sbr.rel (0) target = $region21
    $region20: #{_lambda_.11} parent=1 // pred_region
      %s61 = ssub.s32 32, 32
      %62 = vsyncadd [#allocation10], %s61
      %s64 = sshll.u32 [#allocation11], 4
      %s65 = int_to_ptr.vmem [resolvable:$true] %s64
      %67 = dma.hbm_to_vmem [thread:$0]  %s4, 32, %s65, [#allocation10]
    $region21: #{_lambda_.11} parent=1 // pred_fallthru
      _
    // Predicated region
    $region22: #{_lambda_.11} parent=1 // pred_check
      _
    $region23: #{_lambda_.11} parent=1 // pred_check_branch
      %69 = sbr.rel (0) target = $region25
    $region24: #{_lambda_.11} parent=1 // pred_region
      %70 = dma.done [#allocation4], 256
    $region25: #{_lambda_.11} parent=1 // pred_fallthru
      _
    // Predicated region
    $region26: #{_lambda_.11} parent=1 // pred_check
      _
    $region27: #{_lambda_.11} parent=1 // pred_check_branch
      %72 = sbr.rel (0) target = $region29
    $region28: #{_lambda_.11} parent=1 // pred_region
      %73 = dma.done [#allocation7], 16
    $region29: #{_lambda_.11} parent=1 // pred_fallthru
      _
    // Predicated region
    $region30: #{_lambda_.11} parent=1 // pred_check
      _
    $region31: #{_lambda_.11} parent=1 // pred_check_branch
      %75 = sbr.rel (0) target = $region33
    $region32: #{_lambda_.11} parent=1 // pred_region
      %76 = dma.done [#allocation7], 16
    $region33: #{_lambda_.11} parent=1 // pred_fallthru
      _
    // Predicated region
    $region34: #{_lambda_.11} parent=1 // pred_check
      _
    $region35: #{_lambda_.11} parent=1 // pred_check_branch
      %78 = sbr.rel (0) target = $region37
    $region36: #{_lambda_.11} parent=1 // pred_region
      %79 = dma.done [#allocation10], 1024
    $region37: #{_lambda_.11} parent=1 // pred_fallthru
      _
    // Predicated region
    $region38: #{_lambda_.11} parent=1 // pred_check
      _
    $region39: #{_lambda_.11} parent=1 // pred_check_branch
      %81 = sbr.rel (0) target = $region41
    $region40: #{_lambda_.11} parent=1 // pred_region
      %82 = dma.done [#allocation10], 32
    $region41: #{_lambda_.11} parent=1 // pred_fallthru
      _
    %p84 = scmp.eq.s32.totalorder 0, 0
    // Predicated region
    $region42: #{_lambda_.11} parent=1 // pred_check
      %p85 = pneg %p84
    $region43: #{_lambda_.11} parent=1 // pred_check_branch
      %87 = sbr.rel (%p85) target = $region45
    $region44: #{_lambda_.11} parent=1 // pred_region
      %v88 = vld [vmem:[#allocation3] sm:$0xf]
      %v89 = vld [vmem:[#allocation3 + $0x4] sm:$0xf]
      %v90 = vld [vmem:[#allocation3 + $0x8] sm:$0xf]
      %v91 = vld [vmem:[#allocation3 + $0xc] sm:$0xf]
      %v92 = vunpack.c.l.bf16 %v88
      %v93 = vunpack.c.l.bf16 %v89
      %v94 = vunpack.c.l.bf16 %v90
      %v95 = vunpack.c.l.bf16 %v91
      %vm96 = vcmask 523264
      %v97 = vsel %vm96, %v92, 0.0
      %98 = vadd.xlane.f32.xlu0 %v97
      %v99 = vpop.xlane.xlu0 %98
      %v100 = vsel %vm96, %v93, 0.0
      %101 = vadd.xlane.f32.xlu0 %v100
      %v102 = vpop.xlane.xlu0 %101
      %v103 = vsel %vm96, %v94, 0.0
      %104 = vadd.xlane.f32.xlu0 %v103
      %v105 = vpop.xlane.xlu0 %104
      %v106 = vsel %vm96, %v95, 0.0
      %107 = vadd.xlane.f32.xlu0 %v106
      %v108 = vpop.xlane.xlu0 %107
      %v109 = vrcp.pop 64.0
      %v110 = vmul.f32 %v99, %v109
      %v111 = vmul.f32 %v102, %v109
      %v112 = vmul.f32 %v105, %v109
      %v113 = vmul.f32 %v108, %v109
      %v114 = vsub.f32 %v92, %v110
      %v115 = vsub.f32 %v93, %v111
      %v116 = vsub.f32 %v94, %v112
      %v117 = vsub.f32 %v95, %v113
      %v118 = vmul.f32 %v114, %v114
      %v119 = vmul.f32 %v115, %v115
      %v120 = vmul.f32 %v116, %v116
      %v121 = vmul.f32 %v117, %v117
      %v122 = vsel %vm96, %v118, 0.0
      %123 = vadd.xlane.f32.xlu0 %v122
      %v124 = vpop.xlane.xlu0 %123
      %v125 = vsel %vm96, %v119, 0.0
      %126 = vadd.xlane.f32.xlu0 %v125
      %v127 = vpop.xlane.xlu0 %126
      %v128 = vsel %vm96, %v120, 0.0
      %129 = vadd.xlane.f32.xlu0 %v128
      %v130 = vpop.xlane.xlu0 %129
      %v131 = vsel %vm96, %v121, 0.0
      %132 = vadd.xlane.f32.xlu0 %v131
      %v133 = vpop.xlane.xlu0 %132
      %v134 = vmul.f32 %v124, %v109
      %v135 = vmul.f32 %v127, %v109
      %v136 = vmul.f32 %v130, %v109
      %v137 = vmul.f32 %v133, %v109
      %v138 = vadd.f32 %v134, 1e-05
      %v139 = vadd.f32 %v135, 1e-05
      %v140 = vadd.f32 %v136, 1e-05
      %v141 = vadd.f32 %v137, 1e-05
      %v142 = vrsqrt.pop %v138
      %v143 = vrsqrt.pop %v139
      %v144 = vrsqrt.pop %v140
      %v145 = vrsqrt.pop %v141
      %v146 = vmul.f32 %v114, %v142
      %v147 = vmul.f32 %v115, %v143
      %v148 = vmul.f32 %v116, %v144
      %v149 = vmul.f32 %v117, %v145
      %v150 = vld [vmem:[#allocation6] sm:$0x1]
      %v152 = vlaneseq
      %v153 = vshrl.u32 %v152, 7
      %v154 = vsub.s32 0, %v153
      %v155 = vrot.slane %v150, %v154
      %v157 = vmul.f32 %v146, %v155
      %v158 = vmul.f32 %v147, %v155
      %v159 = vmul.f32 %v148, %v155
      %v160 = vmul.f32 %v149, %v155
      %v161 = vld [vmem:[#allocation8] sm:$0x1]
      %v163 = vlaneseq
      %v164 = vshrl.u32 %v163, 7
      %v165 = vsub.s32 0, %v164
      %v166 = vrot.slane %v161, %v165
      %v168 = vadd.f32 %v157, %v166
      %v169 = vadd.f32 %v158, %v166
      %v170 = vadd.f32 %v159, %v166
      %v171 = vadd.f32 %v160, %v166
      %v172 = vpack.c.bf16 %v169, %v168
      %v173 = vpack.c.bf16 %v171, %v170
      %174 = vst.msk [vmem:[#allocation2] sm:$0xff] %vm96, %v172
      %175 = vst.msk [vmem:[#allocation2 + $0x8] sm:$0xff] %vm96, %v173
    $region45: #{_lambda_.11} parent=1 // pred_fallthru
      _
    %v176 = vld [vmem:[#allocation2] sm:$0xff]
    %v177 = vld [vmem:[#allocation2 + $0x8] sm:$0xff]
    %v178 = vld [vmem:[#allocation9] sm:$0xff]
    %v179 = vld [vmem:[#allocation9 + $0x8] sm:$0xff]
    %v180 = vld [vmem:[#allocation9 + $0x10] sm:$0xff]
    %v181 = vld [vmem:[#allocation9 + $0x18] sm:$0xff]
    %v182 = vld [vmem:[#allocation9 + $0x20] sm:$0xff]
    %v183 = vld [vmem:[#allocation9 + $0x28] sm:$0xff]
    %v184 = vld [vmem:[#allocation9 + $0x30] sm:$0xff]
    %v185 = vld [vmem:[#allocation9 + $0x38] sm:$0xff]
    %v186 = vld [vmem:[#allocation11] sm:$0x3]
    %v188 = vlaneseq
    %v189 = vshrl.u32 %v188, 7
    %v190 = vsub.s32 0, %v189
    %v191 = vrot.slane %v186, %v190
    %v192 = vlaneseq
    %v193 = vshrl.u32 %v192, 7
    %v194 = vsub.s32 1, %v193
    %v195 = vrot.slane %v186, %v194
    %v206 = vunpack.c.l.b16 %v178
    %v207 = vunpack.c.h.b16 %v178
    %v208 = vunpack.c.l.b16 %v179
    %v209 = vunpack.c.h.b16 %v179
    %v210 = vunpack.c.l.b16 %v180
    %v211 = vunpack.c.h.b16 %v180
    %v212 = vunpack.c.l.b16 %v181
    %v213 = vunpack.c.h.b16 %v181
    %v214 = vunpack.c.l.b16 %v182
    %v215 = vunpack.c.h.b16 %v182
    %v216 = vunpack.c.l.b16 %v183
    %v217 = vunpack.c.h.b16 %v183
    %v218 = vunpack.c.l.b16 %v184
    %v219 = vunpack.c.h.b16 %v184
    %v220 = vunpack.c.l.b16 %v185
    %v221 = vunpack.c.h.b16 %v185
    %v222 = vpack.c.b16 %v208, %v206
    %v223 = vpack.c.b16 %v209, %v207
    %v224 = vpack.c.b16 %v212, %v210
    %v225 = vpack.c.b16 %v213, %v211
    %v226 = vpack.c.b16 %v216, %v214
    %v227 = vpack.c.b16 %v217, %v215
    %v228 = vpack.c.b16 %v220, %v218
    %v229 = vpack.c.b16 %v221, %v219
    %vm238 = vcmask 523264
    %v240 = vsel %vm238, %v176, 0
    %v243 = vsel %vm238, %v177, 0
    %245 = vmatprep.subr.bf16.mxu0 %v223
    %246 = vmatpush1.bf16.msra.mxu0 %v222
    %247 = vmatprep.subr.bf16.mxu0 %v225
    %248 = vmatpush1.bf16.msra.mxu0 %v224
    %249 = vmatprep.subr.bf16.mxu0 %v227
    %250 = vmatpush1.bf16.msra.mxu0 %v226
    %251 = vmatprep.subr.bf16.mxu0 %v229
    %252 = vmatpush1.bf16.msra.mxu0 %v228
    %253 = vmatprep.subr.bf16.mxu0 0
    %254 = vmatpush1.bf16.msra.mxu0 0
    %255 = vmatprep.subr.bf16.mxu0 0
    %256 = vmatpush1.bf16.msra.mxu0 0
    %257 = vmatprep.subr.bf16.mxu0 0
    %258 = vmatpush1.bf16.msra.mxu0 0
    %259 = vmatprep.subr.bf16.mxu0 0
    %260 = vmatpush1.bf16.msra.mxu0 0
    %261 = vmatprep.subr.bf16.mxu0 0
    %262 = vmatpush1.bf16.msra.mxu0 0
    %263 = vmatprep.subr.bf16.mxu0 0
    %264 = vmatpush1.bf16.msra.mxu0 0
    %265 = vmatprep.subr.bf16.mxu0 0
    %266 = vmatpush1.bf16.msra.mxu0 0
    %267 = vmatprep.subr.bf16.mxu0 0
    %268 = vmatpush1.bf16.msra.mxu0 0
    %269 = vmatprep.subr.bf16.mxu0 0
    %270 = vmatpush1.bf16.msra.mxu0 0
    %271 = vmatprep.subr.bf16.mxu0 0
    %272 = vmatpush1.bf16.msra.mxu0 0
    %273 = vmatprep.subr.bf16.mxu0 0
    %274 = vmatpush1.bf16.msra.mxu0 0
    %275 = vmatprep.subr.bf16.mxu0 0
    %276 = vmatpush1.bf16.msra.mxu0 0
    %277 = vmatprep.mubr.bf16.mxu0 0
    %278 = vmatmul.mubr.bf16.gmra.mrb[0].mxu0 %v240
    %v279 = vpop.f32.mrb[0].mxu0
    %v280 = vadd.f32 %v191, %v279
    %v281 = vpop.f32.mrb[0].mxu0
    %v282 = vadd.f32 %v195, %v281
    %v283 = vpop.f32.mrb[0].mxu0
    %v284 = vadd.f32 %v191, %v283
    %v285 = vpop.f32.mrb[0].mxu0
    %v286 = vadd.f32 %v195, %v285
    %287 = vmatprep.mubr.bf16.mxu0 0
    %288 = vmatmul.mubr.bf16.gmra.mrb[0].mxu0 %v243
    %v289 = vpop.f32.mrb[0].mxu0
    %v290 = vadd.f32 %v191, %v289
    %v291 = vpop.f32.mrb[0].mxu0
    %v292 = vadd.f32 %v195, %v291
    %v293 = vpop.f32.mrb[0].mxu0
    %v294 = vadd.f32 %v191, %v293
    %v295 = vpop.f32.mrb[0].mxu0
    %v296 = vadd.f32 %v195, %v295
    %297 = vdwg.mxu0
    %v298 = vpack.c.bf16 %v284, %v280
    %v299 = vpack.c.bf16 %v286, %v282
    %v300 = vpack.c.bf16 %v294, %v290
    %v301 = vpack.c.bf16 %v296, %v292
    %v306 = vunpack.c.l.b16 %v298
    %v307 = vunpack.c.l.b16 %v299
    %v308 = vunpack.c.h.b16 %v298
    %v309 = vunpack.c.h.b16 %v299
    %v310 = vunpack.c.l.b16 %v300
    %v311 = vunpack.c.l.b16 %v301
    %v312 = vunpack.c.h.b16 %v300
    %v313 = vunpack.c.h.b16 %v301
    %v314 = vpack.c.b16 %v307, %v306
    %v315 = vpack.c.b16 %v309, %v308
    %v316 = vpack.c.b16 %v311, %v310
    %v317 = vpack.c.b16 %v313, %v312
    %vm322 = vcmask 1043456
    %vm323 = vcmask 523268
    %vm324 = vmor %vm323, %vm322
    %325 = vst.msk [vmem:[#allocation12] sm:$0xff] %vm324, %v314
    %326 = vst.msk [vmem:[#allocation12 + $0x8] sm:$0xff] %vm324, %v315
    %327 = vst.msk [vmem:[#allocation12 + $0x10] sm:$0xff] %vm324, %v316
    %328 = vst.msk [vmem:[#allocation12 + $0x18] sm:$0xff] %vm324, %v317
    // Predicated region
    $region46: #{_lambda_.11} parent=1 // pred_check
      _
    $region47: #{_lambda_.11} parent=1 // pred_check_branch
      %330 = sbr.rel (0) target = $region49
    $region48: #{_lambda_.11} parent=1 // pred_region
      %s332 = ssub.s32 512, 512
      %333 = vsyncadd [#allocation5], %s332
      %s334 = sshll.u32 [#allocation12], 4
      %s335 = int_to_ptr.vmem [resolvable:$true] %s334
      %340 = dma.vmem_to_hbm [thread:$0]  %s335, 512, %s5, [#allocation5], 128, 128, 8
    $region49: #{_lambda_.11} parent=1 // pred_fallthru
      _
    // Predicated region
    $region50: #{_lambda_.11} parent=1 // pred_check
      _
    $region51: #{_lambda_.11} parent=1 // pred_check_branch
      %342 = sbr.rel (0) target = $region53
    $region52: #{_lambda_.11} parent=1 // pred_region
      %343 = dma.done [#allocation5], 512
    $region53: #{_lambda_.11} parent=1 // pred_fallthru
      _
    %344 = vsyncpa [#allocation4], 1
    %345 = vsyncpa [#allocation7], 1
    %346 = vsyncpa [#allocation10], 1
    %347 = vsyncpa [#allocation5], 1

// kernel: _lambda_.13
$region0: #{_lambda_.13}
  #allocation0 [shape = 'u32[]', space=smem, size = 0x4, offset = 0x4, fixed_abs, tag = 'smem constant byte address 0x4 - core index']
  #allocation1 [shape = 'u32[144,128]{1,0:T(1,128)}', space=vmem, size = 0x12000, scoped, tag = 'internal scratch']
  #allocation2 [shape = 'f32[32,64]{1,0:T(8,128)}', space=vmem, size = 0x4000, scoped, tag = 'scratch operand']
  %s0 = inlined_call_operand.hbm [shape: bf16[32,64], index: 0, kind: input, shape index: {}]
  %s1 = inlined_call_operand.hbm [shape: bf16[64,64], index: 1, kind: input, shape index: {}]
  %s2 = inlined_call_operand.hbm [shape: f32[1,64], index: 2, kind: input, shape index: {}]
  %s3 = inlined_call_operand.hbm [shape: bf16[32,64], index: 3, kind: input, shape index: {}]
  %s4 = inlined_call_operand.hbm [shape: bf16[32,64], index: 4, kind: output, shape index: {}]
  %s5 = sld [smem:[#allocation0]]
  $region50: #{_lambda_.13} parent=0
    _
  %s7 = ssub.s32 1, %s5
  %s8 = scalar_select 0, %s7, %s5
  $region1: #{_lambda_.13} parent=0
    #allocation3 [shape = 'u8[8192]{0}', space=vmem, size = 0x2000, scoped, tag = 'input window, operand 0, single buffered']
    #allocation4 [shape = 's32[1]{0}', space=sflag, size = 0x4, scoped, tag = 'scoped memory for _lambda_.13']
    #allocation5 [shape = 's32[1]{0}', space=sflag, size = 0x4, scoped, tag = 'scoped memory for _lambda_.13']
    #allocation6 [shape = 'u8[16384]{0}', space=vmem, size = 0x4000, scoped, tag = 'input window, operand 1, single buffered']
    #allocation7 [shape = 's32[1]{0}', space=sflag, size = 0x4, scoped, tag = 'scoped memory for _lambda_.13']
    #allocation8 [shape = 'u8[512]{0}', space=vmem, size = 0x400, scoped, tag = 'input window, operand 2, single buffered']
    #allocation9 [shape = 'u8[8192]{0}', space=vmem, size = 0x2000, scoped, tag = 'input window, operand 3, single buffered']
    #allocation10 [shape = 's32[1]{0}', space=sflag, size = 0x4, scoped, tag = 'scoped memory for _lambda_.13']
    #allocation11 [shape = 'u8[8192]{0}', space=vmem, size = 0x2000, scoped, tag = 'output window, operand 0, single buffered']
    %9 = vsyncpa [#allocation4], 0
    %10 = vsyncpa [#allocation7], 0
    %11 = vsyncpa [#allocation10], 0
    %12 = vsyncpa [#allocation5], 0
    // Predicated region
    $region2: #{_lambda_.13} parent=1 // pred_check
      _
    $region3: #{_lambda_.13} parent=1 // pred_check_branch
      %14 = sbr.rel (0) target = $region5
    $region4: #{_lambda_.13} parent=1 // pred_region
      %s16 = ssub.s32 256, 256
      %17 = vsyncadd [#allocation4], %s16
      %s18 = sshll.u32 [#allocation3], 4
      %s19 = int_to_ptr.vmem [resolvable:$true] %s18
      %24 = dma.hbm_to_vmem [thread:$0]  %s0, 256, %s19, [#allocation4], 64, 64, 4
    $region5: #{_lambda_.13} parent=1 // pred_fallthru
      _
    // Predicated region
    $region6: #{_lambda_.13} parent=1 // pred_check
      _
    $region7: #{_lambda_.13} parent=1 // pred_check_branch
      %26 = sbr.rel (0) target = $region9
    $region8: #{_lambda_.13} parent=1 // pred_region
      %s28 = ssub.s32 512, 512
      %29 = vsyncadd [#allocation7], %s28
      %s30 = sshll.u32 [#allocation6], 4
      %s31 = int_to_ptr.vmem [resolvable:$true] %s30
      %36 = dma.hbm_to_vmem [thread:$0]  %s1, 512, %s31, [#allocation7], 64, 64, 4
    $region9: #{_lambda_.13} parent=1 // pred_fallthru
      _
    // Predicated region
    $region10: #{_lambda_.13} parent=1 // pred_check
      _
    $region11: #{_lambda_.13} parent=1 // pred_check_branch
      %38 = sbr.rel (0) target = $region13
    $region12: #{_lambda_.13} parent=1 // pred_region
      %s40 = ssub.s32 16, 16
      %41 = vsyncadd [#allocation7], %s40
      %s43 = sshll.u32 [#allocation8], 4
      %s44 = int_to_ptr.vmem [resolvable:$true] %s43
      %46 = dma.hbm_to_vmem [thread:$0]  %s2, 16, %s44, [#allocation7]
    $region13: #{_lambda_.13} parent=1 // pred_fallthru
      _
    // Predicated region
    $region14: #{_lambda_.13} parent=1 // pred_check
      _
    $region15: #{_lambda_.13} parent=1 // pred_check_branch
      %48 = sbr.rel (0) target = $region17
    $region16: #{_lambda_.13} parent=1 // pred_region
      %s50 = ssub.s32 256, 256
      %51 = vsyncadd [#allocation10], %s50
      %s52 = sshll.u32 [#allocation9], 4
      %s53 = int_to_ptr.vmem [resolvable:$true] %s52
      %58 = dma.hbm_to_vmem [thread:$0]  %s3, 256, %s53, [#allocation10], 64, 64, 4
    $region17: #{_lambda_.13} parent=1 // pred_fallthru
      _
    // Predicated region
    $region18: #{_lambda_.13} parent=1 // pred_check
      _
    $region19: #{_lambda_.13} parent=1 // pred_check_branch
      %60 = sbr.rel (0) target = $region21
    $region20: #{_lambda_.13} parent=1 // pred_region
      %61 = dma.done [#allocation4], 256
    $region21: #{_lambda_.13} parent=1 // pred_fallthru
      _
    // Predicated region
    $region22: #{_lambda_.13} parent=1 // pred_check
      _
    $region23: #{_lambda_.13} parent=1 // pred_check_branch
      %63 = sbr.rel (0) target = $region25
    $region24: #{_lambda_.13} parent=1 // pred_region
      %64 = dma.done [#allocation7], 512
    $region25: #{_lambda_.13} parent=1 // pred_fallthru
      _
    // Predicated region
    $region26: #{_lambda_.13} parent=1 // pred_check
      _
    $region27: #{_lambda_.13} parent=1 // pred_check_branch
      %66 = sbr.rel (0) target = $region29
    $region28: #{_lambda_.13} parent=1 // pred_region
      %67 = dma.done [#allocation7], 16
    $region29: #{_lambda_.13} parent=1 // pred_fallthru
      _
    // Predicated region
    $region30: #{_lambda_.13} parent=1 // pred_check
      _
    $region31: #{_lambda_.13} parent=1 // pred_check_branch
      %69 = sbr.rel (0) target = $region33
    $region32: #{_lambda_.13} parent=1 // pred_region
      %70 = dma.done [#allocation10], 256
    $region33: #{_lambda_.13} parent=1 // pred_fallthru
      _
    %p72 = scmp.eq.s32.totalorder 0, 0
    // Predicated region
    $region34: #{_lambda_.13} parent=1 // pred_check
      %p73 = pneg %p72
    $region35: #{_lambda_.13} parent=1 // pred_check_branch
      %75 = sbr.rel (%p73) target = $region37
    $region36: #{_lambda_.13} parent=1 // pred_region
      %vm76 = vcmask 523264
      %77 = vst.msk [vmem:[#allocation2] sm:$0xff] %vm76, 0.0
      %78 = vst.msk [vmem:[#allocation2 + $0x8] sm:$0xff] %vm76, 0.0
      %79 = vst.msk [vmem:[#allocation2 + $0x10] sm:$0xff] %vm76, 0.0
      %80 = vst.msk [vmem:[#allocation2 + $0x18] sm:$0xff] %vm76, 0.0
    $region37: #{_lambda_.13} parent=1 // pred_fallthru
      _
    %v81 = vld [vmem:[#allocation2] sm:$0xff]
    %v82 = vld [vmem:[#allocation2 + $0x8] sm:$0xff]
    %v83 = vld [vmem:[#allocation2 + $0x10] sm:$0xff]
    %v84 = vld [vmem:[#allocation2 + $0x18] sm:$0xff]
    %v85 = vld [vmem:[#allocation3] sm:$0xf]
    %v86 = vld [vmem:[#allocation3 + $0x4] sm:$0xf]
    %v87 = vld [vmem:[#allocation3 + $0x8] sm:$0xf]
    %v88 = vld [vmem:[#allocation3 + $0xc] sm:$0xf]
    %v89 = vld [vmem:[#allocation6] sm:$0xf]
    %v90 = vld [vmem:[#allocation6 + $0x4] sm:$0xf]
    %v91 = vld [vmem:[#allocation6 + $0x8] sm:$0xf]
    %v92 = vld [vmem:[#allocation6 + $0xc] sm:$0xf]
    %v93 = vld [vmem:[#allocation6 + $0x10] sm:$0xf]
    %v94 = vld [vmem:[#allocation6 + $0x14] sm:$0xf]
    %v95 = vld [vmem:[#allocation6 + $0x18] sm:$0xf]
    %v96 = vld [vmem:[#allocation6 + $0x1c] sm:$0xf]
    %v101 = vunpack.c.l.b16 %v85
    %v102 = vunpack.c.l.b16 %v86
    %v103 = vunpack.c.l.b16 %v87
    %v104 = vunpack.c.l.b16 %v88
    %v105 = vpack.c.b16 %v102, %v101
    %v106 = vpack.c.b16 %v104, %v103
    %v115 = vunpack.c.l.b16 %v89
    %v116 = vunpack.c.l.b16 %v90
    %v117 = vunpack.c.l.b16 %v91
    %v118 = vunpack.c.l.b16 %v92
    %v119 = vunpack.c.l.b16 %v93
    %v120 = vunpack.c.l.b16 %v94
    %v121 = vunpack.c.l.b16 %v95
    %v122 = vunpack.c.l.b16 %v96
    %v123 = vpack.c.b16 %v116, %v115
    %v124 = vpack.c.b16 %v118, %v117
    %v125 = vpack.c.b16 %v120, %v119
    %v126 = vpack.c.b16 %v122, %v121
    %vm131 = vcmask 523264
    %v133 = vsel %vm131, %v105, 0
    %v136 = vsel %vm131, %v106, 0
    %138 = vmatprep.subr.bf16.mxu0 0
    %139 = vmatpush1.bf16.msra.mxu0 %v123
    %140 = vmatprep.subr.bf16.mxu0 0
    %141 = vmatpush1.bf16.msra.mxu0 %v124
    %142 = vmatprep.subr.bf16.mxu0 0
    %143 = vmatpush1.bf16.msra.mxu0 %v125
    %144 = vmatprep.subr.bf16.mxu0 0
    %145 = vmatpush1.bf16.msra.mxu0 %v126
    %146 = vmatprep.subr.bf16.mxu0 0
    %147 = vmatpush1.bf16.msra.mxu0 0
    %148 = vmatprep.subr.bf16.mxu0 0
    %149 = vmatpush1.bf16.msra.mxu0 0
    %150 = vmatprep.subr.bf16.mxu0 0
    %151 = vmatpush1.bf16.msra.mxu0 0
    %152 = vmatprep.subr.bf16.mxu0 0
    %153 = vmatpush1.bf16.msra.mxu0 0
    %154 = vmatprep.subr.bf16.mxu0 0
    %155 = vmatpush1.bf16.msra.mxu0 0
    %156 = vmatprep.subr.bf16.mxu0 0
    %157 = vmatpush1.bf16.msra.mxu0 0
    %158 = vmatprep.subr.bf16.mxu0 0
    %159 = vmatpush1.bf16.msra.mxu0 0
    %160 = vmatprep.subr.bf16.mxu0 0
    %161 = vmatpush1.bf16.msra.mxu0 0
    %162 = vmatprep.subr.bf16.mxu0 0
    %163 = vmatpush1.bf16.msra.mxu0 0
    %164 = vmatprep.subr.bf16.mxu0 0
    %165 = vmatpush1.bf16.msra.mxu0 0
    %166 = vmatprep.subr.bf16.mxu0 0
    %167 = vmatpush1.bf16.msra.mxu0 0
    %168 = vmatprep.subr.bf16.mxu0 0
    %169 = vmatpush1.bf16.msra.mxu0 0
    %170 = vmatprep.mubr.bf16.mxu0 0
    %171 = vmatmul.mubr.bf16.gmra.mrb[0].mxu0 %v133
    %v172 = vpop.f32.mrb[0].mxu0
    %v173 = vadd.f32 0.0, %v172
    %v174 = vpop.f32.mrb[0].mxu0
    %v175 = vpop.f32.mrb[0].mxu0
    %v176 = vadd.f32 0.0, %v175
    %v177 = vpop.f32.mrb[0].mxu0
    %178 = vmatprep.mubr.bf16.mxu0 0
    %179 = vmatmul.mubr.bf16.gmra.mrb[0].mxu0 %v136
    %v180 = vpop.f32.mrb[0].mxu0
    %v181 = vadd.f32 0.0, %v180
    %v182 = vpop.f32.mrb[0].mxu0
    %v183 = vpop.f32.mrb[0].mxu0
    %v184 = vadd.f32 0.0, %v183
    %v185 = vpop.f32.mrb[0].mxu0
    %186 = vdwg.mxu0
    %v187 = vadd.f32 %v81, %v173
    %v188 = vadd.f32 %v82, %v176
    %v189 = vadd.f32 %v83, %v181
    %v190 = vadd.f32 %v84, %v184
    %191 = vst.msk [vmem:[#allocation2] sm:$0xff] %vm131, %v187
    %192 = vst.msk [vmem:[#allocation2 + $0x8] sm:$0xff] %vm131, %v188
    %193 = vst.msk [vmem:[#allocation2 + $0x10] sm:$0xff] %vm131, %v189
    %194 = vst.msk [vmem:[#allocation2 + $0x18] sm:$0xff] %vm131, %v190
    // Predicated region
    $region38: #{_lambda_.13} parent=1 // pred_check
      %p195 = pneg %p72
    $region39: #{_lambda_.13} parent=1 // pred_check_branch
      %197 = sbr.rel (%p195) target = $region41
    $region40: #{_lambda_.13} parent=1 // pred_region
      %v198 = vld [vmem:[#allocation2] sm:$0xff]
      %v199 = vld [vmem:[#allocation2 + $0x8] sm:$0xff]
      %v200 = vld [vmem:[#allocation2 + $0x10] sm:$0xff]
      %v201 = vld [vmem:[#allocation2 + $0x18] sm:$0xff]
      %v202 = vld [vmem:[#allocation8] sm:$0x1]
      %v204 = vlaneseq
      %v205 = vshrl.u32 %v204, 7
      %v206 = vsub.s32 0, %v205
      %v207 = vrot.slane %v202, %v206
      %v209 = vadd.f32 %v198, %v207
      %v210 = vadd.f32 %v199, %v207
      %v211 = vadd.f32 %v200, %v207
      %v212 = vadd.f32 %v201, %v207
      %v213 = vld [vmem:[#allocation9] sm:$0xf]
      %v214 = vld [vmem:[#allocation9 + $0x4] sm:$0xf]
      %v215 = vld [vmem:[#allocation9 + $0x8] sm:$0xf]
      %v216 = vld [vmem:[#allocation9 + $0xc] sm:$0xf]
      %v217 = vunpack.c.l.bf16 %v213
      %v218 = vunpack.c.l.bf16 %v214
      %v219 = vunpack.c.l.bf16 %v215
      %v220 = vunpack.c.l.bf16 %v216
      %v221 = vadd.f32 %v209, %v217
      %v222 = vadd.f32 %v210, %v218
      %v223 = vadd.f32 %v211, %v219
      %v224 = vadd.f32 %v212, %v220
      %v225 = vpack.c.bf16 %v222, %v221
      %v226 = vpack.c.bf16 %v224, %v223
      %v229 = vunpack.c.l.b16 %v225
      %v230 = vunpack.c.h.b16 %v225
      %v231 = vunpack.c.l.b16 %v226
      %v232 = vunpack.c.h.b16 %v226
      %v233 = vpack.c.b16 %v229, %v229
      %v234 = vpack.c.b16 %v230, %v230
      %v235 = vpack.c.b16 %v231, %v231
      %v236 = vpack.c.b16 %v232, %v232
      %vm241 = vcmask 519168
      %242 = vst.msk [vmem:[#allocation11] sm:$0xf] %vm241, %v233
      %243 = vst.msk [vmem:[#allocation11 + $0x4] sm:$0xf] %vm241, %v234
      %244 = vst.msk [vmem:[#allocation11 + $0x8] sm:$0xf] %vm241, %v235
      %245 = vst.msk [vmem:[#allocation11 + $0xc] sm:$0xf] %vm241, %v236
    $region41: #{_lambda_.13} parent=1 // pred_fallthru
      _
    // Predicated region
    $region42: #{_lambda_.13} parent=1 // pred_check
      _
    $region43: #{_lambda_.13} parent=1 // pred_check_branch
      %247 = sbr.rel (0) target = $region45
    $region44: #{_lambda_.13} parent=1 // pred_region
      %s249 = ssub.s32 256, 256
      %250 = vsyncadd [#allocation5], %s249
      %s251 = sshll.u32 [#allocation11], 4
      %s252 = int_to_ptr.vmem [resolvable:$true] %s251
      %257 = dma.vmem_to_hbm [thread:$0]  %s252, 256, %s4, [#allocation5], 64, 64, 4
    $region45: #{_lambda_.13} parent=1 // pred_fallthru
      _
    // Predicated region
    $region46: #{_lambda_.13} parent=1 // pred_check
      _
    $region47: #{_lambda_.13} parent=1 // pred_check_branch
      %259 = sbr.rel (0) target = $region49
    $region48: #{_lambda_.13} parent=1 // pred_region
      %260 = dma.done [#allocation5], 256
    $region49: #{_lambda_.13} parent=1 // pred_fallthru
      _
    %261 = vsyncpa [#allocation4], 1
    %262 = vsyncpa [#allocation7], 1
    %263 = vsyncpa [#allocation10], 1
    %264 = vsyncpa [#allocation5], 1

// kernel: _lambda_.14
$region0: #{_lambda_.14}
  #allocation0 [shape = 'u32[]', space=smem, size = 0x4, offset = 0x4, fixed_abs, tag = 'smem constant byte address 0x4 - core index']
  #allocation1 [shape = 'u32[144,128]{1,0:T(1,128)}', space=vmem, size = 0x12000, scoped, tag = 'internal scratch']
  #allocation2 [shape = 'bf16[32,64]{1,0:T(16,128)(2,1)}', space=vmem, size = 0x2000, scoped, tag = 'scratch operand']
  %s0 = inlined_call_operand.hbm [shape: bf16[32,64], index: 0, kind: input, shape index: {}]
  %s1 = inlined_call_operand.hbm [shape: f32[1,64], index: 1, kind: input, shape index: {}]
  %s2 = inlined_call_operand.hbm [shape: f32[1,64], index: 2, kind: input, shape index: {}]
  %s3 = inlined_call_operand.hbm [shape: bf16[64,256], index: 3, kind: input, shape index: {}]
  %s4 = inlined_call_operand.hbm [shape: f32[1,256], index: 4, kind: input, shape index: {}]
  %s5 = inlined_call_operand.hbm [shape: bf16[32,256], index: 5, kind: output, shape index: {}]
  %s6 = sld [smem:[#allocation0]]
  $region54: #{_lambda_.14} parent=0
    _
  %s8 = ssub.s32 1, %s6
  %s9 = scalar_select 0, %s8, %s6
  $region1: #{_lambda_.14} parent=0
    #allocation3 [shape = 'u8[8192]{0}', space=vmem, size = 0x2000, scoped, tag = 'input window, operand 0, single buffered']
    #allocation4 [shape = 's32[1]{0}', space=sflag, size = 0x4, scoped, tag = 'scoped memory for _lambda_.14']
    #allocation5 [shape = 's32[1]{0}', space=sflag, size = 0x4, scoped, tag = 'scoped memory for _lambda_.14']
    #allocation6 [shape = 'u8[512]{0}', space=vmem, size = 0x400, scoped, tag = 'input window, operand 1, single buffered']
    #allocation7 [shape = 's32[1]{0}', space=sflag, size = 0x4, scoped, tag = 'scoped memory for _lambda_.14']
    #allocation8 [shape = 'u8[512]{0}', space=vmem, size = 0x400, scoped, tag = 'input window, operand 2, single buffered']
    #allocation9 [shape = 'u8[32768]{0}', space=vmem, size = 0x8000, scoped, tag = 'input window, operand 3, single buffered']
    #allocation10 [shape = 's32[1]{0}', space=sflag, size = 0x4, scoped, tag = 'scoped memory for _lambda_.14']
    #allocation11 [shape = 'u8[1024]{0}', space=vmem, size = 0x400, scoped, tag = 'input window, operand 4, single buffered']
    #allocation12 [shape = 'u8[16384]{0}', space=vmem, size = 0x4000, scoped, tag = 'output window, operand 0, single buffered']
    %10 = vsyncpa [#allocation4], 0
    %11 = vsyncpa [#allocation7], 0
    %12 = vsyncpa [#allocation10], 0
    %13 = vsyncpa [#allocation5], 0
    // Predicated region
    $region2: #{_lambda_.14} parent=1 // pred_check
      _
    $region3: #{_lambda_.14} parent=1 // pred_check_branch
      %15 = sbr.rel (0) target = $region5
    $region4: #{_lambda_.14} parent=1 // pred_region
      %s17 = ssub.s32 256, 256
      %18 = vsyncadd [#allocation4], %s17
      %s19 = sshll.u32 [#allocation3], 4
      %s20 = int_to_ptr.vmem [resolvable:$true] %s19
      %25 = dma.hbm_to_vmem [thread:$0]  %s0, 256, %s20, [#allocation4], 64, 64, 4
    $region5: #{_lambda_.14} parent=1 // pred_fallthru
      _
    // Predicated region
    $region6: #{_lambda_.14} parent=1 // pred_check
      _
    $region7: #{_lambda_.14} parent=1 // pred_check_branch
      %27 = sbr.rel (0) target = $region9
    $region8: #{_lambda_.14} parent=1 // pred_region
      %s29 = ssub.s32 16, 16
      %30 = vsyncadd [#allocation7], %s29
      %s32 = sshll.u32 [#allocation6], 4
      %s33 = int_to_ptr.vmem [resolvable:$true] %s32
      %35 = dma.hbm_to_vmem [thread:$0]  %s1, 16, %s33, [#allocation7]
    $region9: #{_lambda_.14} parent=1 // pred_fallthru
      _
    // Predicated region
    $region10: #{_lambda_.14} parent=1 // pred_check
      _
    $region11: #{_lambda_.14} parent=1 // pred_check_branch
      %37 = sbr.rel (0) target = $region13
    $region12: #{_lambda_.14} parent=1 // pred_region
      %s39 = ssub.s32 16, 16
      %40 = vsyncadd [#allocation7], %s39
      %s42 = sshll.u32 [#allocation8], 4
      %s43 = int_to_ptr.vmem [resolvable:$true] %s42
      %45 = dma.hbm_to_vmem [thread:$0]  %s2, 16, %s43, [#allocation7]
    $region13: #{_lambda_.14} parent=1 // pred_fallthru
      _
    // Predicated region
    $region14: #{_lambda_.14} parent=1 // pred_check
      _
    $region15: #{_lambda_.14} parent=1 // pred_check_branch
      %47 = sbr.rel (0) target = $region17
    $region16: #{_lambda_.14} parent=1 // pred_region
      %s49 = ssub.s32 1024, 1024
      %50 = vsyncadd [#allocation10], %s49
      %s51 = sshll.u32 [#allocation9], 4
      %s52 = int_to_ptr.vmem [resolvable:$true] %s51
      %57 = dma.hbm_to_vmem [thread:$0]  %s3, 1024, %s52, [#allocation10], 128, 128, 8
    $region17: #{_lambda_.14} parent=1 // pred_fallthru
      _
    // Predicated region
    $region18: #{_lambda_.14} parent=1 // pred_check
      _
    $region19: #{_lambda_.14} parent=1 // pred_check_branch
      %59 = sbr.rel (0) target = $region21
    $region20: #{_lambda_.14} parent=1 // pred_region
      %s61 = ssub.s32 32, 32
      %62 = vsyncadd [#allocation10], %s61
      %s64 = sshll.u32 [#allocation11], 4
      %s65 = int_to_ptr.vmem [resolvable:$true] %s64
      %67 = dma.hbm_to_vmem [thread:$0]  %s4, 32, %s65, [#allocation10]
    $region21: #{_lambda_.14} parent=1 // pred_fallthru
      _
    // Predicated region
    $region22: #{_lambda_.14} parent=1 // pred_check
      _
    $region23: #{_lambda_.14} parent=1 // pred_check_branch
      %69 = sbr.rel (0) target = $region25
    $region24: #{_lambda_.14} parent=1 // pred_region
      %70 = dma.done [#allocation4], 256
    $region25: #{_lambda_.14} parent=1 // pred_fallthru
      _
    // Predicated region
    $region26: #{_lambda_.14} parent=1 // pred_check
      _
    $region27: #{_lambda_.14} parent=1 // pred_check_branch
      %72 = sbr.rel (0) target = $region29
    $region28: #{_lambda_.14} parent=1 // pred_region
      %73 = dma.done [#allocation7], 16
    $region29: #{_lambda_.14} parent=1 // pred_fallthru
      _
    // Predicated region
    $region30: #{_lambda_.14} parent=1 // pred_check
      _
    $region31: #{_lambda_.14} parent=1 // pred_check_branch
      %75 = sbr.rel (0) target = $region33
    $region32: #{_lambda_.14} parent=1 // pred_region
      %76 = dma.done [#allocation7], 16
    $region33: #{_lambda_.14} parent=1 // pred_fallthru
      _
    // Predicated region
    $region34: #{_lambda_.14} parent=1 // pred_check
      _
    $region35: #{_lambda_.14} parent=1 // pred_check_branch
      %78 = sbr.rel (0) target = $region37
    $region36: #{_lambda_.14} parent=1 // pred_region
      %79 = dma.done [#allocation10], 1024
    $region37: #{_lambda_.14} parent=1 // pred_fallthru
      _
    // Predicated region
    $region38: #{_lambda_.14} parent=1 // pred_check
      _
    $region39: #{_lambda_.14} parent=1 // pred_check_branch
      %81 = sbr.rel (0) target = $region41
    $region40: #{_lambda_.14} parent=1 // pred_region
      %82 = dma.done [#allocation10], 32
    $region41: #{_lambda_.14} parent=1 // pred_fallthru
      _
    %p84 = scmp.eq.s32.totalorder 0, 0
    // Predicated region
    $region42: #{_lambda_.14} parent=1 // pred_check
      %p85 = pneg %p84
    $region43: #{_lambda_.14} parent=1 // pred_check_branch
      %87 = sbr.rel (%p85) target = $region45
    $region44: #{_lambda_.14} parent=1 // pred_region
      %v88 = vld [vmem:[#allocation3] sm:$0xf]
      %v89 = vld [vmem:[#allocation3 + $0x4] sm:$0xf]
      %v90 = vld [vmem:[#allocation3 + $0x8] sm:$0xf]
      %v91 = vld [vmem:[#allocation3 + $0xc] sm:$0xf]
      %v92 = vunpack.c.l.bf16 %v88
      %v93 = vunpack.c.l.bf16 %v89
      %v94 = vunpack.c.l.bf16 %v90
      %v95 = vunpack.c.l.bf16 %v91
      %vm96 = vcmask 523264
      %v97 = vsel %vm96, %v92, 0.0
      %98 = vadd.xlane.f32.xlu0 %v97
      %v99 = vpop.xlane.xlu0 %98
      %v100 = vsel %vm96, %v93, 0.0
      %101 = vadd.xlane.f32.xlu0 %v100
      %v102 = vpop.xlane.xlu0 %101
      %v103 = vsel %vm96, %v94, 0.0
      %104 = vadd.xlane.f32.xlu0 %v103
      %v105 = vpop.xlane.xlu0 %104
      %v106 = vsel %vm96, %v95, 0.0
      %107 = vadd.xlane.f32.xlu0 %v106
      %v108 = vpop.xlane.xlu0 %107
      %v109 = vrcp.pop 64.0
      %v110 = vmul.f32 %v99, %v109
      %v111 = vmul.f32 %v102, %v109
      %v112 = vmul.f32 %v105, %v109
      %v113 = vmul.f32 %v108, %v109
      %v114 = vsub.f32 %v92, %v110
      %v115 = vsub.f32 %v93, %v111
      %v116 = vsub.f32 %v94, %v112
      %v117 = vsub.f32 %v95, %v113
      %v118 = vmul.f32 %v114, %v114
      %v119 = vmul.f32 %v115, %v115
      %v120 = vmul.f32 %v116, %v116
      %v121 = vmul.f32 %v117, %v117
      %v122 = vsel %vm96, %v118, 0.0
      %123 = vadd.xlane.f32.xlu0 %v122
      %v124 = vpop.xlane.xlu0 %123
      %v125 = vsel %vm96, %v119, 0.0
      %126 = vadd.xlane.f32.xlu0 %v125
      %v127 = vpop.xlane.xlu0 %126
      %v128 = vsel %vm96, %v120, 0.0
      %129 = vadd.xlane.f32.xlu0 %v128
      %v130 = vpop.xlane.xlu0 %129
      %v131 = vsel %vm96, %v121, 0.0
      %132 = vadd.xlane.f32.xlu0 %v131
      %v133 = vpop.xlane.xlu0 %132
      %v134 = vmul.f32 %v124, %v109
      %v135 = vmul.f32 %v127, %v109
      %v136 = vmul.f32 %v130, %v109
      %v137 = vmul.f32 %v133, %v109
      %v138 = vadd.f32 %v134, 1e-05
      %v139 = vadd.f32 %v135, 1e-05
      %v140 = vadd.f32 %v136, 1e-05
      %v141 = vadd.f32 %v137, 1e-05
      %v142 = vrsqrt.pop %v138
      %v143 = vrsqrt.pop %v139
      %v144 = vrsqrt.pop %v140
      %v145 = vrsqrt.pop %v141
      %v146 = vmul.f32 %v114, %v142
      %v147 = vmul.f32 %v115, %v143
      %v148 = vmul.f32 %v116, %v144
      %v149 = vmul.f32 %v117, %v145
      %v150 = vld [vmem:[#allocation6] sm:$0x1]
      %v152 = vlaneseq
      %v153 = vshrl.u32 %v152, 7
      %v154 = vsub.s32 0, %v153
      %v155 = vrot.slane %v150, %v154
      %v157 = vmul.f32 %v146, %v155
      %v158 = vmul.f32 %v147, %v155
      %v159 = vmul.f32 %v148, %v155
      %v160 = vmul.f32 %v149, %v155
      %v161 = vld [vmem:[#allocation8] sm:$0x1]
      %v163 = vlaneseq
      %v164 = vshrl.u32 %v163, 7
      %v165 = vsub.s32 0, %v164
      %v166 = vrot.slane %v161, %v165
      %v168 = vadd.f32 %v157, %v166
      %v169 = vadd.f32 %v158, %v166
      %v170 = vadd.f32 %v159, %v166
      %v171 = vadd.f32 %v160, %v166
      %v172 = vpack.c.bf16 %v169, %v168
      %v173 = vpack.c.bf16 %v171, %v170
      %174 = vst.msk [vmem:[#allocation2] sm:$0xff] %vm96, %v172
      %175 = vst.msk [vmem:[#allocation2 + $0x8] sm:$0xff] %vm96, %v173
    $region45: #{_lambda_.14} parent=1 // pred_fallthru
      _
    %v176 = vld [vmem:[#allocation2] sm:$0xff]
    %v177 = vld [vmem:[#allocation2 + $0x8] sm:$0xff]
    %v178 = vld [vmem:[#allocation9] sm:$0xff]
    %v179 = vld [vmem:[#allocation9 + $0x8] sm:$0xff]
    %v180 = vld [vmem:[#allocation9 + $0x10] sm:$0xff]
    %v181 = vld [vmem:[#allocation9 + $0x18] sm:$0xff]
    %v182 = vld [vmem:[#allocation9 + $0x20] sm:$0xff]
    %v183 = vld [vmem:[#allocation9 + $0x28] sm:$0xff]
    %v184 = vld [vmem:[#allocation9 + $0x30] sm:$0xff]
    %v185 = vld [vmem:[#allocation9 + $0x38] sm:$0xff]
    %v186 = vld [vmem:[#allocation11] sm:$0x3]
    %v188 = vlaneseq
    %v189 = vshrl.u32 %v188, 7
    %v190 = vsub.s32 0, %v189
    %v191 = vrot.slane %v186, %v190
    %v192 = vlaneseq
    %v193 = vshrl.u32 %v192, 7
    %v194 = vsub.s32 1, %v193
    %v195 = vrot.slane %v186, %v194
    %v206 = vunpack.c.l.b16 %v178
    %v207 = vunpack.c.h.b16 %v178
    %v208 = vunpack.c.l.b16 %v179
    %v209 = vunpack.c.h.b16 %v179
    %v210 = vunpack.c.l.b16 %v180
    %v211 = vunpack.c.h.b16 %v180
    %v212 = vunpack.c.l.b16 %v181
    %v213 = vunpack.c.h.b16 %v181
    %v214 = vunpack.c.l.b16 %v182
    %v215 = vunpack.c.h.b16 %v182
    %v216 = vunpack.c.l.b16 %v183
    %v217 = vunpack.c.h.b16 %v183
    %v218 = vunpack.c.l.b16 %v184
    %v219 = vunpack.c.h.b16 %v184
    %v220 = vunpack.c.l.b16 %v185
    %v221 = vunpack.c.h.b16 %v185
    %v222 = vpack.c.b16 %v208, %v206
    %v223 = vpack.c.b16 %v209, %v207
    %v224 = vpack.c.b16 %v212, %v210
    %v225 = vpack.c.b16 %v213, %v211
    %v226 = vpack.c.b16 %v216, %v214
    %v227 = vpack.c.b16 %v217, %v215
    %v228 = vpack.c.b16 %v220, %v218
    %v229 = vpack.c.b16 %v221, %v219
    %vm238 = vcmask 523264
    %v240 = vsel %vm238, %v176, 0
    %v243 = vsel %vm238, %v177, 0
    %245 = vmatprep.subr.bf16.mxu0 %v223
    %246 = vmatpush1.bf16.msra.mxu0 %v222
    %247 = vmatprep.subr.bf16.mxu0 %v225
    %248 = vmatpush1.bf16.msra.mxu0 %v224
    %249 = vmatprep.subr.bf16.mxu0 %v227
    %250 = vmatpush1.bf16.msra.mxu0 %v226
    %251 = vmatprep.subr.bf16.mxu0 %v229
    %252 = vmatpush1.bf16.msra.mxu0 %v228
    %253 = vmatprep.subr.bf16.mxu0 0
    %254 = vmatpush1.bf16.msra.mxu0 0
    %255 = vmatprep.subr.bf16.mxu0 0
    %256 = vmatpush1.bf16.msra.mxu0 0
    %257 = vmatprep.subr.bf16.mxu0 0
    %258 = vmatpush1.bf16.msra.mxu0 0
    %259 = vmatprep.subr.bf16.mxu0 0
    %260 = vmatpush1.bf16.msra.mxu0 0
    %261 = vmatprep.subr.bf16.mxu0 0
    %262 = vmatpush1.bf16.msra.mxu0 0
    %263 = vmatprep.subr.bf16.mxu0 0
    %264 = vmatpush1.bf16.msra.mxu0 0
    %265 = vmatprep.subr.bf16.mxu0 0
    %266 = vmatpush1.bf16.msra.mxu0 0
    %267 = vmatprep.subr.bf16.mxu0 0
    %268 = vmatpush1.bf16.msra.mxu0 0
    %269 = vmatprep.subr.bf16.mxu0 0
    %270 = vmatpush1.bf16.msra.mxu0 0
    %271 = vmatprep.subr.bf16.mxu0 0
    %272 = vmatpush1.bf16.msra.mxu0 0
    %273 = vmatprep.subr.bf16.mxu0 0
    %274 = vmatpush1.bf16.msra.mxu0 0
    %275 = vmatprep.subr.bf16.mxu0 0
    %276 = vmatpush1.bf16.msra.mxu0 0
    %277 = vmatprep.mubr.bf16.mxu0 0
    %278 = vmatmul.mubr.bf16.gmra.mrb[0].mxu0 %v240
    %v279 = vpop.f32.mrb[0].mxu0
    %v280 = vadd.f32 %v191, %v279
    %v281 = vpop.f32.mrb[0].mxu0
    %v282 = vadd.f32 %v195, %v281
    %v283 = vpop.f32.mrb[0].mxu0
    %v284 = vadd.f32 %v191, %v283
    %v285 = vpop.f32.mrb[0].mxu0
    %v286 = vadd.f32 %v195, %v285
    %287 = vmatprep.mubr.bf16.mxu0 0
    %288 = vmatmul.mubr.bf16.gmra.mrb[0].mxu0 %v243
    %v289 = vpop.f32.mrb[0].mxu0
    %v290 = vadd.f32 %v191, %v289
    %v291 = vpop.f32.mrb[0].mxu0
    %v292 = vadd.f32 %v195, %v291
    %v293 = vpop.f32.mrb[0].mxu0
    %v294 = vadd.f32 %v191, %v293
    %v295 = vpop.f32.mrb[0].mxu0
    %v296 = vadd.f32 %v195, %v295
    %297 = vdwg.mxu0
    %v298 = vmul.f32 %v280, 0.5
    %v299 = vmul.f32 %v282, 0.5
    %v300 = vmul.f32 %v284, 0.5
    %v301 = vmul.f32 %v286, 0.5
    %v302 = vmul.f32 %v290, 0.5
    %v303 = vmul.f32 %v292, 0.5
    %v304 = vmul.f32 %v294, 0.5
    %v305 = vmul.f32 %v296, 0.5
    %v306 = vmul.f32 %v280, 0.044715
    %v307 = vmul.f32 %v282, 0.044715
    %v308 = vmul.f32 %v284, 0.044715
    %v309 = vmul.f32 %v286, 0.044715
    %v310 = vmul.f32 %v290, 0.044715
    %v311 = vmul.f32 %v292, 0.044715
    %v312 = vmul.f32 %v294, 0.044715
    %v313 = vmul.f32 %v296, 0.044715
    %v314 = vmul.f32 %v306, %v280
    %v315 = vmul.f32 %v307, %v282
    %v316 = vmul.f32 %v308, %v284
    %v317 = vmul.f32 %v309, %v286
    %v318 = vmul.f32 %v310, %v290
    %v319 = vmul.f32 %v311, %v292
    %v320 = vmul.f32 %v312, %v294
    %v321 = vmul.f32 %v313, %v296
    %v322 = vmul.f32 %v314, %v280
    %v323 = vmul.f32 %v315, %v282
    %v324 = vmul.f32 %v316, %v284
    %v325 = vmul.f32 %v317, %v286
    %v326 = vmul.f32 %v318, %v290
    %v327 = vmul.f32 %v319, %v292
    %v328 = vmul.f32 %v320, %v294
    %v329 = vmul.f32 %v321, %v296
    %v330 = vadd.f32 %v280, %v322
    %v331 = vadd.f32 %v282, %v323
    %v332 = vadd.f32 %v284, %v324
    %v333 = vadd.f32 %v286, %v325
    %v334 = vadd.f32 %v290, %v326
    %v335 = vadd.f32 %v292, %v327
    %v336 = vadd.f32 %v294, %v328
    %v337 = vadd.f32 %v296, %v329
    %v338 = vmul.f32 %v330, 0.7978846
    %v339 = vmul.f32 %v331, 0.7978846
    %v340 = vmul.f32 %v332, 0.7978846
    %v341 = vmul.f32 %v333, 0.7978846
    %v342 = vmul.f32 %v334, 0.7978846
    %v343 = vmul.f32 %v335, 0.7978846
    %v344 = vmul.f32 %v336, 0.7978846
    %v345 = vmul.f32 %v337, 0.7978846
    %v346 = vtanh.pop %v338
    %v347 = vtanh.pop %v339
    %v348 = vtanh.pop %v340
    %v349 = vtanh.pop %v341
    %v350 = vtanh.pop %v342
    %v351 = vtanh.pop %v343
    %v352 = vtanh.pop %v344
    %v353 = vtanh.pop %v345
    %v354 = vadd.f32 %v346, 1.0
    %v355 = vadd.f32 %v347, 1.0
    %v356 = vadd.f32 %v348, 1.0
    %v357 = vadd.f32 %v349, 1.0
    %v358 = vadd.f32 %v350, 1.0
    %v359 = vadd.f32 %v351, 1.0
    %v360 = vadd.f32 %v352, 1.0
    %v361 = vadd.f32 %v353, 1.0
    %v362 = vmul.f32 %v298, %v354
    %v363 = vmul.f32 %v299, %v355
    %v364 = vmul.f32 %v300, %v356
    %v365 = vmul.f32 %v301, %v357
    %v366 = vmul.f32 %v302, %v358
    %v367 = vmul.f32 %v303, %v359
    %v368 = vmul.f32 %v304, %v360
    %v369 = vmul.f32 %v305, %v361
    %v370 = vpack.c.bf16 %v364, %v362
    %v371 = vpack.c.bf16 %v365, %v363
    %v372 = vpack.c.bf16 %v368, %v366
    %v373 = vpack.c.bf16 %v369, %v367
    %v378 = vunpack.c.l.b16 %v370
    %v379 = vunpack.c.l.b16 %v371
    %v380 = vunpack.c.h.b16 %v370
    %v381 = vunpack.c.h.b16 %v371
    %v382 = vunpack.c.l.b16 %v372
    %v383 = vunpack.c.l.b16 %v373
    %v384 = vunpack.c.h.b16 %v372
    %v385 = vunpack.c.h.b16 %v373
    %v386 = vpack.c.b16 %v379, %v378
    %v387 = vpack.c.b16 %v381, %v380
    %v388 = vpack.c.b16 %v383, %v382
    %v389 = vpack.c.b16 %v385, %v384
    %394 = vst [vmem:[#allocation12] sm:$0xff] %v386
    %395 = vst [vmem:[#allocation12 + $0x8] sm:$0xff] %v387
    %396 = vst [vmem:[#allocation12 + $0x10] sm:$0xff] %v388
    %397 = vst [vmem:[#allocation12 + $0x18] sm:$0xff] %v389
    // Predicated region
    $region46: #{_lambda_.14} parent=1 // pred_check
      _
    $region47: #{_lambda_.14} parent=1 // pred_check_branch
      %399 = sbr.rel (0) target = $region49
    $region48: #{_lambda_.14} parent=1 // pred_region
      %s401 = ssub.s32 512, 512
      %402 = vsyncadd [#allocation5], %s401
      %s403 = sshll.u32 [#allocation12], 4
      %s404 = int_to_ptr.vmem [resolvable:$true] %s403
      %409 = dma.vmem_to_hbm [thread:$0]  %s404, 512, %s5, [#allocation5], 128, 128, 8
    $region49: #{_lambda_.14} parent=1 // pred_fallthru
      _
    // Predicated region
    $region50: #{_lambda_.14} parent=1 // pred_check
      _
    $region51: #{_lambda_.14} parent=1 // pred_check_branch
      %411 = sbr.rel (0) target = $region53
    $region52: #{_lambda_.14} parent=1 // pred_region
      %412 = dma.done [#allocation5], 512
    $region53: #{_lambda_.14} parent=1 // pred_fallthru
      _
    %413 = vsyncpa [#allocation4], 1
    %414 = vsyncpa [#allocation7], 1
    %415 = vsyncpa [#allocation10], 1
    %416 = vsyncpa [#allocation5], 1

// kernel: _lambda_.12
$region0: #{_lambda_.12}
  #allocation0 [shape = 'u32[]', space=smem, size = 0x4, offset = 0x4, fixed_abs, tag = 'smem constant byte address 0x4 - core index']
  #allocation1 [shape = 'u32[144,128]{1,0:T(1,128)}', space=vmem, size = 0x12000, scoped, tag = 'internal scratch']
  #allocation2 [shape = 'f32[4,16,1]{2,1,0:T(8,128)}', space=vmem, size = 0x8000, scoped, tag = 'scratch operand']
  #allocation3 [shape = 'f32[4,16,1]{2,1,0:T(8,128)}', space=vmem, size = 0x8000, scoped, tag = 'scratch operand']
  #allocation4 [shape = 'f32[4,16,16]{2,1,0:T(8,128)}', space=vmem, size = 0x8000, scoped, tag = 'scratch operand']
  %s0 = inlined_call_operand.hbm [shape: bf16[2,16,192], index: 0, kind: input, shape index: {}, may-alias: {0,1}]
  %s1 = inlined_call_operand.hbm [shape: bf16[2,16,192], index: 1, kind: input, shape index: {}, may-alias: {0,1}]
  %s2 = inlined_call_operand.hbm [shape: bf16[2,16,64], index: 2, kind: output, shape index: {}]
  %s3 = sld [smem:[#allocation0]]
  $region61: #{_lambda_.12} parent=0
    _
  %s5 = ssub.s32 1, %s3
  %s6 = scalar_select 0, %s5, %s3
  $region1: #{_lambda_.12} parent=0
    #allocation5 [shape = 'u8[16384]{0}', space=vmem, size = 0x4000, scoped, tag = 'input window, operand 0']
    #allocation6 [shape = 's32[2]{0}', space=sflag, size = 0x8, scoped, tag = 'scoped memory for _lambda_.12']
    #allocation7 [shape = 's32[2]{0}', space=sflag, size = 0x8, scoped, tag = 'scoped memory for _lambda_.12']
    #allocation8 [shape = 'u8[16384]{0}', space=vmem, size = 0x4000, scoped, tag = 'input window, operand 1']
    #allocation9 [shape = 's32[2]{0}', space=sflag, size = 0x8, scoped, tag = 'scoped memory for _lambda_.12']
    #allocation10 [shape = 'u8[8192]{0}', space=vmem, size = 0x2000, scoped, tag = 'output window, operand 0']
    %7 = vsyncpa [#allocation6], 0
    %s8 = scalar_lea.sflag [#allocation6], 1
    %9 = vsyncpa %s8, 0
    %10 = vsyncpa [#allocation9], 0
    %s11 = scalar_lea.sflag [#allocation9], 1
    %12 = vsyncpa %s11, 0
    %13 = vsyncpa [#allocation7], 0
    %s14 = scalar_lea.sflag [#allocation7], 1
    %15 = vsyncpa %s14, 0
    loop: start=0, step=1, limit=4
    $region2: #{_lambda_.12} parent=1 // loop_pre_header
      _
    $region3: #{_lambda_.12} parent=1 // loop_header
      %s17 = sphi 0, %s21
      %p18 = scmp.ge.s32.totalorder %s17, 4
      %s24 = sphi 0, %s43
      %s25 = sphi 0, %s39
      %s26 = sphi 0, %s35
      %s27 = sphi 0, %s24
      %s28 = sphi 0, %s25
      %s29 = sphi 0, %s26
      %s30 = sphi 0, %s27
      %s31 = sphi 0, %s28
      %s32 = sphi 0, %s29
      %s48 = sphi 0, %s50
      %s51 = sphi 0, %s48
      %s52 = sphi 0, %s51
      %s68 = sphi 0, %s52
      %s76 = sphi 0, %s78
      %s79 = sphi 0, %s76
      %s80 = sphi 0, %s79
      %s96 = sphi 0, %s80
      %s104 = sphi 0, %s106
      %s107 = sphi 0, %s104
      %s108 = sphi 0, %s107
      %s124 = sphi 0, %s108
    $region4: #{_lambda_.12} parent=1 // loop_header_branch
      %20 = sbr.rel (%p18) target = $region8
    $region5: #{_lambda_.12} parent=1 // loop_body
      %s22 = ssub.s32 %s17, 1
      %s23 = ssub.s32 %s17, 2
      %s33 = sadd.s32 1, %s26
      %p34 = scmp.ge.s32.totalorder %s33, 1
      %s35 = scalar_select %p34, 0, %s33
      %s36 = sadd.s32 1, %s25
      %s37 = scalar_select %p34, %s36, %s25
      %p38 = scmp.ge.s32.totalorder %s37, 1
      %s39 = scalar_select %p38, 0, %s37
      %s40 = sadd.s32 1, %s24
      %s41 = scalar_select %p38, %s40, %s24
      %p42 = scmp.ge.s32.totalorder %s41, 2
      %s43 = scalar_select %p42, 0, %s41
      %s44 = ssub.s32 %s24, %s43
      %s45 = ssub.s32 %s25, %s39
      %s46 = sor.u32 %s44, %s45
      %p47 = scmp.eq.s32.totalorder %s46, 0
      %s49 = sadd.s32 %s48, 1
      %s50 = scalar_select %p47, %s48, %s49
      %p53 = pneg %p47
      %p54 = scmp.eq.s32.totalorder %s17, 1
      %p55 = por %p53, %p54
      %p56 = scmp.ne.s32.totalorder %s48, %s51
      %p57 = scmp.eq.s32.totalorder %s17, 0
      %p58 = por %p56, %p57
      %p59 = scmp.ne.s32.totalorder %s48, %s51
      %p60 = scmp.eq.s32.totalorder %s22, 1
      %p61 = por %p59, %p60
      %p62 = scmp.ne.s32.totalorder %s51, %s52
      %p63 = scmp.eq.s32.totalorder %s22, 0
      %p64 = por %p62, %p63
      %p65 = scmp.ne.s32.totalorder %s51, %s52
      %p66 = scmp.eq.s32.totalorder %s23, 1
      %p67 = por %p65, %p66
      %p69 = scmp.ne.s32.totalorder %s52, %s68
      %p70 = scmp.eq.s32.totalorder %s23, 0
      %p71 = por %p69, %p70
      %s72 = ssub.s32 %s24, %s43
      %s73 = ssub.s32 %s26, %s35
      %s74 = sor.u32 %s72, %s73
      %p75 = scmp.eq.s32.totalorder %s74, 0
      %s77 = sadd.s32 %s76, 1
      %s78 = scalar_select %p75, %s76, %s77
      %p81 = pneg %p75
      %p82 = scmp.eq.s32.totalorder %s17, 1
      %p83 = por %p81, %p82
      %p84 = scmp.ne.s32.totalorder %s76, %s79
      %p85 = scmp.eq.s32.totalorder %s17, 0
      %p86 = por %p84, %p85
      %p87 = scmp.ne.s32.totalorder %s76, %s79
      %p88 = scmp.eq.s32.totalorder %s22, 1
      %p89 = por %p87, %p88
      %p90 = scmp.ne.s32.totalorder %s79, %s80
      %p91 = scmp.eq.s32.totalorder %s22, 0
      %p92 = por %p90, %p91
      %p93 = scmp.ne.s32.totalorder %s79, %s80
      %p94 = scmp.eq.s32.totalorder %s23, 1
      %p95 = por %p93, %p94
      %p97 = scmp.ne.s32.totalorder %s80, %s96
      %p98 = scmp.eq.s32.totalorder %s23, 0
      %p99 = por %p97, %p98
      %s100 = ssub.s32 %s24, %s43
      %s101 = ssub.s32 %s25, %s39
      %s102 = sor.u32 %s100, %s101
      %p103 = scmp.eq.s32.totalorder %s102, 0
      %s105 = sadd.s32 %s104, 1
      %s106 = scalar_select %p103, %s104, %s105
      %p109 = pneg %p103
      %p110 = scmp.eq.s32.totalorder %s17, 1
      %p111 = por %p109, %p110
      %p112 = scmp.ne.s32.totalorder %s104, %s107
      %p113 = scmp.eq.s32.totalorder %s17, 0
      %p114 = por %p112, %p113
      %p115 = scmp.ne.s32.totalorder %s104, %s107
      %p116 = scmp.eq.s32.totalorder %s22, 1
      %p117 = por %p115, %p116
      %p118 = scmp.ne.s32.totalorder %s107, %s108
      %p119 = scmp.eq.s32.totalorder %s22, 0
      %p120 = por %p118, %p119
      %p121 = scmp.ne.s32.totalorder %s107, %s108
      %p122 = scmp.eq.s32.totalorder %s23, 1
      %p123 = por %p121, %p122
      %p125 = scmp.ne.s32.totalorder %s108, %s124
      %p126 = scmp.eq.s32.totalorder %s23, 0
      %p127 = por %p125, %p126
      %p128 = scmp.le.s32.totalorder 1, %s17
      %p129 = scmp.lt.s32.totalorder %s17, 3
      %p130 = pnand %p128, %p129
      %p131 = pneg %p130
      // Predicated region
      $region9: #{_lambda_.12} parent=5 // pred_check
        _
      $region10: #{_lambda_.12} parent=5 // pred_check_branch
        %133 = sbr.rel (%p130) target = $region12
      $region11: #{_lambda_.12} parent=5 // pred_region
        %s134 = ssub.s32 %s17, 1
      $region12: #{_lambda_.12} parent=5 // pred_fallthru
        _
      %p135 = scmp.lt.s32.totalorder %s17, 2
      // Predicated region
      $region13: #{_lambda_.12} parent=5 // pred_check
        %p136 = pneg %p135
      $region14: #{_lambda_.12} parent=5 // pred_check_branch
        %138 = sbr.rel (%p136) target = $region16
      $region15: #{_lambda_.12} parent=5 // pred_region
        // Predicated region
        $region17: #{_lambda_.12} parent=15 // pred_check
          %p139 = pneg %p58
        $region18: #{_lambda_.12} parent=15 // pred_check_branch
          %141 = sbr.rel (%p139) target = $region20
        $region19: #{_lambda_.12} parent=15 // pred_region
          %s142 = sand.u32 %s48, 1
          %s143 = scalar_lea.sflag [#allocation6], %s142
          %s144 = sand.u32 %s48, 1
          %s145 = smul.addr %s144, 16
          %s146 = scalar_lea.vmem [#allocation5], %s145
          %s147 = smul.u32 2, %s25
          %s149 = ssub.s32 256, 256
          %150 = vsyncadd %s143, %s149
          %s151 = smul.addr %s147, 2
          %s152 = smul.addr %s24, 4
          %s153 = sadd.s32 %s151, %s152
          %s154 = smul.addr %s153, 64
          %s155 = scalar_lea.hbm %s0, %s154
          %s156 = sshll.u32 %s146, 4
          %s157 = int_to_ptr.vmem [resolvable:$true] %s156
          %162 = dma.hbm_to_vmem [thread:$0]  %s155, 256, %s157, %s143, 128, 128, 8
        $region20: #{_lambda_.12} parent=15 // pred_fallthru
          _
        // Predicated region
        $region21: #{_lambda_.12} parent=15 // pred_check
          %p163 = pneg %p86
        $region22: #{_lambda_.12} parent=15 // pred_check_branch
          %165 = sbr.rel (%p163) target = $region24
        $region23: #{_lambda_.12} parent=15 // pred_region
          %s166 = sand.u32 %s76, 1
          %s167 = scalar_lea.sflag [#allocation9], %s166
          %s168 = sand.u32 %s76, 1
          %s169 = smul.addr %s168, 16
          %s170 = scalar_lea.vmem [#allocation8], %s169
          %s171 = smul.u32 2, %s26
          %s173 = ssub.s32 256, 256
          %174 = vsyncadd %s167, %s173
          %s175 = smul.addr %s171, 2
          %s176 = smul.addr %s24, 4
          %s177 = sadd.s32 %s175, %s176
          %s178 = smul.addr %s177, 64
          %s179 = scalar_lea.hbm %s1, %s178
          %s180 = sshll.u32 %s170, 4
          %s181 = int_to_ptr.vmem [resolvable:$true] %s180
          %186 = dma.hbm_to_vmem [thread:$0]  %s179, 256, %s181, %s167, 128, 128, 8
        $region24: #{_lambda_.12} parent=15 // pred_fallthru
          _
      $region16: #{_lambda_.12} parent=5 // pred_fallthru
        _
      %p187 = scmp.le.s32.totalorder 1, %s17
      %p188 = scmp.lt.s32.totalorder %s17, 3
      %p189 = pnand %p187, %p188
      %p190 = pneg %p189
      // Predicated region
      $region25: #{_lambda_.12} parent=5 // pred_check
        _
      $region26: #{_lambda_.12} parent=5 // pred_check_branch
        %192 = sbr.rel (%p189) target = $region28
      $region27: #{_lambda_.12} parent=5 // pred_region
        %s193 = ssub.s32 %s17, 1
        %s194 = sand.u32 %s51, 1
        %s195 = scalar_lea.sflag [#allocation6], %s194
        %s196 = sand.u32 %s51, 1
        %s197 = smul.addr %s196, 16
        %s198 = scalar_lea.vmem [#allocation5], %s197
        // Predicated region
        $region29: #{_lambda_.12} parent=27 // pred_check
          %p199 = pneg %p64
        $region30: #{_lambda_.12} parent=27 // pred_check_branch
          %201 = sbr.rel (%p199) target = $region32
        $region31: #{_lambda_.12} parent=27 // pred_region
          %202 = dma.done %s195, 256
        $region32: #{_lambda_.12} parent=27 // pred_fallthru
          _
        %s203 = sand.u32 %s79, 1
        %s204 = scalar_lea.sflag [#allocation9], %s203
        %s205 = sand.u32 %s79, 1
        %s206 = smul.addr %s205, 16
        %s207 = scalar_lea.vmem [#allocation8], %s206
        // Predicated region
        $region33: #{_lambda_.12} parent=27 // pred_check
          %p208 = pneg %p92
        $region34: #{_lambda_.12} parent=27 // pred_check_branch
          %210 = sbr.rel (%p208) target = $region36
        $region35: #{_lambda_.12} parent=27 // pred_region
          %211 = dma.done %s204, 256
        $region36: #{_lambda_.12} parent=27 // pred_fallthru
          _
        %s212 = sand.u32 %s51, 1
        %s213 = scalar_lea.sflag [#allocation6], %s212
        %s214 = sand.u32 %s51, 1
        %s215 = smul.addr %s214, 16
        %s216 = scalar_lea.vmem [#allocation5], %s215
        %p217 = pneg %p64
        %p218 = pneg %p61
        %s219 = sand.u32 %s79, 1
        %s220 = scalar_lea.sflag [#allocation9], %s219
        %s221 = sand.u32 %s79, 1
        %s222 = smul.addr %s221, 16
        %s223 = scalar_lea.vmem [#allocation8], %s222
        %p224 = pneg %p92
        %p225 = pneg %p89
        %p226 = pneg %p120
        %p227 = pneg %p117
        %s228 = sand.u32 %s107, 1
        %s229 = scalar_lea.sflag [#allocation7], %s228
        %s230 = sand.u32 %s107, 1
        %s231 = smul.addr %s230, 8
        %s232 = scalar_lea.vmem [#allocation10], %s231
        %s233 = smul.u32 2, %s28
        %s234 = smul.u32 2, %s29
        %s235 = smul.u32 2, %s28
        %p237 = scmp.eq.s32.totalorder %s29, 0
        // Predicated region
        $region37: #{_lambda_.12} parent=27 // pred_check
          %p238 = pneg %p237
        $region38: #{_lambda_.12} parent=27 // pred_check_branch
          %240 = sbr.rel (%p238) target = $region40
        $region39: #{_lambda_.12} parent=27 // pred_region
          %vm241 = vcmask 7168
          %242 = vst.msk [vmem:[#allocation2] sm:$0xff] %vm241, -inf
          %243 = vst.msk [vmem:[#allocation2 + $0x8] sm:$0xff] %vm241, -inf
          %244 = vst.msk [vmem:[#allocation2 + $0x10] sm:$0xff] %vm241, -inf
          %245 = vst.msk [vmem:[#allocation2 + $0x18] sm:$0xff] %vm241, -inf
          %246 = vst.msk [vmem:[#allocation2 + $0x20] sm:$0xff] %vm241, -inf
          %247 = vst.msk [vmem:[#allocation2 + $0x28] sm:$0xff] %vm241, -inf
          %248 = vst.msk [vmem:[#allocation2 + $0x30] sm:$0xff] %vm241, -inf
          %249 = vst.msk [vmem:[#allocation2 + $0x38] sm:$0xff] %vm241, -inf
          %250 = vst.msk [vmem:[#allocation3] sm:$0xff] %vm241, 0.0
          %251 = vst.msk [vmem:[#allocation3 + $0x8] sm:$0xff] %vm241, 0.0
          %252 = vst.msk [vmem:[#allocation3 + $0x10] sm:$0xff] %vm241, 0.0
          %253 = vst.msk [vmem:[#allocation3 + $0x18] sm:$0xff] %vm241, 0.0
          %254 = vst.msk [vmem:[#allocation3 + $0x20] sm:$0xff] %vm241, 0.0
          %255 = vst.msk [vmem:[#allocation3 + $0x28] sm:$0xff] %vm241, 0.0
          %256 = vst.msk [vmem:[#allocation3 + $0x30] sm:$0xff] %vm241, 0.0
          %257 = vst.msk [vmem:[#allocation3 + $0x38] sm:$0xff] %vm241, 0.0
          %vm258 = vcmask 130048
          %259 = vst.msk [vmem:[#allocation4] sm:$0xff] %vm258, 0.0
          %260 = vst.msk [vmem:[#allocation4 + $0x8] sm:$0xff] %vm258, 0.0
          %261 = vst.msk [vmem:[#allocation4 + $0x10] sm:$0xff] %vm258, 0.0
          %262 = vst.msk [vmem:[#allocation4 + $0x18] sm:$0xff] %vm258, 0.0
          %263 = vst.msk [vmem:[#allocation4 + $0x20] sm:$0xff] %vm258, 0.0
          %264 = vst.msk [vmem:[#allocation4 + $0x28] sm:$0xff] %vm258, 0.0
          %265 = vst.msk [vmem:[#allocation4 + $0x30] sm:$0xff] %vm258, 0.0
          %266 = vst.msk [vmem:[#allocation4 + $0x38] sm:$0xff] %vm258, 0.0
        $region40: #{_lambda_.12} parent=27 // pred_fallthru
          _
        %s267 = smul.u32 %s29, 16
        %s268 = smul.u32 %s28, 16
        %s269 = sadd.s32 %s268, 15
        %p270 = scmp.le.s32.totalorder %s267, %s269
        // Predicated region
        $region41: #{_lambda_.12} parent=27 // pred_check
          %p271 = pneg %p270
        $region42: #{_lambda_.12} parent=27 // pred_check_branch
          %273 = sbr.rel (%p271) target = $region44
        $region43: #{_lambda_.12} parent=27 // pred_region
          %v274 = vld [vmem:[%s198] sm:$0xf]
          %v275 = vld [vmem:[%s198 + $0x8] sm:$0xf]
          %v276 = vld [vmem:[%s207] sm:$0xf]
          %v277 = vld [vmem:[%s207 + $0x8] sm:$0xf]
          %v278 = vld [vmem:[%s207 + $0x4] sm:$0xf]
          %v279 = vld [vmem:[%s207 + $0xc] sm:$0xf]
          %v280 = vlaneseq
          %v281 = vshrl.u32 %v280, 7
          %v282 = vadd.s32 %v281, 8
          %v283 = vstv %s268
          %v284 = vadd.s32 %v283, %v281
          %v285 = vadd.s32 %v283, %v282
          %v286 = vlaneseq
          %v287 = vand.u32 %v286, 127
          %v288 = vstv %s267
          %v289 = vadd.s32 %v288, %v287
          %vm290 = vcmp.le.s32.totalorder %v289, %v284
          %vm291 = vcmp.le.s32.totalorder %v289, %v285
          %v294 = vunpack.c.l.b16 %v274
          %v295 = vunpack.c.l.b16 %v275
          %v296 = vpack.c.b16 %v295, %v294
          %v299 = vunpack.c.l.b16 %v276
          %v300 = vunpack.c.l.b16 %v277
          %v301 = vpack.c.b16 %v300, %v299
          %302 = vrot.lane.b32.xlu0 %v301, 64
          %v303 = vpop.permute.xlu0 %302
          %vm304 = vcmask 130048
          %v306 = vsel %vm304, %v296, 0
          %v309 = vsel %vm304, %v303, 0
          %311 = vmatprep.subr.bf16.mxu0 0
          %312 = vmatpush1.bf16.xpose.msra.mxu0 %v309
          %313 = vmatprep.subr.bf16.mxu0 0
          %314 = vmatpush1.bf16.xpose.msra.mxu0 0
          %315 = vmatprep.subr.bf16.mxu0 0
          %316 = vmatpush1.bf16.xpose.msra.mxu0 0
          %317 = vmatprep.subr.bf16.mxu0 0
          %318 = vmatpush1.bf16.xpose.msra.mxu0 0
          %319 = vmatprep.subr.bf16.mxu0 0
          %320 = vmatpush1.bf16.xpose.msra.mxu0 0
          %321 = vmatprep.subr.bf16.mxu0 0
          %322 = vmatpush1.bf16.xpose.msra.mxu0 0
          %323 = vmatprep.subr.bf16.mxu0 0
          %324 = vmatpush1.bf16.xpose.msra.mxu0 0
          %325 = vmatprep.subr.bf16.mxu0 0
          %326 = vmatpush1.bf16.xpose.msra.mxu0 0
          %327 = vmatprep.subr.bf16.mxu0 0
          %328 = vmatpush1.bf16.xpose.msra.mxu0 0
          %329 = vmatprep.subr.bf16.mxu0 0
          %330 = vmatpush1.bf16.xpose.msra.mxu0 0
          %331 = vmatprep.subr.bf16.mxu0 0
          %332 = vmatpush1.bf16.xpose.msra.mxu0 0
          %333 = vmatprep.subr.bf16.mxu0 0
          %334 = vmatpush1.bf16.xpose.msra.mxu0 0
          %335 = vmatprep.subr.bf16.mxu0 0
          %336 = vmatpush1.bf16.xpose.msra.mxu0 0
          %337 = vmatprep.subr.bf16.mxu0 0
          %338 = vmatpush1.bf16.xpose.msra.mxu0 0
          %339 = vmatprep.subr.bf16.mxu0 0
          %340 = vmatpush1.bf16.xpose.msra.mxu0 0
          %341 = vmatprep.subr.bf16.mxu0 0
          %342 = vmatpush1.bf16.xpose.msra.mxu0 0
          %343 = vmatprep.mubr.bf16.mxu0 0
          %344 = vmatmul.mubr.bf16.gmra.mrb[0].mxu0 %v306
          %v345 = vpop.f32.mrb[0].mxu0
          %v346 = vadd.f32 0.0, %v345
          %v347 = vpop.f32.mrb[0].mxu0
          %v348 = vpop.f32.mrb[0].mxu0
          %v349 = vadd.f32 0.0, %v348
          %v350 = vpop.f32.mrb[0].mxu0
          %351 = vdwg.mxu0
          %v352 = vsel %vm290, %v346, -inf
          %v353 = vsel %vm291, %v349, -inf
          %v354 = vld [vmem:[#allocation2] sm:$0xff]
          %v355 = vld [vmem:[#allocation2 + $0x8] sm:$0xff]
          %v356 = vsel %vm304, %v352, -inf
          %357 = vmax.xlane.f32.xlu0 %v356
          %v358 = vpop.xlane.xlu0 %357
          %v359 = vsel %vm304, %v353, -inf
          %360 = vmax.xlane.f32.xlu0 %v359
          %v361 = vpop.xlane.xlu0 %360
          %v362 = vmax.f32 %v354, %v358
          %v363 = vmax.f32 %v355, %v361
          %v364 = vsub.f32 %v354, %v362
          %v365 = vsub.f32 %v355, %v363
          %v366 = vmul.f32 %v364, 1.442695
          %v367 = vpow.pop %v366
          %v368 = vmul.f32 %v365, 1.442695
          %v369 = vpow.pop %v368
          %371 = vset.pattern.permute.xlu0 0
          %372 = vperm.xlu0 %371, %v362
          %v373 = vpop.permute.xlu0 %372
          %376 = vset.pattern.permute.xlu0 0
          %377 = vperm.xlu0 %376, %v363
          %v378 = vpop.permute.xlu0 %377
          %v380 = vsub.f32 %v352, %v373
          %v381 = vsub.f32 %v353, %v378
          %v382 = vmul.f32 %v380, 1.442695
          %v383 = vpow.pop %v382
          %v384 = vmul.f32 %v381, 1.442695
          %v385 = vpow.pop %v384
          %v386 = vld [vmem:[#allocation3] sm:$0xff]
          %v387 = vld [vmem:[#allocation3 + $0x8] sm:$0xff]
          %v388 = vmul.f32 %v367, %v386
          %v389 = vmul.f32 %v369, %v387
          %v390 = vsel %vm304, %v383, 0.0
          %391 = vadd.xlane.f32.xlu0 %v390
          %v392 = vpop.xlane.xlu0 %391
          %v393 = vsel %vm304, %v385, 0.0
          %394 = vadd.xlane.f32.xlu0 %v393
          %v395 = vpop.xlane.xlu0 %394
          %v396 = vadd.f32 %v388, %v392
          %v397 = vadd.f32 %v389, %v395
          %vm398 = vcmask 7168
          %399 = vst.msk [vmem:[#allocation3] sm:$0xff] %vm398, %v396
          %400 = vst.msk [vmem:[#allocation3 + $0x8] sm:$0xff] %vm398, %v397
          %v401 = vld [vmem:[#allocation4] sm:$0xff]
          %v402 = vld [vmem:[#allocation4 + $0x8] sm:$0xff]
          %404 = vset.pattern.permute.xlu0 0
          %405 = vperm.xlu0 %404, %v367
          %v406 = vpop.permute.xlu0 %405
          %409 = vset.pattern.permute.xlu0 0
          %410 = vperm.xlu0 %409, %v369
          %v411 = vpop.permute.xlu0 %410
          %v413 = vmul.f32 %v406, %v401
          %v414 = vmul.f32 %v411, %v402
          %v415 = vpack.c.bf16 %v385, %v383
          %v418 = vunpack.c.l.b16 %v278
          %v419 = vunpack.c.l.b16 %v279
          %v420 = vpack.c.b16 %v419, %v418
          %v423 = vsel %vm304, %v415, 0
          %425 = vmatprep.subr.bf16.mxu0 0
          %426 = vmatpush1.bf16.msra.mxu0 %v420
          %427 = vmatprep.subr.bf16.mxu0 0
          %428 = vmatpush1.bf16.msra.mxu0 0
          %429 = vmatprep.subr.bf16.mxu0 0
          %430 = vmatpush1.bf16.msra.mxu0 0
          %431 = vmatprep.subr.bf16.mxu0 0
          %432 = vmatpush1.bf16.msra.mxu0 0
          %433 = vmatprep.subr.bf16.mxu0 0
          %434 = vmatpush1.bf16.msra.mxu0 0
          %435 = vmatprep.subr.bf16.mxu0 0
          %436 = vmatpush1.bf16.msra.mxu0 0
          %437 = vmatprep.subr.bf16.mxu0 0
          %438 = vmatpush1.bf16.msra.mxu0 0
          %439 = vmatprep.subr.bf16.mxu0 0
          %440 = vmatpush1.bf16.msra.mxu0 0
          %441 = vmatprep.subr.bf16.mxu0 0
          %442 = vmatpush1.bf16.msra.mxu0 0
          %443 = vmatprep.subr.bf16.mxu0 0
          %444 = vmatpush1.bf16.msra.mxu0 0
          %445 = vmatprep.subr.bf16.mxu0 0
          %446 = vmatpush1.bf16.msra.mxu0 0
          %447 = vmatprep.subr.bf16.mxu0 0
          %448 = vmatpush1.bf16.msra.mxu0 0
          %449 = vmatprep.subr.bf16.mxu0 0
          %450 = vmatpush1.bf16.msra.mxu0 0
          %451 = vmatprep.subr.bf16.mxu0 0
          %452 = vmatpush1.bf16.msra.mxu0 0
          %453 = vmatprep.subr.bf16.mxu0 0
          %454 = vmatpush1.bf16.msra.mxu0 0
          %455 = vmatprep.subr.bf16.mxu0 0
          %456 = vmatpush1.bf16.msra.mxu0 0
          %457 = vmatprep.mubr.bf16.mxu0 0
          %458 = vmatmul.mubr.bf16.gmra.mrb[0].mxu0 %v423
          %v459 = vpop.f32.mrb[0].mxu0
          %v460 = vadd.f32 0.0, %v459
          %v461 = vpop.f32.mrb[0].mxu0
          %v462 = vpop.f32.mrb[0].mxu0
          %v463 = vadd.f32 0.0, %v462
          %v464 = vpop.f32.mrb[0].mxu0
          %465 = vdwg.mxu0
          %v466 = vadd.f32 %v413, %v460
          %v467 = vadd.f32 %v414, %v463
          %468 = vst.msk [vmem:[#allocation4] sm:$0xff] %vm304, %v466
          %469 = vst.msk [vmem:[#allocation4 + $0x8] sm:$0xff] %vm304, %v467
          %470 = vst.msk [vmem:[#allocation2] sm:$0xff] %vm398, %v362
          %471 = vst.msk [vmem:[#allocation2 + $0x8] sm:$0xff] %vm398, %v363
          %472 = vrot.lane.b32.xlu0 %v296, 112
          %v473 = vpop.permute.xlu0 %472
          %474 = vrot.lane.b32.xlu0 %v301, 48
          %v475 = vpop.permute.xlu0 %474
          %v477 = vsel %vm304, %v473, 0
          %v480 = vsel %vm304, %v475, 0
          %482 = vmatprep.subr.bf16.mxu0 0
          %483 = vmatpush1.bf16.xpose.msra.mxu0 %v480
          %484 = vmatprep.subr.bf16.mxu0 0
          %485 = vmatpush1.bf16.xpose.msra.mxu0 0
          %486 = vmatprep.subr.bf16.mxu0 0
          %487 = vmatpush1.bf16.xpose.msra.mxu0 0
          %488 = vmatprep.subr.bf16.mxu0 0
          %489 = vmatpush1.bf16.xpose.msra.mxu0 0
          %490 = vmatprep.subr.bf16.mxu0 0
          %491 = vmatpush1.bf16.xpose.msra.mxu0 0
          %492 = vmatprep.subr.bf16.mxu0 0
          %493 = vmatpush1.bf16.xpose.msra.mxu0 0
          %494 = vmatprep.subr.bf16.mxu0 0
          %495 = vmatpush1.bf16.xpose.msra.mxu0 0
          %496 = vmatprep.subr.bf16.mxu0 0
          %497 = vmatpush1.bf16.xpose.msra.mxu0 0
          %498 = vmatprep.subr.bf16.mxu0 0
          %499 = vmatpush1.bf16.xpose.msra.mxu0 0
          %500 = vmatprep.subr.bf16.mxu0 0
          %501 = vmatpush1.bf16.xpose.msra.mxu0 0
          %502 = vmatprep.subr.bf16.mxu0 0
          %503 = vmatpush1.bf16.xpose.msra.mxu0 0
          %504 = vmatprep.subr.bf16.mxu0 0
          %505 = vmatpush1.bf16.xpose.msra.mxu0 0
          %506 = vmatprep.subr.bf16.mxu0 0
          %507 = vmatpush1.bf16.xpose.msra.mxu0 0
          %508 = vmatprep.subr.bf16.mxu0 0
          %509 = vmatpush1.bf16.xpose.msra.mxu0 0
          %510 = vmatprep.subr.bf16.mxu0 0
          %511 = vmatpush1.bf16.xpose.msra.mxu0 0
          %512 = vmatprep.subr.bf16.mxu0 0
          %513 = vmatpush1.bf16.xpose.msra.mxu0 0
          %514 = vmatprep.mubr.bf16.mxu0 0
          %515 = vmatmul.mubr.bf16.gmra.mrb[0].mxu0 %v477
          %v516 = vpop.f32.mrb[0].mxu0
          %v517 = vadd.f32 0.0, %v516
          %v518 = vpop.f32.mrb[0].mxu0
          %v519 = vpop.f32.mrb[0].mxu0
          %v520 = vadd.f32 0.0, %v519
          %v521 = vpop.f32.mrb[0].mxu0
          %522 = vdwg.mxu0
          %v523 = vsel %vm290, %v517, -inf
          %v524 = vsel %vm291, %v520, -inf
          %s525 = scalar_lea.vmem [#allocation2], 16
          %v526 = vld [vmem:[%s525] sm:$0xff]
          %v527 = vld [vmem:[%s525 + $0x8] sm:$0xff]
          %v528 = vsel %vm304, %v523, -inf
          %529 = vmax.xlane.f32.xlu0 %v528
          %v530 = vpop.xlane.xlu0 %529
          %v531 = vsel %vm304, %v524, -inf
          %532 = vmax.xlane.f32.xlu0 %v531
          %v533 = vpop.xlane.xlu0 %532
          %v534 = vmax.f32 %v526, %v530
          %v535 = vmax.f32 %v527, %v533
          %v536 = vsub.f32 %v526, %v534
          %v537 = vsub.f32 %v527, %v535
          %v538 = vmul.f32 %v536, 1.442695
          %v539 = vpow.pop %v538
          %v540 = vmul.f32 %v537, 1.442695
          %v541 = vpow.pop %v540
          %543 = vset.pattern.permute.xlu0 0
          %544 = vperm.xlu0 %543, %v534
          %v545 = vpop.permute.xlu0 %544
          %548 = vset.pattern.permute.xlu0 0
          %549 = vperm.xlu0 %548, %v535
          %v550 = vpop.permute.xlu0 %549
          %v552 = vsub.f32 %v523, %v545
          %v553 = vsub.f32 %v524, %v550
          %v554 = vmul.f32 %v552, 1.442695
          %v555 = vpow.pop %v554
          %v556 = vmul.f32 %v553, 1.442695
          %v557 = vpow.pop %v556
          %s558 = scalar_lea.vmem [#allocation3], 16
          %v559 = vld [vmem:[%s558] sm:$0xff]
          %v560 = vld [vmem:[%s558 + $0x8] sm:$0xff]
          %v561 = vmul.f32 %v539, %v559
          %v562 = vmul.f32 %v541, %v560
          %v563 = vsel %vm304, %v555, 0.0
          %564 = vadd.xlane.f32.xlu0 %v563
          %v565 = vpop.xlane.xlu0 %564
          %v566 = vsel %vm304, %v557, 0.0
          %567 = vadd.xlane.f32.xlu0 %v566
          %v568 = vpop.xlane.xlu0 %567
          %v569 = vadd.f32 %v561, %v565
          %v570 = vadd.f32 %v562, %v568
          %571 = vst.msk [vmem:[%s558] sm:$0xff] %vm398, %v569
          %572 = vst.msk [vmem:[%s558 + $0x8] sm:$0xff] %vm398, %v570
          %s573 = scalar_lea.vmem [#allocation4], 16
          %v574 = vld [vmem:[%s573] sm:$0xff]
          %v575 = vld [vmem:[%s573 + $0x8] sm:$0xff]
          %577 = vset.pattern.permute.xlu0 0
          %578 = vperm.xlu0 %577, %v539
          %v579 = vpop.permute.xlu0 %578
          %582 = vset.pattern.permute.xlu0 0
          %583 = vperm.xlu0 %582, %v541
          %v584 = vpop.permute.xlu0 %583
          %v586 = vmul.f32 %v579, %v574
          %v587 = vmul.f32 %v584, %v575
          %v588 = vpack.c.bf16 %v557, %v555
          %589 = vrot.lane.b32.xlu0 %v420, 112
          %v590 = vpop.permute.xlu0 %589
          %v593 = vsel %vm304, %v588, 0
          %595 = vmatprep.subr.bf16.mxu0 0
          %596 = vmatpush1.bf16.msra.mxu0 %v590
          %597 = vmatprep.subr.bf16.mxu0 0
          %598 = vmatpush1.bf16.msra.mxu0 0
          %599 = vmatprep.subr.bf16.mxu0 0
          %600 = vmatpush1.bf16.msra.mxu0 0
          %601 = vmatprep.subr.bf16.mxu0 0
          %602 = vmatpush1.bf16.msra.mxu0 0
          %603 = vmatprep.subr.bf16.mxu0 0
          %604 = vmatpush1.bf16.msra.mxu0 0
          %605 = vmatprep.subr.bf16.mxu0 0
          %606 = vmatpush1.bf16.msra.mxu0 0
          %607 = vmatprep.subr.bf16.mxu0 0
          %608 = vmatpush1.bf16.msra.mxu0 0
          %609 = vmatprep.subr.bf16.mxu0 0
          %610 = vmatpush1.bf16.msra.mxu0 0
          %611 = vmatprep.subr.bf16.mxu0 0
          %612 = vmatpush1.bf16.msra.mxu0 0
          %613 = vmatprep.subr.bf16.mxu0 0
          %614 = vmatpush1.bf16.msra.mxu0 0
          %615 = vmatprep.subr.bf16.mxu0 0
          %616 = vmatpush1.bf16.msra.mxu0 0
          %617 = vmatprep.subr.bf16.mxu0 0
          %618 = vmatpush1.bf16.msra.mxu0 0
          %619 = vmatprep.subr.bf16.mxu0 0
          %620 = vmatpush1.bf16.msra.mxu0 0
          %621 = vmatprep.subr.bf16.mxu0 0
          %622 = vmatpush1.bf16.msra.mxu0 0
          %623 = vmatprep.subr.bf16.mxu0 0
          %624 = vmatpush1.bf16.msra.mxu0 0
          %625 = vmatprep.subr.bf16.mxu0 0
          %626 = vmatpush1.bf16.msra.mxu0 0
          %627 = vmatprep.mubr.bf16.mxu0 0
          %628 = vmatmul.mubr.bf16.gmra.mrb[0].mxu0 %v593
          %v629 = vpop.f32.mrb[0].mxu0
          %v630 = vadd.f32 0.0, %v629
          %v631 = vpop.f32.mrb[0].mxu0
          %v632 = vpop.f32.mrb[0].mxu0
          %v633 = vadd.f32 0.0, %v632
          %v634 = vpop.f32.mrb[0].mxu0
          %635 = vdwg.mxu0
          %v636 = vadd.f32 %v586, %v630
          %v637 = vadd.f32 %v587, %v633
          %638 = vst.msk [vmem:[%s573] sm:$0xff] %vm304, %v636
          %639 = vst.msk [vmem:[%s573 + $0x8] sm:$0xff] %vm304, %v637
          %640 = vst.msk [vmem:[%s525] sm:$0xff] %vm398, %v534
          %641 = vst.msk [vmem:[%s525 + $0x8] sm:$0xff] %vm398, %v535
          %642 = vrot.lane.b32.xlu0 %v296, 96
          %v643 = vpop.permute.xlu0 %642
          %644 = vrot.lane.b32.xlu0 %v301, 32
          %v645 = vpop.permute.xlu0 %644
          %v647 = vsel %vm304, %v643, 0
          %v650 = vsel %vm304, %v645, 0
          %652 = vmatprep.subr.bf16.mxu0 0
          %653 = vmatpush1.bf16.xpose.msra.mxu0 %v650
          %654 = vmatprep.subr.bf16.mxu0 0
          %655 = vmatpush1.bf16.xpose.msra.mxu0 0
          %656 = vmatprep.subr.bf16.mxu0 0
          %657 = vmatpush1.bf16.xpose.msra.mxu0 0
          %658 = vmatprep.subr.bf16.mxu0 0
          %659 = vmatpush1.bf16.xpose.msra.mxu0 0
          %660 = vmatprep.subr.bf16.mxu0 0
          %661 = vmatpush1.bf16.xpose.msra.mxu0 0
          %662 = vmatprep.subr.bf16.mxu0 0
          %663 = vmatpush1.bf16.xpose.msra.mxu0 0
          %664 = vmatprep.subr.bf16.mxu0 0
          %665 = vmatpush1.bf16.xpose.msra.mxu0 0
          %666 = vmatprep.subr.bf16.mxu0 0
          %667 = vmatpush1.bf16.xpose.msra.mxu0 0
          %668 = vmatprep.subr.bf16.mxu0 0
          %669 = vmatpush1.bf16.xpose.msra.mxu0 0
          %670 = vmatprep.subr.bf16.mxu0 0
          %671 = vmatpush1.bf16.xpose.msra.mxu0 0
          %672 = vmatprep.subr.bf16.mxu0 0
          %673 = vmatpush1.bf16.xpose.msra.mxu0 0
          %674 = vmatprep.subr.bf16.mxu0 0
          %675 = vmatpush1.bf16.xpose.msra.mxu0 0
          %676 = vmatprep.subr.bf16.mxu0 0
          %677 = vmatpush1.bf16.xpose.msra.mxu0 0
          %678 = vmatprep.subr.bf16.mxu0 0
          %679 = vmatpush1.bf16.xpose.msra.mxu0 0
          %680 = vmatprep.subr.bf16.mxu0 0
          %681 = vmatpush1.bf16.xpose.msra.mxu0 0
          %682 = vmatprep.subr.bf16.mxu0 0
          %683 = vmatpush1.bf16.xpose.msra.mxu0 0
          %684 = vmatprep.mubr.bf16.mxu0 0
          %685 = vmatmul.mubr.bf16.gmra.mrb[0].mxu0 %v647
          %v686 = vpop.f32.mrb[0].mxu0
          %v687 = vadd.f32 0.0, %v686
          %v688 = vpop.f32.mrb[0].mxu0
          %v689 = vpop.f32.mrb[0].mxu0
          %v690 = vadd.f32 0.0, %v689
          %v691 = vpop.f32.mrb[0].mxu0
          %692 = vdwg.mxu0
          %v693 = vsel %vm290, %v687, -inf
          %v694 = vsel %vm291, %v690, -inf
          %s695 = scalar_lea.vmem [#allocation2], 32
          %v696 = vld [vmem:[%s695] sm:$0xff]
          %v697 = vld [vmem:[%s695 + $0x8] sm:$0xff]
          %v698 = vsel %vm304, %v693, -inf
          %699 = vmax.xlane.f32.xlu0 %v698
          %v700 = vpop.xlane.xlu0 %699
          %v701 = vsel %vm304, %v694, -inf
          %702 = vmax.xlane.f32.xlu0 %v701
          %v703 = vpop.xlane.xlu0 %702
          %v704 = vmax.f32 %v696, %v700
          %v705 = vmax.f32 %v697, %v703
          %v706 = vsub.f32 %v696, %v704
          %v707 = vsub.f32 %v697, %v705
          %v708 = vmul.f32 %v706, 1.442695
          %v709 = vpow.pop %v708
          %v710 = vmul.f32 %v707, 1.442695
          %v711 = vpow.pop %v710
          %713 = vset.pattern.permute.xlu0 0
          %714 = vperm.xlu0 %713, %v704
          %v715 = vpop.permute.xlu0 %714
          %718 = vset.pattern.permute.xlu0 0
          %719 = vperm.xlu0 %718, %v705
          %v720 = vpop.permute.xlu0 %719
          %v722 = vsub.f32 %v693, %v715
          %v723 = vsub.f32 %v694, %v720
          %v724 = vmul.f32 %v722, 1.442695
          %v725 = vpow.pop %v724
          %v726 = vmul.f32 %v723, 1.442695
          %v727 = vpow.pop %v726
          %s728 = scalar_lea.vmem [#allocation3], 32
          %v729 = vld [vmem:[%s728] sm:$0xff]
          %v730 = vld [vmem:[%s728 + $0x8] sm:$0xff]
          %v731 = vmul.f32 %v709, %v729
          %v732 = vmul.f32 %v711, %v730
          %v733 = vsel %vm304, %v725, 0.0
          %734 = vadd.xlane.f32.xlu0 %v733
          %v735 = vpop.xlane.xlu0 %734
          %v736 = vsel %vm304, %v727, 0.0
          %737 = vadd.xlane.f32.xlu0 %v736
          %v738 = vpop.xlane.xlu0 %737
          %v739 = vadd.f32 %v731, %v735
          %v740 = vadd.f32 %v732, %v738
          %741 = vst.msk [vmem:[%s728] sm:$0xff] %vm398, %v739
          %742 = vst.msk [vmem:[%s728 + $0x8] sm:$0xff] %vm398, %v740
          %s743 = scalar_lea.vmem [#allocation4], 32
          %v744 = vld [vmem:[%s743] sm:$0xff]
          %v745 = vld [vmem:[%s743 + $0x8] sm:$0xff]
          %747 = vset.pattern.permute.xlu0 0
          %748 = vperm.xlu0 %747, %v709
          %v749 = vpop.permute.xlu0 %748
          %752 = vset.pattern.permute.xlu0 0
          %753 = vperm.xlu0 %752, %v711
          %v754 = vpop.permute.xlu0 %753
          %v756 = vmul.f32 %v749, %v744
          %v757 = vmul.f32 %v754, %v745
          %v758 = vpack.c.bf16 %v727, %v725
          %759 = vrot.lane.b32.xlu0 %v420, 96
          %v760 = vpop.permute.xlu0 %759
          %v763 = vsel %vm304, %v758, 0
          %765 = vmatprep.subr.bf16.mxu0 0
          %766 = vmatpush1.bf16.msra.mxu0 %v760
          %767 = vmatprep.subr.bf16.mxu0 0
          %768 = vmatpush1.bf16.msra.mxu0 0
          %769 = vmatprep.subr.bf16.mxu0 0
          %770 = vmatpush1.bf16.msra.mxu0 0
          %771 = vmatprep.subr.bf16.mxu0 0
          %772 = vmatpush1.bf16.msra.mxu0 0
          %773 = vmatprep.subr.bf16.mxu0 0
          %774 = vmatpush1.bf16.msra.mxu0 0
          %775 = vmatprep.subr.bf16.mxu0 0
          %776 = vmatpush1.bf16.msra.mxu0 0
          %777 = vmatprep.subr.bf16.mxu0 0
          %778 = vmatpush1.bf16.msra.mxu0 0
          %779 = vmatprep.subr.bf16.mxu0 0
          %780 = vmatpush1.bf16.msra.mxu0 0
          %781 = vmatprep.subr.bf16.mxu0 0
          %782 = vmatpush1.bf16.msra.mxu0 0
          %783 = vmatprep.subr.bf16.mxu0 0
          %784 = vmatpush1.bf16.msra.mxu0 0
          %785 = vmatprep.subr.bf16.mxu0 0
          %786 = vmatpush1.bf16.msra.mxu0 0
          %787 = vmatprep.subr.bf16.mxu0 0
          %788 = vmatpush1.bf16.msra.mxu0 0
          %789 = vmatprep.subr.bf16.mxu0 0
          %790 = vmatpush1.bf16.msra.mxu0 0
          %791 = vmatprep.subr.bf16.mxu0 0
          %792 = vmatpush1.bf16.msra.mxu0 0
          %793 = vmatprep.subr.bf16.mxu0 0
          %794 = vmatpush1.bf16.msra.mxu0 0
          %795 = vmatprep.subr.bf16.mxu0 0
          %796 = vmatpush1.bf16.msra.mxu0 0
          %797 = vmatprep.mubr.bf16.mxu0 0
          %798 = vmatmul.mubr.bf16.gmra.mrb[0].mxu0 %v763
          %v799 = vpop.f32.mrb[0].mxu0
          %v800 = vadd.f32 0.0, %v799
          %v801 = vpop.f32.mrb[0].mxu0
          %v802 = vpop.f32.mrb[0].mxu0
          %v803 = vadd.f32 0.0, %v802
          %v804 = vpop.f32.mrb[0].mxu0
          %805 = vdwg.mxu0
          %v806 = vadd.f32 %v756, %v800
          %v807 = vadd.f32 %v757, %v803
          %808 = vst.msk [vmem:[%s743] sm:$0xff] %vm304, %v806
          %809 = vst.msk [vmem:[%s743 + $0x8] sm:$0xff] %vm304, %v807
          %810 = vst.msk [vmem:[%s695] sm:$0xff] %vm398, %v704
          %811 = vst.msk [vmem:[%s695 + $0x8] sm:$0xff] %vm398, %v705
          %812 = vrot.lane.b32.xlu0 %v296, 80
          %v813 = vpop.permute.xlu0 %812
          %814 = vrot.lane.b32.xlu0 %v301, 16
          %v815 = vpop.permute.xlu0 %814
          %v817 = vsel %vm304, %v813, 0
          %v820 = vsel %vm304, %v815, 0
          %822 = vmatprep.subr.bf16.mxu0 0
          %823 = vmatpush1.bf16.xpose.msra.mxu0 %v820
          %824 = vmatprep.subr.bf16.mxu0 0
          %825 = vmatpush1.bf16.xpose.msra.mxu0 0
          %826 = vmatprep.subr.bf16.mxu0 0
          %827 = vmatpush1.bf16.xpose.msra.mxu0 0
          %828 = vmatprep.subr.bf16.mxu0 0
          %829 = vmatpush1.bf16.xpose.msra.mxu0 0
          %830 = vmatprep.subr.bf16.mxu0 0
          %831 = vmatpush1.bf16.xpose.msra.mxu0 0
          %832 = vmatprep.subr.bf16.mxu0 0
          %833 = vmatpush1.bf16.xpose.msra.mxu0 0
          %834 = vmatprep.subr.bf16.mxu0 0
          %835 = vmatpush1.bf16.xpose.msra.mxu0 0
          %836 = vmatprep.subr.bf16.mxu0 0
          %837 = vmatpush1.bf16.xpose.msra.mxu0 0
          %838 = vmatprep.subr.bf16.mxu0 0
          %839 = vmatpush1.bf16.xpose.msra.mxu0 0
          %840 = vmatprep.subr.bf16.mxu0 0
          %841 = vmatpush1.bf16.xpose.msra.mxu0 0
          %842 = vmatprep.subr.bf16.mxu0 0
          %843 = vmatpush1.bf16.xpose.msra.mxu0 0
          %844 = vmatprep.subr.bf16.mxu0 0
          %845 = vmatpush1.bf16.xpose.msra.mxu0 0
          %846 = vmatprep.subr.bf16.mxu0 0
          %847 = vmatpush1.bf16.xpose.msra.mxu0 0
          %848 = vmatprep.subr.bf16.mxu0 0
          %849 = vmatpush1.bf16.xpose.msra.mxu0 0
          %850 = vmatprep.subr.bf16.mxu0 0
          %851 = vmatpush1.bf16.xpose.msra.mxu0 0
          %852 = vmatprep.subr.bf16.mxu0 0
          %853 = vmatpush1.bf16.xpose.msra.mxu0 0
          %854 = vmatprep.mubr.bf16.mxu0 0
          %855 = vmatmul.mubr.bf16.gmra.mrb[0].mxu0 %v817
          %v856 = vpop.f32.mrb[0].mxu0
          %v857 = vadd.f32 0.0, %v856
          %v858 = vpop.f32.mrb[0].mxu0
          %v859 = vpop.f32.mrb[0].mxu0
          %v860 = vadd.f32 0.0, %v859
          %v861 = vpop.f32.mrb[0].mxu0
          %862 = vdwg.mxu0
          %v863 = vsel %vm290, %v857, -inf
          %v864 = vsel %vm291, %v860, -inf
          %s865 = scalar_lea.vmem [#allocation2], 48
          %v866 = vld [vmem:[%s865] sm:$0xff]
          %v867 = vld [vmem:[%s865 + $0x8] sm:$0xff]
          %v868 = vsel %vm304, %v863, -inf
          %869 = vmax.xlane.f32.xlu0 %v868
          %v870 = vpop.xlane.xlu0 %869
          %v871 = vsel %vm304, %v864, -inf
          %872 = vmax.xlane.f32.xlu0 %v871
          %v873 = vpop.xlane.xlu0 %872
          %v874 = vmax.f32 %v866, %v870
          %v875 = vmax.f32 %v867, %v873
          %v876 = vsub.f32 %v866, %v874
          %v877 = vsub.f32 %v867, %v875
          %v878 = vmul.f32 %v876, 1.442695
          %v879 = vpow.pop %v878
          %v880 = vmul.f32 %v877, 1.442695
          %v881 = vpow.pop %v880
          %883 = vset.pattern.permute.xlu0 0
          %884 = vperm.xlu0 %883, %v874
          %v885 = vpop.permute.xlu0 %884
          %888 = vset.pattern.permute.xlu0 0
          %889 = vperm.xlu0 %888, %v875
          %v890 = vpop.permute.xlu0 %889
          %v892 = vsub.f32 %v863, %v885
          %v893 = vsub.f32 %v864, %v890
          %v894 = vmul.f32 %v892, 1.442695
          %v895 = vpow.pop %v894
          %v896 = vmul.f32 %v893, 1.442695
          %v897 = vpow.pop %v896
          %s898 = scalar_lea.vmem [#allocation3], 48
          %v899 = vld [vmem:[%s898] sm:$0xff]
          %v900 = vld [vmem:[%s898 + $0x8] sm:$0xff]
          %v901 = vmul.f32 %v879, %v899
          %v902 = vmul.f32 %v881, %v900
          %v903 = vsel %vm304, %v895, 0.0
          %904 = vadd.xlane.f32.xlu0 %v903
          %v905 = vpop.xlane.xlu0 %904
          %v906 = vsel %vm304, %v897, 0.0
          %907 = vadd.xlane.f32.xlu0 %v906
          %v908 = vpop.xlane.xlu0 %907
          %v909 = vadd.f32 %v901, %v905
          %v910 = vadd.f32 %v902, %v908
          %911 = vst.msk [vmem:[%s898] sm:$0xff] %vm398, %v909
          %912 = vst.msk [vmem:[%s898 + $0x8] sm:$0xff] %vm398, %v910
          %s913 = scalar_lea.vmem [#allocation4], 48
          %v914 = vld [vmem:[%s913] sm:$0xff]
          %v915 = vld [vmem:[%s913 + $0x8] sm:$0xff]
          %917 = vset.pattern.permute.xlu0 0
          %918 = vperm.xlu0 %917, %v879
          %v919 = vpop.permute.xlu0 %918
          %922 = vset.pattern.permute.xlu0 0
          %923 = vperm.xlu0 %922, %v881
          %v924 = vpop.permute.xlu0 %923
          %v926 = vmul.f32 %v919, %v914
          %v927 = vmul.f32 %v924, %v915
          %v928 = vpack.c.bf16 %v897, %v895
          %929 = vrot.lane.b32.xlu0 %v420, 80
          %v930 = vpop.permute.xlu0 %929
          %v933 = vsel %vm304, %v928, 0
          %935 = vmatprep.subr.bf16.mxu0 0
          %936 = vmatpush1.bf16.msra.mxu0 %v930
          %937 = vmatprep.subr.bf16.mxu0 0
          %938 = vmatpush1.bf16.msra.mxu0 0
          %939 = vmatprep.subr.bf16.mxu0 0
          %940 = vmatpush1.bf16.msra.mxu0 0
          %941 = vmatprep.subr.bf16.mxu0 0
          %942 = vmatpush1.bf16.msra.mxu0 0
          %943 = vmatprep.subr.bf16.mxu0 0
          %944 = vmatpush1.bf16.msra.mxu0 0
          %945 = vmatprep.subr.bf16.mxu0 0
          %946 = vmatpush1.bf16.msra.mxu0 0
          %947 = vmatprep.subr.bf16.mxu0 0
          %948 = vmatpush1.bf16.msra.mxu0 0
          %949 = vmatprep.subr.bf16.mxu0 0
          %950 = vmatpush1.bf16.msra.mxu0 0
          %951 = vmatprep.subr.bf16.mxu0 0
          %952 = vmatpush1.bf16.msra.mxu0 0
          %953 = vmatprep.subr.bf16.mxu0 0
          %954 = vmatpush1.bf16.msra.mxu0 0
          %955 = vmatprep.subr.bf16.mxu0 0
          %956 = vmatpush1.bf16.msra.mxu0 0
          %957 = vmatprep.subr.bf16.mxu0 0
          %958 = vmatpush1.bf16.msra.mxu0 0
          %959 = vmatprep.subr.bf16.mxu0 0
          %960 = vmatpush1.bf16.msra.mxu0 0
          %961 = vmatprep.subr.bf16.mxu0 0
          %962 = vmatpush1.bf16.msra.mxu0 0
          %963 = vmatprep.subr.bf16.mxu0 0
          %964 = vmatpush1.bf16.msra.mxu0 0
          %965 = vmatprep.subr.bf16.mxu0 0
          %966 = vmatpush1.bf16.msra.mxu0 0
          %967 = vmatprep.mubr.bf16.mxu0 0
          %968 = vmatmul.mubr.bf16.gmra.mrb[0].mxu0 %v933
          %v969 = vpop.f32.mrb[0].mxu0
          %v970 = vadd.f32 0.0, %v969
          %v971 = vpop.f32.mrb[0].mxu0
          %v972 = vpop.f32.mrb[0].mxu0
          %v973 = vadd.f32 0.0, %v972
          %v974 = vpop.f32.mrb[0].mxu0
          %975 = vdwg.mxu0
          %v976 = vadd.f32 %v926, %v970
          %v977 = vadd.f32 %v927, %v973
          %978 = vst.msk [vmem:[%s913] sm:$0xff] %vm304, %v976
          %979 = vst.msk [vmem:[%s913 + $0x8] sm:$0xff] %vm304, %v977
          %980 = vst.msk [vmem:[%s865] sm:$0xff] %vm398, %v874
          %981 = vst.msk [vmem:[%s865 + $0x8] sm:$0xff] %vm398, %v875
        $region44: #{_lambda_.12} parent=27 // pred_fallthru
          _
        // Predicated region
        $region45: #{_lambda_.12} parent=27 // pred_check
          %p982 = pneg %p237
        $region46: #{_lambda_.12} parent=27 // pred_check_branch
          %984 = sbr.rel (%p982) target = $region48
        $region47: #{_lambda_.12} parent=27 // pred_region
          %v985 = vld [vmem:[#allocation4] sm:$0xff]
          %v986 = vld [vmem:[#allocation4 + $0x8] sm:$0xff]
          %v987 = vld [vmem:[#allocation3] sm:$0xff]
          %v988 = vld [vmem:[#allocation3 + $0x8] sm:$0xff]
          %v989 = vrcp.pop %v987
          %v990 = vrcp.pop %v988
          %992 = vset.pattern.permute.xlu0 0
          %993 = vperm.xlu0 %992, %v989
          %v994 = vpop.permute.xlu0 %993
          %997 = vset.pattern.permute.xlu0 0
          %998 = vperm.xlu0 %997, %v990
          %v999 = vpop.permute.xlu0 %998
          %v1001 = vmul.f32 %v985, %v994
          %v1002 = vmul.f32 %v986, %v999
          %s1003 = scalar_lea.vmem [#allocation4], 16
          %v1004 = vld [vmem:[%s1003] sm:$0xff]
          %v1005 = vld [vmem:[%s1003 + $0x8] sm:$0xff]
          %s1006 = scalar_lea.vmem [#allocation3], 16
          %v1007 = vld [vmem:[%s1006] sm:$0xff]
          %v1008 = vld [vmem:[%s1006 + $0x8] sm:$0xff]
          %v1009 = vrcp.pop %v1007
          %v1010 = vrcp.pop %v1008
          %1012 = vset.pattern.permute.xlu0 0
          %1013 = vperm.xlu0 %1012, %v1009
          %v1014 = vpop.permute.xlu0 %1013
          %1017 = vset.pattern.permute.xlu0 0
          %1018 = vperm.xlu0 %1017, %v1010
          %v1019 = vpop.permute.xlu0 %1018
          %v1021 = vmul.f32 %v1004, %v1014
          %v1022 = vmul.f32 %v1005, %v1019
          %s1023 = scalar_lea.vmem [#allocation4], 32
          %v1024 = vld [vmem:[%s1023] sm:$0xff]
          %v1025 = vld [vmem:[%s1023 + $0x8] sm:$0xff]
          %s1026 = scalar_lea.vmem [#allocation3], 32
          %v1027 = vld [vmem:[%s1026] sm:$0xff]
          %v1028 = vld [vmem:[%s1026 + $0x8] sm:$0xff]
          %v1029 = vrcp.pop %v1027
          %v1030 = vrcp.pop %v1028
          %1032 = vset.pattern.permute.xlu0 0
          %1033 = vperm.xlu0 %1032, %v1029
          %v1034 = vpop.permute.xlu0 %1033
          %1037 = vset.pattern.permute.xlu0 0
          %1038 = vperm.xlu0 %1037, %v1030
          %v1039 = vpop.permute.xlu0 %1038
          %v1041 = vmul.f32 %v1024, %v1034
          %v1042 = vmul.f32 %v1025, %v1039
          %s1043 = scalar_lea.vmem [#allocation4], 48
          %v1044 = vld [vmem:[%s1043] sm:$0xff]
          %v1045 = vld [vmem:[%s1043 + $0x8] sm:$0xff]
          %s1046 = scalar_lea.vmem [#allocation3], 48
          %v1047 = vld [vmem:[%s1046] sm:$0xff]
          %v1048 = vld [vmem:[%s1046 + $0x8] sm:$0xff]
          %v1049 = vrcp.pop %v1047
          %v1050 = vrcp.pop %v1048
          %1052 = vset.pattern.permute.xlu0 0
          %1053 = vperm.xlu0 %1052, %v1049
          %v1054 = vpop.permute.xlu0 %1053
          %1057 = vset.pattern.permute.xlu0 0
          %1058 = vperm.xlu0 %1057, %v1050
          %v1059 = vpop.permute.xlu0 %1058
          %v1061 = vmul.f32 %v1044, %v1054
          %v1062 = vmul.f32 %v1045, %v1059
          %1065 = vrot.lane.b32.xlu0 %v1021, 16
          %v1066 = vpop.permute.xlu0 %1065
          %1067 = vrot.lane.b32.xlu0 %v1022, 16
          %v1068 = vpop.permute.xlu0 %1067
          %1073 = vrot.lane.b32.xlu0 %v1041, 32
          %v1074 = vpop.permute.xlu0 %1073
          %1075 = vrot.lane.b32.xlu0 %v1042, 32
          %v1076 = vpop.permute.xlu0 %1075
          %1081 = vrot.lane.b32.xlu0 %v1061, 48
          %v1082 = vpop.permute.xlu0 %1081
          %1083 = vrot.lane.b32.xlu0 %v1062, 48
          %v1084 = vpop.permute.xlu0 %1083
          %vm1087 = vcmask 130048
          %v1088 = vsel %vm1087, %v1001, %v1066
          %v1089 = vsel %vm1087, %v1002, %v1068
          %vm1090 = vcmask 261120
          %v1091 = vsel %vm1090, %v1088, %v1074
          %v1092 = vsel %vm1090, %v1089, %v1076
          %vm1093 = vcmask 392192
          %v1094 = vsel %vm1093, %v1091, %v1082
          %v1095 = vsel %vm1093, %v1092, %v1084
          %v1096 = vpack.c.bf16 %v1095, %v1094
          %v1098 = vunpack.c.l.b16 %v1096
          %v1099 = vunpack.c.h.b16 %v1096
          %v1100 = vpack.c.b16 %v1098, %v1098
          %v1101 = vpack.c.b16 %v1099, %v1099
          %vm1104 = vcmask 519168
          %1105 = vst.msk [vmem:[%s232] sm:$0xf] %vm1104, %v1100
          %1106 = vst.msk [vmem:[%s232 + $0x4] sm:$0xf] %vm1104, %v1101
        $region48: #{_lambda_.12} parent=27 // pred_fallthru
          _
        %s1107 = sand.u32 %s107, 1
        %s1108 = scalar_lea.sflag [#allocation7], %s1107
        %s1109 = sand.u32 %s107, 1
        %s1110 = smul.addr %s1109, 8
        %s1111 = scalar_lea.vmem [#allocation10], %s1110
        // Predicated region
        $region49: #{_lambda_.12} parent=27 // pred_check
          %p1112 = pneg %p117
        $region50: #{_lambda_.12} parent=27 // pred_check_branch
          %1114 = sbr.rel (%p1112) target = $region52
        $region51: #{_lambda_.12} parent=27 // pred_region
          %s1115 = smul.u32 2, %s28
          %s1117 = ssub.s32 128, 128
          %1118 = vsyncadd %s1108, %s1117
          %s1119 = smul.addr %s27, 2
          %s1120 = sadd.s32 %s1115, %s1119
          %s1121 = smul.addr %s1120, 64
          %s1122 = scalar_lea.hbm %s2, %s1121
          %s1123 = sshll.u32 %s1111, 4
          %s1124 = int_to_ptr.vmem [resolvable:$true] %s1123
          %1129 = dma.vmem_to_hbm [thread:$0]  %s1124, 128, %s1122, %s1108, 64, 64, 4
        $region52: #{_lambda_.12} parent=27 // pred_fallthru
          _
      $region28: #{_lambda_.12} parent=5 // pred_fallthru
        _
      %p1130 = scmp.le.s32.totalorder 2, %s17
      // Predicated region
      $region53: #{_lambda_.12} parent=5 // pred_check
        %p1131 = pneg %p1130
      $region54: #{_lambda_.12} parent=5 // pred_check_branch
        %1133 = sbr.rel (%p1131) target = $region56
      $region55: #{_lambda_.12} parent=5 // pred_region
        %s1134 = ssub.s32 %s17, 2
        // Predicated region
        $region57: #{_lambda_.12} parent=55 // pred_check
          %p1135 = pneg %p123
        $region58: #{_lambda_.12} parent=55 // pred_check_branch
          %1137 = sbr.rel (%p1135) target = $region60
        $region59: #{_lambda_.12} parent=55 // pred_region
          %s1138 = sand.u32 %s108, 1
          %s1139 = scalar_lea.sflag [#allocation7], %s1138
          %s1140 = sand.u32 %s108, 1
          %s1141 = smul.addr %s1140, 8
          %s1142 = scalar_lea.vmem [#allocation10], %s1141
          %1143 = dma.done %s1139, 128
        $region60: #{_lambda_.12} parent=55 // pred_fallthru
          _
      $region56: #{_lambda_.12} parent=5 // pred_fallthru
        _
    $region6: #{_lambda_.12} parent=1 // loop_footer
      %s21 = sadd.s32 1, %s17
    $region7: #{_lambda_.12} parent=1 // loop_footer_branch
      %16 = sbr.rel target = $region3
    $region8: #{_lambda_.12} parent=1 // loop_exit
      _
    %1144 = vsyncpa [#allocation6], 1
    %s1145 = scalar_lea.sflag [#allocation6], 1
    %1146 = vsyncpa %s1145, 1
    %1147 = vsyncpa [#allocation9], 1
    %s1148 = scalar_lea.sflag [#allocation9], 1
    %1149 = vsyncpa %s1148, 1
    %1150 = vsyncpa [#allocation7], 1
    %s1151 = scalar_lea.sflag [#allocation7], 1
    %1152 = vsyncpa %s1151, 1

// kernel: _lambda_.15
$region0: #{_lambda_.15}
  #allocation0 [shape = 'u32[]', space=smem, size = 0x4, offset = 0x4, fixed_abs, tag = 'smem constant byte address 0x4 - core index']
  #allocation1 [shape = 'u32[144,128]{1,0:T(1,128)}', space=vmem, size = 0x12000, scoped, tag = 'internal scratch']
  #allocation2 [shape = 'f32[32,64]{1,0:T(8,128)}', space=vmem, size = 0x4000, scoped, tag = 'scratch operand']
  %s0 = inlined_call_operand.hbm [shape: bf16[32,256], index: 0, kind: input, shape index: {}]
  %s1 = inlined_call_operand.hbm [shape: bf16[256,64], index: 1, kind: input, shape index: {}]
  %s2 = inlined_call_operand.hbm [shape: f32[1,64], index: 2, kind: input, shape index: {}]
  %s3 = inlined_call_operand.hbm [shape: bf16[32,64], index: 3, kind: input, shape index: {}]
  %s4 = inlined_call_operand.hbm [shape: bf16[32,64], index: 4, kind: output, shape index: {}]
  %s5 = sld [smem:[#allocation0]]
  $region50: #{_lambda_.15} parent=0
    _
  %s7 = ssub.s32 1, %s5
  %s8 = scalar_select 0, %s7, %s5
  $region1: #{_lambda_.15} parent=0
    #allocation3 [shape = 'u8[16384]{0}', space=vmem, size = 0x4000, scoped, tag = 'input window, operand 0, single buffered']
    #allocation4 [shape = 's32[1]{0}', space=sflag, size = 0x4, scoped, tag = 'scoped memory for _lambda_.15']
    #allocation5 [shape = 's32[1]{0}', space=sflag, size = 0x4, scoped, tag = 'scoped memory for _lambda_.15']
    #allocation6 [shape = 'u8[65536]{0}', space=vmem, size = 0x10000, scoped, tag = 'input window, operand 1, single buffered']
    #allocation7 [shape = 's32[1]{0}', space=sflag, size = 0x4, scoped, tag = 'scoped memory for _lambda_.15']
    #allocation8 [shape = 'u8[512]{0}', space=vmem, size = 0x400, scoped, tag = 'input window, operand 2, single buffered']
    #allocation9 [shape = 'u8[8192]{0}', space=vmem, size = 0x2000, scoped, tag = 'input window, operand 3, single buffered']
    #allocation10 [shape = 's32[1]{0}', space=sflag, size = 0x4, scoped, tag = 'scoped memory for _lambda_.15']
    #allocation11 [shape = 'u8[8192]{0}', space=vmem, size = 0x2000, scoped, tag = 'output window, operand 0, single buffered']
    %9 = vsyncpa [#allocation4], 0
    %10 = vsyncpa [#allocation7], 0
    %11 = vsyncpa [#allocation10], 0
    %12 = vsyncpa [#allocation5], 0
    // Predicated region
    $region2: #{_lambda_.15} parent=1 // pred_check
      _
    $region3: #{_lambda_.15} parent=1 // pred_check_branch
      %14 = sbr.rel (0) target = $region5
    $region4: #{_lambda_.15} parent=1 // pred_region
      %s16 = ssub.s32 512, 512
      %17 = vsyncadd [#allocation4], %s16
      %s18 = sshll.u32 [#allocation3], 4
      %s19 = int_to_ptr.vmem [resolvable:$true] %s18
      %24 = dma.hbm_to_vmem [thread:$0]  %s0, 512, %s19, [#allocation4], 128, 128, 8
    $region5: #{_lambda_.15} parent=1 // pred_fallthru
      _
    // Predicated region
    $region6: #{_lambda_.15} parent=1 // pred_check
      _
    $region7: #{_lambda_.15} parent=1 // pred_check_branch
      %26 = sbr.rel (0) target = $region9
    $region8: #{_lambda_.15} parent=1 // pred_region
      %s28 = ssub.s32 2048, 2048
      %29 = vsyncadd [#allocation7], %s28
      %s30 = sshll.u32 [#allocation6], 4
      %s31 = int_to_ptr.vmem [resolvable:$true] %s30
      %36 = dma.hbm_to_vmem [thread:$0]  %s1, 2048, %s31, [#allocation7], 64, 64, 4
    $region9: #{_lambda_.15} parent=1 // pred_fallthru
      _
    // Predicated region
    $region10: #{_lambda_.15} parent=1 // pred_check
      _
    $region11: #{_lambda_.15} parent=1 // pred_check_branch
      %38 = sbr.rel (0) target = $region13
    $region12: #{_lambda_.15} parent=1 // pred_region
      %s40 = ssub.s32 16, 16
      %41 = vsyncadd [#allocation7], %s40
      %s43 = sshll.u32 [#allocation8], 4
      %s44 = int_to_ptr.vmem [resolvable:$true] %s43
      %46 = dma.hbm_to_vmem [thread:$0]  %s2, 16, %s44, [#allocation7]
    $region13: #{_lambda_.15} parent=1 // pred_fallthru
      _
    // Predicated region
    $region14: #{_lambda_.15} parent=1 // pred_check
      _
    $region15: #{_lambda_.15} parent=1 // pred_check_branch
      %48 = sbr.rel (0) target = $region17
    $region16: #{_lambda_.15} parent=1 // pred_region
      %s50 = ssub.s32 256, 256
      %51 = vsyncadd [#allocation10], %s50
      %s52 = sshll.u32 [#allocation9], 4
      %s53 = int_to_ptr.vmem [resolvable:$true] %s52
      %58 = dma.hbm_to_vmem [thread:$0]  %s3, 256, %s53, [#allocation10], 64, 64, 4
    $region17: #{_lambda_.15} parent=1 // pred_fallthru
      _
    // Predicated region
    $region18: #{_lambda_.15} parent=1 // pred_check
      _
    $region19: #{_lambda_.15} parent=1 // pred_check_branch
      %60 = sbr.rel (0) target = $region21
    $region20: #{_lambda_.15} parent=1 // pred_region
      %61 = dma.done [#allocation4], 512
    $region21: #{_lambda_.15} parent=1 // pred_fallthru
      _
    // Predicated region
    $region22: #{_lambda_.15} parent=1 // pred_check
      _
    $region23: #{_lambda_.15} parent=1 // pred_check_branch
      %63 = sbr.rel (0) target = $region25
    $region24: #{_lambda_.15} parent=1 // pred_region
      %64 = dma.done [#allocation7], 2048
    $region25: #{_lambda_.15} parent=1 // pred_fallthru
      _
    // Predicated region
    $region26: #{_lambda_.15} parent=1 // pred_check
      _
    $region27: #{_lambda_.15} parent=1 // pred_check_branch
      %66 = sbr.rel (0) target = $region29
    $region28: #{_lambda_.15} parent=1 // pred_region
      %67 = dma.done [#allocation7], 16
    $region29: #{_lambda_.15} parent=1 // pred_fallthru
      _
    // Predicated region
    $region30: #{_lambda_.15} parent=1 // pred_check
      _
    $region31: #{_lambda_.15} parent=1 // pred_check_branch
      %69 = sbr.rel (0) target = $region33
    $region32: #{_lambda_.15} parent=1 // pred_region
      %70 = dma.done [#allocation10], 256
    $region33: #{_lambda_.15} parent=1 // pred_fallthru
      _
    %p72 = scmp.eq.s32.totalorder 0, 0
    // Predicated region
    $region34: #{_lambda_.15} parent=1 // pred_check
      %p73 = pneg %p72
    $region35: #{_lambda_.15} parent=1 // pred_check_branch
      %75 = sbr.rel (%p73) target = $region37
    $region36: #{_lambda_.15} parent=1 // pred_region
      %vm76 = vcmask 523264
      %77 = vst.msk [vmem:[#allocation2] sm:$0xff] %vm76, 0.0
      %78 = vst.msk [vmem:[#allocation2 + $0x8] sm:$0xff] %vm76, 0.0
      %79 = vst.msk [vmem:[#allocation2 + $0x10] sm:$0xff] %vm76, 0.0
      %80 = vst.msk [vmem:[#allocation2 + $0x18] sm:$0xff] %vm76, 0.0
    $region37: #{_lambda_.15} parent=1 // pred_fallthru
      _
    %v81 = vld [vmem:[#allocation2] sm:$0xff]
    %v82 = vld [vmem:[#allocation2 + $0x8] sm:$0xff]
    %v83 = vld [vmem:[#allocation2 + $0x10] sm:$0xff]
    %v84 = vld [vmem:[#allocation2 + $0x18] sm:$0xff]
    %v85 = vld [vmem:[#allocation3] sm:$0xff]
    %v86 = vld [vmem:[#allocation3 + $0x8] sm:$0xff]
    %v87 = vld [vmem:[#allocation3 + $0x10] sm:$0xff]
    %v88 = vld [vmem:[#allocation3 + $0x18] sm:$0xff]
    %v89 = vld [vmem:[#allocation6] sm:$0xf]
    %v90 = vld [vmem:[#allocation6 + $0x4] sm:$0xf]
    %v91 = vld [vmem:[#allocation6 + $0x8] sm:$0xf]
    %v92 = vld [vmem:[#allocation6 + $0xc] sm:$0xf]
    %v93 = vld [vmem:[#allocation6 + $0x10] sm:$0xf]
    %v94 = vld [vmem:[#allocation6 + $0x14] sm:$0xf]
    %v95 = vld [vmem:[#allocation6 + $0x18] sm:$0xf]
    %v96 = vld [vmem:[#allocation6 + $0x1c] sm:$0xf]
    %v97 = vld [vmem:[#allocation6 + $0x20] sm:$0xf]
    %v98 = vld [vmem:[#allocation6 + $0x24] sm:$0xf]
    %v99 = vld [vmem:[#allocation6 + $0x28] sm:$0xf]
    %v100 = vld [vmem:[#allocation6 + $0x2c] sm:$0xf]
    %v101 = vld [vmem:[#allocation6 + $0x30] sm:$0xf]
    %v102 = vld [vmem:[#allocation6 + $0x34] sm:$0xf]
    %v103 = vld [vmem:[#allocation6 + $0x38] sm:$0xf]
    %v104 = vld [vmem:[#allocation6 + $0x3c] sm:$0xf]
    %v105 = vld [vmem:[#allocation6 + $0x40] sm:$0xf]
    %v106 = vld [vmem:[#allocation6 + $0x44] sm:$0xf]
    %v107 = vld [vmem:[#allocation6 + $0x48] sm:$0xf]
    %v108 = vld [vmem:[#allocation6 + $0x4c] sm:$0xf]
    %v109 = vld [vmem:[#allocation6 + $0x50] sm:$0xf]
    %v110 = vld [vmem:[#allocation6 + $0x54] sm:$0xf]
    %v111 = vld [vmem:[#allocation6 + $0x58] sm:$0xf]
    %v112 = vld [vmem:[#allocation6 + $0x5c] sm:$0xf]
    %v113 = vld [vmem:[#allocation6 + $0x60] sm:$0xf]
    %v114 = vld [vmem:[#allocation6 + $0x64] sm:$0xf]
    %v115 = vld [vmem:[#allocation6 + $0x68] sm:$0xf]
    %v116 = vld [vmem:[#allocation6 + $0x6c] sm:$0xf]
    %v117 = vld [vmem:[#allocation6 + $0x70] sm:$0xf]
    %v118 = vld [vmem:[#allocation6 + $0x74] sm:$0xf]
    %v119 = vld [vmem:[#allocation6 + $0x78] sm:$0xf]
    %v120 = vld [vmem:[#allocation6 + $0x7c] sm:$0xf]
    %v125 = vunpack.c.l.b16 %v85
    %v126 = vunpack.c.h.b16 %v85
    %v127 = vunpack.c.l.b16 %v86
    %v128 = vunpack.c.h.b16 %v86
    %v129 = vunpack.c.l.b16 %v87
    %v130 = vunpack.c.h.b16 %v87
    %v131 = vunpack.c.l.b16 %v88
    %v132 = vunpack.c.h.b16 %v88
    %v133 = vpack.c.b16 %v127, %v125
    %v134 = vpack.c.b16 %v128, %v126
    %v135 = vpack.c.b16 %v131, %v129
    %v136 = vpack.c.b16 %v132, %v130
    %v173 = vunpack.c.l.b16 %v89
    %v174 = vunpack.c.l.b16 %v90
    %v175 = vunpack.c.l.b16 %v91
    %v176 = vunpack.c.l.b16 %v92
    %v177 = vunpack.c.l.b16 %v93
    %v178 = vunpack.c.l.b16 %v94
    %v179 = vunpack.c.l.b16 %v95
    %v180 = vunpack.c.l.b16 %v96
    %v181 = vunpack.c.l.b16 %v97
    %v182 = vunpack.c.l.b16 %v98
    %v183 = vunpack.c.l.b16 %v99
    %v184 = vunpack.c.l.b16 %v100
    %v185 = vunpack.c.l.b16 %v101
    %v186 = vunpack.c.l.b16 %v102
    %v187 = vunpack.c.l.b16 %v103
    %v188 = vunpack.c.l.b16 %v104
    %v189 = vunpack.c.l.b16 %v105
    %v190 = vunpack.c.l.b16 %v106
    %v191 = vunpack.c.l.b16 %v107
    %v192 = vunpack.c.l.b16 %v108
    %v193 = vunpack.c.l.b16 %v109
    %v194 = vunpack.c.l.b16 %v110
    %v195 = vunpack.c.l.b16 %v111
    %v196 = vunpack.c.l.b16 %v112
    %v197 = vunpack.c.l.b16 %v113
    %v198 = vunpack.c.l.b16 %v114
    %v199 = vunpack.c.l.b16 %v115
    %v200 = vunpack.c.l.b16 %v116
    %v201 = vunpack.c.l.b16 %v117
    %v202 = vunpack.c.l.b16 %v118
    %v203 = vunpack.c.l.b16 %v119
    %v204 = vunpack.c.l.b16 %v120
    %v205 = vpack.c.b16 %v174, %v173
    %v206 = vpack.c.b16 %v176, %v175
    %v207 = vpack.c.b16 %v178, %v177
    %v208 = vpack.c.b16 %v180, %v179
    %v209 = vpack.c.b16 %v182, %v181
    %v210 = vpack.c.b16 %v184, %v183
    %v211 = vpack.c.b16 %v186, %v185
    %v212 = vpack.c.b16 %v188, %v187
    %v213 = vpack.c.b16 %v190, %v189
    %v214 = vpack.c.b16 %v192, %v191
    %v215 = vpack.c.b16 %v194, %v193
    %v216 = vpack.c.b16 %v196, %v195
    %v217 = vpack.c.b16 %v198, %v197
    %v218 = vpack.c.b16 %v200, %v199
    %v219 = vpack.c.b16 %v202, %v201
    %v220 = vpack.c.b16 %v204, %v203
    %237 = vmatprep.subr.bf16.mxu0 0
    %238 = vmatpush1.bf16.msra.mxu0 %v205
    %239 = vmatprep.subr.bf16.mxu0 0
    %240 = vmatpush1.bf16.msra.mxu0 %v206
    %241 = vmatprep.subr.bf16.mxu0 0
    %242 = vmatpush1.bf16.msra.mxu0 %v207
    %243 = vmatprep.subr.bf16.mxu0 0
    %244 = vmatpush1.bf16.msra.mxu0 %v208
    %245 = vmatprep.subr.bf16.mxu0 0
    %246 = vmatpush1.bf16.msra.mxu0 %v209
    %247 = vmatprep.subr.bf16.mxu0 0
    %248 = vmatpush1.bf16.msra.mxu0 %v210
    %249 = vmatprep.subr.bf16.mxu0 0
    %250 = vmatpush1.bf16.msra.mxu0 %v211
    %251 = vmatprep.subr.bf16.mxu0 0
    %252 = vmatpush1.bf16.msra.mxu0 %v212
    %253 = vmatprep.subr.bf16.mxu0 0
    %254 = vmatpush1.bf16.msra.mxu0 %v213
    %255 = vmatprep.subr.bf16.mxu0 0
    %256 = vmatpush1.bf16.msra.mxu0 %v214
    %257 = vmatprep.subr.bf16.mxu0 0
    %258 = vmatpush1.bf16.msra.mxu0 %v215
    %259 = vmatprep.subr.bf16.mxu0 0
    %260 = vmatpush1.bf16.msra.mxu0 %v216
    %261 = vmatprep.subr.bf16.mxu0 0
    %262 = vmatpush1.bf16.msra.mxu0 %v217
    %263 = vmatprep.subr.bf16.mxu0 0
    %264 = vmatpush1.bf16.msra.mxu0 %v218
    %265 = vmatprep.subr.bf16.mxu0 0
    %266 = vmatpush1.bf16.msra.mxu0 %v219
    %267 = vmatprep.subr.bf16.mxu0 0
    %268 = vmatpush1.bf16.msra.mxu0 %v220
    %269 = vmatprep.mubr.bf16.mxu0 %v134
    %270 = vmatmul.mubr.bf16.gmra.mrb[0].mxu0 %v133
    %v271 = vpop.f32.mrb[0].mxu0
    %v272 = vadd.f32 0.0, %v271
    %v273 = vpop.f32.mrb[0].mxu0
    %v274 = vpop.f32.mrb[0].mxu0
    %v275 = vadd.f32 0.0, %v274
    %v276 = vpop.f32.mrb[0].mxu0
    %277 = vmatprep.mubr.bf16.mxu0 %v136
    %278 = vmatmul.mubr.bf16.gmra.mrb[0].mxu0 %v135
    %v279 = vpop.f32.mrb[0].mxu0
    %v280 = vadd.f32 0.0, %v279
    %v281 = vpop.f32.mrb[0].mxu0
    %v282 = vpop.f32.mrb[0].mxu0
    %v283 = vadd.f32 0.0, %v282
    %v284 = vpop.f32.mrb[0].mxu0
    %285 = vdwg.mxu0
    %v286 = vadd.f32 %v81, %v272
    %v287 = vadd.f32 %v82, %v275
    %v288 = vadd.f32 %v83, %v280
    %v289 = vadd.f32 %v84, %v283
    %vm290 = vcmask 523264
    %291 = vst.msk [vmem:[#allocation2] sm:$0xff] %vm290, %v286
    %292 = vst.msk [vmem:[#allocation2 + $0x8] sm:$0xff] %vm290, %v287
    %293 = vst.msk [vmem:[#allocation2 + $0x10] sm:$0xff] %vm290, %v288
    %294 = vst.msk [vmem:[#allocation2 + $0x18] sm:$0xff] %vm290, %v289
    // Predicated region
    $region38: #{_lambda_.15} parent=1 // pred_check
      %p295 = pneg %p72
    $region39: #{_lambda_.15} parent=1 // pred_check_branch
      %297 = sbr.rel (%p295) target = $region41
    $region40: #{_lambda_.15} parent=1 // pred_region
      %v298 = vld [vmem:[#allocation2] sm:$0xff]
      %v299 = vld [vmem:[#allocation2 + $0x8] sm:$0xff]
      %v300 = vld [vmem:[#allocation2 + $0x10] sm:$0xff]
      %v301 = vld [vmem:[#allocation2 + $0x18] sm:$0xff]
      %v302 = vld [vmem:[#allocation8] sm:$0x1]
      %v304 = vlaneseq
      %v305 = vshrl.u32 %v304, 7
      %v306 = vsub.s32 0, %v305
      %v307 = vrot.slane %v302, %v306
      %v309 = vadd.f32 %v298, %v307
      %v310 = vadd.f32 %v299, %v307
      %v311 = vadd.f32 %v300, %v307
      %v312 = vadd.f32 %v301, %v307
      %v313 = vld [vmem:[#allocation9] sm:$0xf]
      %v314 = vld [vmem:[#allocation9 + $0x4] sm:$0xf]
      %v315 = vld [vmem:[#allocation9 + $0x8] sm:$0xf]
      %v316 = vld [vmem:[#allocation9 + $0xc] sm:$0xf]
      %v317 = vunpack.c.l.bf16 %v313
      %v318 = vunpack.c.l.bf16 %v314
      %v319 = vunpack.c.l.bf16 %v315
      %v320 = vunpack.c.l.bf16 %v316
      %v321 = vadd.f32 %v309, %v317
      %v322 = vadd.f32 %v310, %v318
      %v323 = vadd.f32 %v311, %v319
      %v324 = vadd.f32 %v312, %v320
      %v325 = vpack.c.bf16 %v322, %v321
      %v326 = vpack.c.bf16 %v324, %v323
      %v329 = vunpack.c.l.b16 %v325
      %v330 = vunpack.c.h.b16 %v325
      %v331 = vunpack.c.l.b16 %v326
      %v332 = vunpack.c.h.b16 %v326
      %v333 = vpack.c.b16 %v329, %v329
      %v334 = vpack.c.b16 %v330, %v330
      %v335 = vpack.c.b16 %v331, %v331
      %v336 = vpack.c.b16 %v332, %v332
      %vm341 = vcmask 519168
      %342 = vst.msk [vmem:[#allocation11] sm:$0xf] %vm341, %v333
      %343 = vst.msk [vmem:[#allocation11 + $0x4] sm:$0xf] %vm341, %v334
      %344 = vst.msk [vmem:[#allocation11 + $0x8] sm:$0xf] %vm341, %v335
      %345 = vst.msk [vmem:[#allocation11 + $0xc] sm:$0xf] %vm341, %v336
    $region41: #{_lambda_.15} parent=1 // pred_fallthru
      _
    // Predicated region
    $region42: #{_lambda_.15} parent=1 // pred_check
      _
    $region43: #{_lambda_.15} parent=1 // pred_check_branch
      %347 = sbr.rel (0) target = $region45
    $region44: #{_lambda_.15} parent=1 // pred_region
      %s349 = ssub.s32 256, 256
      %350 = vsyncadd [#allocation5], %s349
      %s351 = sshll.u32 [#allocation11], 4
      %s352 = int_to_ptr.vmem [resolvable:$true] %s351
      %357 = dma.vmem_to_hbm [thread:$0]  %s352, 256, %s4, [#allocation5], 64, 64, 4
    $region45: #{_lambda_.15} parent=1 // pred_fallthru
      _
    // Predicated region
    $region46: #{_lambda_.15} parent=1 // pred_check
      _
    $region47: #{_lambda_.15} parent=1 // pred_check_branch
      %359 = sbr.rel (0) target = $region49
    $region48: #{_lambda_.15} parent=1 // pred_region
      %360 = dma.done [#allocation5], 256
    $region49: #{_lambda_.15} parent=1 // pred_fallthru
      _
    %361 = vsyncpa [#allocation4], 1
    %362 = vsyncpa [#allocation7], 1
    %363 = vsyncpa [#allocation10], 1
    %364 = vsyncpa [#allocation5], 1

// kernel: _lambda_.21
$region0: #{_lambda_.21}
  #allocation0 [shape = 'u32[]', space=smem, size = 0x4, offset = 0x4, fixed_abs, tag = 'smem constant byte address 0x4 - core index']
  #allocation1 [shape = 'u32[144,128]{1,0:T(1,128)}', space=vmem, size = 0x12000, scoped, tag = 'internal scratch']
  #allocation2 [shape = 'bf16[32,64]{1,0:T(16,128)(2,1)}', space=vmem, size = 0x2000, scoped, tag = 'scratch operand']
  %s0 = inlined_call_operand.hbm [shape: bf16[32,64], index: 0, kind: input, shape index: {}]
  %s1 = inlined_call_operand.hbm [shape: f32[1,64], index: 1, kind: input, shape index: {}]
  %s2 = inlined_call_operand.hbm [shape: f32[1,64], index: 2, kind: input, shape index: {}]
  %s3 = inlined_call_operand.hbm [shape: bf16[64,256], index: 3, kind: input, shape index: {}]
  %s4 = inlined_call_operand.hbm [shape: f32[32,256], index: 4, kind: output, shape index: {}]
  %s5 = sld [smem:[#allocation0]]
  $region46: #{_lambda_.21} parent=0
    _
  %s7 = ssub.s32 1, %s5
  %s8 = scalar_select 0, %s7, %s5
  $region1: #{_lambda_.21} parent=0
    #allocation3 [shape = 'u8[8192]{0}', space=vmem, size = 0x2000, scoped, tag = 'input window, operand 0, single buffered']
    #allocation4 [shape = 's32[1]{0}', space=sflag, size = 0x4, scoped, tag = 'scoped memory for _lambda_.21']
    #allocation5 [shape = 's32[1]{0}', space=sflag, size = 0x4, scoped, tag = 'scoped memory for _lambda_.21']
    #allocation6 [shape = 'u8[512]{0}', space=vmem, size = 0x400, scoped, tag = 'input window, operand 1, single buffered']
    #allocation7 [shape = 's32[1]{0}', space=sflag, size = 0x4, scoped, tag = 'scoped memory for _lambda_.21']
    #allocation8 [shape = 'u8[512]{0}', space=vmem, size = 0x400, scoped, tag = 'input window, operand 2, single buffered']
    #allocation9 [shape = 'u8[32768]{0}', space=vmem, size = 0x8000, scoped, tag = 'input window, operand 3, single buffered']
    #allocation10 [shape = 's32[1]{0}', space=sflag, size = 0x4, scoped, tag = 'scoped memory for _lambda_.21']
    #allocation11 [shape = 'u8[32768]{0}', space=vmem, size = 0x8000, scoped, tag = 'output window, operand 0, single buffered']
    %9 = vsyncpa [#allocation4], 0
    %10 = vsyncpa [#allocation7], 0
    %11 = vsyncpa [#allocation10], 0
    %12 = vsyncpa [#allocation5], 0
    // Predicated region
    $region2: #{_lambda_.21} parent=1 // pred_check
      _
    $region3: #{_lambda_.21} parent=1 // pred_check_branch
      %14 = sbr.rel (0) target = $region5
    $region4: #{_lambda_.21} parent=1 // pred_region
      %s16 = ssub.s32 256, 256
      %17 = vsyncadd [#allocation4], %s16
      %s18 = sshll.u32 [#allocation3], 4
      %s19 = int_to_ptr.vmem [resolvable:$true] %s18
      %24 = dma.hbm_to_vmem [thread:$0]  %s0, 256, %s19, [#allocation4], 64, 64, 4
    $region5: #{_lambda_.21} parent=1 // pred_fallthru
      _
    // Predicated region
    $region6: #{_lambda_.21} parent=1 // pred_check
      _
    $region7: #{_lambda_.21} parent=1 // pred_check_branch
      %26 = sbr.rel (0) target = $region9
    $region8: #{_lambda_.21} parent=1 // pred_region
      %s28 = ssub.s32 16, 16
      %29 = vsyncadd [#allocation7], %s28
      %s31 = sshll.u32 [#allocation6], 4
      %s32 = int_to_ptr.vmem [resolvable:$true] %s31
      %34 = dma.hbm_to_vmem [thread:$0]  %s1, 16, %s32, [#allocation7]
    $region9: #{_lambda_.21} parent=1 // pred_fallthru
      _
    // Predicated region
    $region10: #{_lambda_.21} parent=1 // pred_check
      _
    $region11: #{_lambda_.21} parent=1 // pred_check_branch
      %36 = sbr.rel (0) target = $region13
    $region12: #{_lambda_.21} parent=1 // pred_region
      %s38 = ssub.s32 16, 16
      %39 = vsyncadd [#allocation7], %s38
      %s41 = sshll.u32 [#allocation8], 4
      %s42 = int_to_ptr.vmem [resolvable:$true] %s41
      %44 = dma.hbm_to_vmem [thread:$0]  %s2, 16, %s42, [#allocation7]
    $region13: #{_lambda_.21} parent=1 // pred_fallthru
      _
    // Predicated region
    $region14: #{_lambda_.21} parent=1 // pred_check
      _
    $region15: #{_lambda_.21} parent=1 // pred_check_branch
      %46 = sbr.rel (0) target = $region17
    $region16: #{_lambda_.21} parent=1 // pred_region
      %s48 = ssub.s32 1024, 1024
      %49 = vsyncadd [#allocation10], %s48
      %s50 = sshll.u32 [#allocation9], 4
      %s51 = int_to_ptr.vmem [resolvable:$true] %s50
      %56 = dma.hbm_to_vmem [thread:$0]  %s3, 1024, %s51, [#allocation10], 128, 128, 8
    $region17: #{_lambda_.21} parent=1 // pred_fallthru
      _
    // Predicated region
    $region18: #{_lambda_.21} parent=1 // pred_check
      _
    $region19: #{_lambda_.21} parent=1 // pred_check_branch
      %58 = sbr.rel (0) target = $region21
    $region20: #{_lambda_.21} parent=1 // pred_region
      %59 = dma.done [#allocation4], 256
    $region21: #{_lambda_.21} parent=1 // pred_fallthru
      _
    // Predicated region
    $region22: #{_lambda_.21} parent=1 // pred_check
      _
    $region23: #{_lambda_.21} parent=1 // pred_check_branch
      %61 = sbr.rel (0) target = $region25
    $region24: #{_lambda_.21} parent=1 // pred_region
      %62 = dma.done [#allocation7], 16
    $region25: #{_lambda_.21} parent=1 // pred_fallthru
      _
    // Predicated region
    $region26: #{_lambda_.21} parent=1 // pred_check
      _
    $region27: #{_lambda_.21} parent=1 // pred_check_branch
      %64 = sbr.rel (0) target = $region29
    $region28: #{_lambda_.21} parent=1 // pred_region
      %65 = dma.done [#allocation7], 16
    $region29: #{_lambda_.21} parent=1 // pred_fallthru
      _
    // Predicated region
    $region30: #{_lambda_.21} parent=1 // pred_check
      _
    $region31: #{_lambda_.21} parent=1 // pred_check_branch
      %67 = sbr.rel (0) target = $region33
    $region32: #{_lambda_.21} parent=1 // pred_region
      %68 = dma.done [#allocation10], 1024
    $region33: #{_lambda_.21} parent=1 // pred_fallthru
      _
    %p70 = scmp.eq.s32.totalorder 0, 0
    // Predicated region
    $region34: #{_lambda_.21} parent=1 // pred_check
      %p71 = pneg %p70
    $region35: #{_lambda_.21} parent=1 // pred_check_branch
      %73 = sbr.rel (%p71) target = $region37
    $region36: #{_lambda_.21} parent=1 // pred_region
      %v74 = vld [vmem:[#allocation3] sm:$0xf]
      %v75 = vld [vmem:[#allocation3 + $0x4] sm:$0xf]
      %v76 = vld [vmem:[#allocation3 + $0x8] sm:$0xf]
      %v77 = vld [vmem:[#allocation3 + $0xc] sm:$0xf]
      %v78 = vunpack.c.l.bf16 %v74
      %v79 = vunpack.c.l.bf16 %v75
      %v80 = vunpack.c.l.bf16 %v76
      %v81 = vunpack.c.l.bf16 %v77
      %vm82 = vcmask 523264
      %v83 = vsel %vm82, %v78, 0.0
      %84 = vadd.xlane.f32.xlu0 %v83
      %v85 = vpop.xlane.xlu0 %84
      %v86 = vsel %vm82, %v79, 0.0
      %87 = vadd.xlane.f32.xlu0 %v86
      %v88 = vpop.xlane.xlu0 %87
      %v89 = vsel %vm82, %v80, 0.0
      %90 = vadd.xlane.f32.xlu0 %v89
      %v91 = vpop.xlane.xlu0 %90
      %v92 = vsel %vm82, %v81, 0.0
      %93 = vadd.xlane.f32.xlu0 %v92
      %v94 = vpop.xlane.xlu0 %93
      %v95 = vrcp.pop 64.0
      %v96 = vmul.f32 %v85, %v95
      %v97 = vmul.f32 %v88, %v95
      %v98 = vmul.f32 %v91, %v95
      %v99 = vmul.f32 %v94, %v95
      %v100 = vsub.f32 %v78, %v96
      %v101 = vsub.f32 %v79, %v97
      %v102 = vsub.f32 %v80, %v98
      %v103 = vsub.f32 %v81, %v99
      %v104 = vmul.f32 %v100, %v100
      %v105 = vmul.f32 %v101, %v101
      %v106 = vmul.f32 %v102, %v102
      %v107 = vmul.f32 %v103, %v103
      %v108 = vsel %vm82, %v104, 0.0
      %109 = vadd.xlane.f32.xlu0 %v108
      %v110 = vpop.xlane.xlu0 %109
      %v111 = vsel %vm82, %v105, 0.0
      %112 = vadd.xlane.f32.xlu0 %v111
      %v113 = vpop.xlane.xlu0 %112
      %v114 = vsel %vm82, %v106, 0.0
      %115 = vadd.xlane.f32.xlu0 %v114
      %v116 = vpop.xlane.xlu0 %115
      %v117 = vsel %vm82, %v107, 0.0
      %118 = vadd.xlane.f32.xlu0 %v117
      %v119 = vpop.xlane.xlu0 %118
      %v120 = vmul.f32 %v110, %v95
      %v121 = vmul.f32 %v113, %v95
      %v122 = vmul.f32 %v116, %v95
      %v123 = vmul.f32 %v119, %v95
      %v124 = vadd.f32 %v120, 1e-05
      %v125 = vadd.f32 %v121, 1e-05
      %v126 = vadd.f32 %v122, 1e-05
      %v127 = vadd.f32 %v123, 1e-05
      %v128 = vrsqrt.pop %v124
      %v129 = vrsqrt.pop %v125
      %v130 = vrsqrt.pop %v126
      %v131 = vrsqrt.pop %v127
      %v132 = vmul.f32 %v100, %v128
      %v133 = vmul.f32 %v101, %v129
      %v134 = vmul.f32 %v102, %v130
      %v135 = vmul.f32 %v103, %v131
      %v136 = vld [vmem:[#allocation6] sm:$0x1]
      %v138 = vlaneseq
      %v139 = vshrl.u32 %v138, 7
      %v140 = vsub.s32 0, %v139
      %v141 = vrot.slane %v136, %v140
      %v143 = vmul.f32 %v132, %v141
      %v144 = vmul.f32 %v133, %v141
      %v145 = vmul.f32 %v134, %v141
      %v146 = vmul.f32 %v135, %v141
      %v147 = vld [vmem:[#allocation8] sm:$0x1]
      %v149 = vlaneseq
      %v150 = vshrl.u32 %v149, 7
      %v151 = vsub.s32 0, %v150
      %v152 = vrot.slane %v147, %v151
      %v154 = vadd.f32 %v143, %v152
      %v155 = vadd.f32 %v144, %v152
      %v156 = vadd.f32 %v145, %v152
      %v157 = vadd.f32 %v146, %v152
      %v158 = vpack.c.bf16 %v155, %v154
      %v159 = vpack.c.bf16 %v157, %v156
      %160 = vst.msk [vmem:[#allocation2] sm:$0xff] %vm82, %v158
      %161 = vst.msk [vmem:[#allocation2 + $0x8] sm:$0xff] %vm82, %v159
    $region37: #{_lambda_.21} parent=1 // pred_fallthru
      _
    %v162 = vld [vmem:[#allocation2] sm:$0xff]
    %v163 = vld [vmem:[#allocation2 + $0x8] sm:$0xff]
    %v164 = vld [vmem:[#allocation9] sm:$0xff]
    %v165 = vld [vmem:[#allocation9 + $0x8] sm:$0xff]
    %v166 = vld [vmem:[#allocation9 + $0x10] sm:$0xff]
    %v167 = vld [vmem:[#allocation9 + $0x18] sm:$0xff]
    %v168 = vld [vmem:[#allocation9 + $0x20] sm:$0xff]
    %v169 = vld [vmem:[#allocation9 + $0x28] sm:$0xff]
    %v170 = vld [vmem:[#allocation9 + $0x30] sm:$0xff]
    %v171 = vld [vmem:[#allocation9 + $0x38] sm:$0xff]
    %v180 = vunpack.c.l.b16 %v164
    %v181 = vunpack.c.h.b16 %v164
    %v182 = vunpack.c.l.b16 %v165
    %v183 = vunpack.c.h.b16 %v165
    %v184 = vunpack.c.l.b16 %v166
    %v185 = vunpack.c.h.b16 %v166
    %v186 = vunpack.c.l.b16 %v167
    %v187 = vunpack.c.h.b16 %v167
    %v188 = vunpack.c.l.b16 %v168
    %v189 = vunpack.c.h.b16 %v168
    %v190 = vunpack.c.l.b16 %v169
    %v191 = vunpack.c.h.b16 %v169
    %v192 = vunpack.c.l.b16 %v170
    %v193 = vunpack.c.h.b16 %v170
    %v194 = vunpack.c.l.b16 %v171
    %v195 = vunpack.c.h.b16 %v171
    %v196 = vpack.c.b16 %v182, %v180
    %v197 = vpack.c.b16 %v183, %v181
    %v198 = vpack.c.b16 %v186, %v184
    %v199 = vpack.c.b16 %v187, %v185
    %v200 = vpack.c.b16 %v190, %v188
    %v201 = vpack.c.b16 %v191, %v189
    %v202 = vpack.c.b16 %v194, %v192
    %v203 = vpack.c.b16 %v195, %v193
    %vm212 = vcmask 523264
    %v214 = vsel %vm212, %v162, 0
    %v217 = vsel %vm212, %v163, 0
    %219 = vmatprep.subr.bf16.mxu0 %v197
    %220 = vmatpush1.bf16.msra.mxu0 %v196
    %221 = vmatprep.subr.bf16.mxu0 %v199
    %222 = vmatpush1.bf16.msra.mxu0 %v198
    %223 = vmatprep.subr.bf16.mxu0 %v201
    %224 = vmatpush1.bf16.msra.mxu0 %v200
    %225 = vmatprep.subr.bf16.mxu0 %v203
    %226 = vmatpush1.bf16.msra.mxu0 %v202
    %227 = vmatprep.subr.bf16.mxu0 0
    %228 = vmatpush1.bf16.msra.mxu0 0
    %229 = vmatprep.subr.bf16.mxu0 0
    %230 = vmatpush1.bf16.msra.mxu0 0
    %231 = vmatprep.subr.bf16.mxu0 0
    %232 = vmatpush1.bf16.msra.mxu0 0
    %233 = vmatprep.subr.bf16.mxu0 0
    %234 = vmatpush1.bf16.msra.mxu0 0
    %235 = vmatprep.subr.bf16.mxu0 0
    %236 = vmatpush1.bf16.msra.mxu0 0
    %237 = vmatprep.subr.bf16.mxu0 0
    %238 = vmatpush1.bf16.msra.mxu0 0
    %239 = vmatprep.subr.bf16.mxu0 0
    %240 = vmatpush1.bf16.msra.mxu0 0
    %241 = vmatprep.subr.bf16.mxu0 0
    %242 = vmatpush1.bf16.msra.mxu0 0
    %243 = vmatprep.subr.bf16.mxu0 0
    %244 = vmatpush1.bf16.msra.mxu0 0
    %245 = vmatprep.subr.bf16.mxu0 0
    %246 = vmatpush1.bf16.msra.mxu0 0
    %247 = vmatprep.subr.bf16.mxu0 0
    %248 = vmatpush1.bf16.msra.mxu0 0
    %249 = vmatprep.subr.bf16.mxu0 0
    %250 = vmatpush1.bf16.msra.mxu0 0
    %251 = vmatprep.mubr.bf16.mxu0 0
    %252 = vmatmul.mubr.bf16.gmra.mrb[0].mxu0 %v214
    %v253 = vpop.f32.mrb[0].mxu0
    %v254 = vadd.f32 0.0, %v253
    %v255 = vpop.f32.mrb[0].mxu0
    %v256 = vadd.f32 0.0, %v255
    %v257 = vpop.f32.mrb[0].mxu0
    %v258 = vadd.f32 0.0, %v257
    %v259 = vpop.f32.mrb[0].mxu0
    %v260 = vadd.f32 0.0, %v259
    %261 = vmatprep.mubr.bf16.mxu0 0
    %262 = vmatmul.mubr.bf16.gmra.mrb[0].mxu0 %v217
    %v263 = vpop.f32.mrb[0].mxu0
    %v264 = vadd.f32 0.0, %v263
    %v265 = vpop.f32.mrb[0].mxu0
    %v266 = vadd.f32 0.0, %v265
    %v267 = vpop.f32.mrb[0].mxu0
    %v268 = vadd.f32 0.0, %v267
    %v269 = vpop.f32.mrb[0].mxu0
    %v270 = vadd.f32 0.0, %v269
    %271 = vdwg.mxu0
    %272 = vst [vmem:[#allocation11] sm:$0xff] %v254
    %273 = vst [vmem:[#allocation11 + $0x8] sm:$0xff] %v256
    %274 = vst [vmem:[#allocation11 + $0x10] sm:$0xff] %v258
    %275 = vst [vmem:[#allocation11 + $0x18] sm:$0xff] %v260
    %276 = vst [vmem:[#allocation11 + $0x20] sm:$0xff] %v264
    %277 = vst [vmem:[#allocation11 + $0x28] sm:$0xff] %v266
    %278 = vst [vmem:[#allocation11 + $0x30] sm:$0xff] %v268
    %279 = vst [vmem:[#allocation11 + $0x38] sm:$0xff] %v270
    // Predicated region
    $region38: #{_lambda_.21} parent=1 // pred_check
      _
    $region39: #{_lambda_.21} parent=1 // pred_check_branch
      %281 = sbr.rel (0) target = $region41
    $region40: #{_lambda_.21} parent=1 // pred_region
      %s283 = ssub.s32 1024, 1024
      %284 = vsyncadd [#allocation5], %s283
      %s285 = sshll.u32 [#allocation11], 4
      %s286 = int_to_ptr.vmem [resolvable:$true] %s285
      %291 = dma.vmem_to_hbm [thread:$0]  %s286, 1024, %s4, [#allocation5], 256, 256, 16
    $region41: #{_lambda_.21} parent=1 // pred_fallthru
      _
    // Predicated region
    $region42: #{_lambda_.21} parent=1 // pred_check
      _
    $region43: #{_lambda_.21} parent=1 // pred_check_branch
      %293 = sbr.rel (0) target = $region45
    $region44: #{_lambda_.21} parent=1 // pred_region
      %294 = dma.done [#allocation5], 1024
    $region45: #{_lambda_.21} parent=1 // pred_fallthru
      _
    %295 = vsyncpa [#allocation4], 1
    %296 = vsyncpa [#allocation7], 1
    %297 = vsyncpa [#allocation10], 1
    %298 = vsyncpa [#allocation5], 1

</llo_original>
